<compile_context>
chip_gen: v6e
topology: v6e:2x2x1
jax: 0.10.0
libtpu: 0.0.40
codegen_flags: <defaults>
</compile_context>

<pallas_src>
import jax
import jax.numpy as jnp
import numpy as np
from jax.experimental import pallas as pl
from jax.experimental.pallas import tpu as pltpu


def _round_up(v, m):
    return (v + m - 1) // m * m


# ----------------------------------------------------------------------------
# Pallas kernel
# ----------------------------------------------------------------------------
def _make_lstm_encoder_kernel(num_layers: int, seq_len: int, hp: int):
    """Kernel body. Refs: x, (W_cat, bias) per layer, out."""
    unroll = seq_len <= 32

    def kernel(*refs):
        x_ref = refs[0]                             # (T, Bp, Din_p)
        w_refs = refs[1:1 + 2 * num_layers]         # per layer: W (K,4Hp), b (Bp,4Hp)
        out_ref = refs[1 + 2 * num_layers]          # (Bp, Hp)
        bp = out_ref.shape[0]

        def step(t, carry):
            states, acc = carry
            inp = x_ref[t]                          # (Bp, Din_p) / (Bp, Hp)
            new_states = []
            for l in range(num_layers):
                h, c = states[l]
                cat = jnp.concatenate([inp, h], axis=-1)      # (Bp, K_l)
                gates = (
                    jnp.dot(cat, w_refs[2 * l][...],
                            preferred_element_type=jnp.float32)
                    + w_refs[2 * l + 1][...]
                )                                             # (Bp, 4Hp)
                # packed gate order: i, f, o (sigmoid slab), g (tanh slab)
                sig = jax.nn.sigmoid(gates[:, :3 * hp])
                i_g = sig[:, 0 * hp:1 * hp]
                f_g = sig[:, 1 * hp:2 * hp]
                o_g = sig[:, 2 * hp:3 * hp]
                g_g = jnp.tanh(gates[:, 3 * hp:4 * hp])

                c = f_g * c + i_g * g_g
                h = o_g * jnp.tanh(c)
                new_states.append((h, c))
                inp = h

            # F.normalize(out, 2, dim=-1) per timestep (eps=1e-12), accumulate.
            nrm = jnp.sqrt(jnp.sum(inp * inp, axis=-1, keepdims=True))
            acc = acc + inp / jnp.maximum(nrm, 1e-12)
            return (tuple(new_states), acc)

        zeros = jnp.zeros((bp, hp), jnp.float32)
        init = (tuple((zeros, zeros) for _ in range(num_layers)), zeros)
        _, acc = jax.lax.fori_loop(0, seq_len, step, init, unroll=unroll)

        mean = acc / float(seq_len)
        n2 = jnp.sqrt(jnp.sum(mean * mean, axis=-1, keepdims=True))
        out_ref[...] = mean / jnp.maximum(n2, 1e-12)

    return kernel


# ----------------------------------------------------------------------------
# Weight packing (fused [w_ih; w_hh] with gate reorder + lane padding)
# ----------------------------------------------------------------------------
def _pack_params(layer_params, H, Hp, Din_p, Bp):
    packed = []
    for l, (w_ih, w_hh, b_ih, b_hh) in enumerate(layer_params):
        din = w_ih.shape[1]
        din_p = Din_p if l == 0 else Hp
        K = din_p + Hp
        W = jnp.zeros((K, 4 * Hp), jnp.float32)
        b = jnp.zeros((4 * Hp,), jnp.float32)
        # PyTorch gate row order is (i, f, g, o); repack columns as (i, f, o, g)
        # so the three sigmoids cover one contiguous 3*Hp slab.
        for dst, src in enumerate((0, 1, 3, 2)):
            W = W.at[:din, dst * Hp:dst * Hp + H].set(
                jnp.transpose(w_ih[src * H:(src + 1) * H, :]))
            W = W.at[din_p:din_p + H, dst * Hp:dst * Hp + H].set(
                jnp.transpose(w_hh[src * H:(src + 1) * H, :]))
            b = b.at[dst * Hp:dst * Hp + H].set(
                b_ih[src * H:(src + 1) * H] + b_hh[src * H:(src + 1) * H])
        packed.append((W, jnp.broadcast_to(b[None, :], (Bp, 4 * Hp))))
    return packed


# ----------------------------------------------------------------------------
# Wrapper
# ----------------------------------------------------------------------------
def ms_encoder_forward(x, layer_params):
    """x: (B, T, Din) f32; layer_params: list of (w_ih, w_hh, b_ih, b_hh)
    in raw PyTorch LSTM layout."""
    B, T, Din = x.shape
    num_layers = len(layer_params)
    H = layer_params[0][1].shape[1]             # w_hh: (4H, H)

    Hp = _round_up(H, 128)
    Bp = _round_up(B, 8)
    Din_p = _round_up(Din, 128)

    packed = _pack_params(layer_params, H, Hp, Din_p, Bp)

    # Pad batch/features with zeros and put time on the leading axis so the
    # in-kernel dynamic read x_ref[t] slices the untiled dim (cheap).
    xp = jnp.zeros((Bp, T, Din_p), jnp.float32).at[:B, :, :Din].set(
        x.astype(jnp.float32))
    xp = jnp.transpose(xp, (1, 0, 2))           # (T, Bp, Din_p)

    flat_weights = []
    in_specs = [pl.BlockSpec((T, Bp, Din_p), lambda i: (0, 0, 0))]
    for (W, b) in packed:
        flat_weights += [W, b]
        in_specs += [
            pl.BlockSpec(W.shape, lambda i: (0, 0)),
            pl.BlockSpec(b.shape, lambda i: (0, 0)),
        ]

    out_padded = pl.pallas_call(
        _make_lstm_encoder_kernel(num_layers, T, Hp),
        out_shape=jax.ShapeDtypeStruct((Bp, Hp), jnp.float32),
        grid_spec=pltpu.PrefetchScalarGridSpec(
            num_scalar_prefetch=0,
            grid=(1,),
            in_specs=in_specs,
            out_specs=pl.BlockSpec((Bp, Hp), lambda i: (0, 0)),
        ),
        compiler_params=pltpu.CompilerParams(
            dimension_semantics=("arbitrary",)),
    )(xp, *flat_weights)

    return out_padded[:B, :H]


# ----------------------------------------------------------------------------
# Parameter construction (PyTorch LSTM layout and init ranges)
# ----------------------------------------------------------------------------
def init_lstm_params(key, input_size, hidden_size, num_layers):
    params = []
    k = 1.0 / np.sqrt(hidden_size)
    for l in range(num_layers):
        din = input_size if l == 0 else hidden_size
        key, k1, k2, k3, k4 = jax.random.split(key, 5)
        w_ih = jax.random.uniform(k1, (4 * hidden_size, din), jnp.float32, -k, k)
        w_hh = jax.random.uniform(k2, (4 * hidden_size, hidden_size), jnp.float32, -k, k)
        b_ih = jax.random.uniform(k3, (4 * hidden_size,), jnp.float32, -k, k)
        b_hh = jax.random.uniform(k4, (4 * hidden_size,), jnp.float32, -k, k)
        params.append((w_ih, w_hh, b_ih, b_hh))
    return params


# ----------------------------------------------------------------------------
# Pure-JAX reference (same math) for a correctness check
# ----------------------------------------------------------------------------
def ms_encoder_reference(x, layer_params):
    B, T, _ = x.shape
    inp = x
    for (w_ih, w_hh, b_ih, b_hh) in layer_params:
        H = w_hh.shape[1]
        wih_t = jnp.transpose(w_ih)
        whh_t = jnp.transpose(w_hh)
        b2d = (b_ih + b_hh)[None, :]

        def step(carry, x_t, wih_t=wih_t, whh_t=whh_t, b2d=b2d, H=H):
            h, c = carry
            gates = x_t @ wih_t + h @ whh_t + b2d
            i_g = jax.nn.sigmoid(gates[:, 0 * H:1 * H])
            f_g = jax.nn.sigmoid(gates[:, 1 * H:2 * H])
            g_g = jnp.tanh(gates[:, 2 * H:3 * H])
            o_g = jax.nn.sigmoid(gates[:, 3 * H:4 * H])
            c_new = f_g * c + i_g * g_g
            h_new = o_g * jnp.tanh(c_new)
            return (h_new, c_new), h_new

        h0 = jnp.zeros((B, H), jnp.float32)
        c0 = jnp.zeros((B, H), jnp.float32)
        (_, _), hs = jax.lax.scan(step, (h0, c0), jnp.swapaxes(inp, 0, 1))
        inp = jnp.swapaxes(hs, 0, 1)            # (B, T, H)

    def l2n(v):
        n = jnp.sqrt(jnp.sum(v * v, axis=-1, keepdims=True))
        return v / jnp.maximum(n, 1e-12)

    out = l2n(inp)
    out = jnp.mean(out, axis=1)
    return l2n(out)


# ----------------------------------------------------------------------------
if __name__ == "__main__":
    B, T, INPUT_SIZE, HIDDEN, LAYERS = 2, 8, 16, 32, 2

    key = jax.random.PRNGKey(0)
    key, kx = jax.random.split(key)
    x = jax.random.normal(kx, (B, T, INPUT_SIZE), jnp.float32)

    params = init_lstm_params(key, INPUT_SIZE, HIDDEN, LAYERS)

    out = jax.block_until_ready(ms_encoder_forward(x, params))
    ref = jax.block_until_ready(ms_encoder_reference(x, params))

    np.testing.assert_allclose(np.asarray(out), np.asarray(ref),
                               rtol=1e-3, atol=1e-3)

    print("KERNEL_OK")
</pallas_src>

<mosaic_0001>
module attributes {stable_mosaic.version = 11 : i64} {
  func.func @kernel(%arg0: i32, %arg1: memref<8x8x128xf32, #tpu.memory_space<vmem>>, %arg2: memref<256x512xf32, #tpu.memory_space<vmem>>, %arg3: memref<8x512xf32, #tpu.memory_space<vmem>>, %arg4: memref<256x512xf32, #tpu.memory_space<vmem>>, %arg5: memref<8x512xf32, #tpu.memory_space<vmem>>, %arg6: memref<8x128xf32, #tpu.memory_space<vmem>>) attributes {dimension_semantics = [#tpu.dimension_semantics<arbitrary>], iteration_bounds = array<i64: 1>, scalar_prefetch = 0 : i64, scratch_operands = 0 : i64, tpu.core_type = #tpu.core_type<tc>, window_params = [{pipeline_mode = #tpu.pipeline_mode<synchronous>, transform_indices = @transform_0, window_bounds = array<i64: 8, 8, 128>}, {pipeline_mode = #tpu.pipeline_mode<synchronous>, transform_indices = @transform_1, window_bounds = array<i64: 256, 512>}, {pipeline_mode = #tpu.pipeline_mode<synchronous>, transform_indices = @transform_2, window_bounds = array<i64: 8, 512>}, {pipeline_mode = #tpu.pipeline_mode<synchronous>, transform_indices = @transform_3, window_bounds = array<i64: 256, 512>}, {pipeline_mode = #tpu.pipeline_mode<synchronous>, transform_indices = @transform_4, window_bounds = array<i64: 8, 512>}, {pipeline_mode = #tpu.pipeline_mode<synchronous>, transform_indices = @transform_5, window_bounds = array<i64: 8, 128>}]} {
    %cst = arith.constant 0.000000e+00 : f32
    %0 = vector.broadcast %cst : f32 to vector<8x128xf32>
    %c0_i32 = arith.constant 0 : i32
    %1 = arith.index_cast %c0_i32 : i32 to index
    %c0 = arith.constant 0 : index
    %c0_0 = arith.constant 0 : index
    %2 = vector.load %arg1[%1, %c0, %c0_0] : memref<8x8x128xf32, #tpu.memory_space<vmem>>, vector<1x8x128xf32>
    %3 = vector.shape_cast %2 : vector<1x8x128xf32> to vector<8x128xf32>
    %4 = tpu.concatenate %3, %0 in 1 : vector<8x128xf32>, vector<8x128xf32> -> vector<8x256xf32>
    %c0_1 = arith.constant 0 : index
    %c0_2 = arith.constant 0 : index
    %5 = vector.load %arg2[%c0_1, %c0_2] : memref<256x512xf32, #tpu.memory_space<vmem>>, vector<256x512xf32>
    %cst_3 = arith.constant dense<0.000000e+00> : vector<8x512xf32>
    %6 = tpu.matmul %4, %5, %cst_3 {dimension_numbers = #tpu.dot_dimension_numbers<[1], [0], [0], [1], [0, 0, 1, 1], [], []>} : vector<8x256xf32>, vector<256x512xf32>, vector<8x512xf32> -> vector<8x512xf32>
    %c0_4 = arith.constant 0 : index
    %c0_5 = arith.constant 0 : index
    %7 = vector.load %arg3[%c0_4, %c0_5] : memref<8x512xf32, #tpu.memory_space<vmem>>, vector<8x512xf32>
    %8 = arith.addf %6, %7 : vector<8x512xf32>
    %9 = vector.extract_strided_slice %8 {offsets = [0, 0], sizes = [8, 384], strides = [1, 1]} : vector<8x512xf32> to vector<8x384xf32>
    %10 = arith.negf %9 : vector<8x384xf32>
    %11 = math.exp %10 : vector<8x384xf32>
    %cst_6 = arith.constant 1.000000e+00 : f32
    %12 = vector.broadcast %cst_6 : f32 to vector<8x384xf32>
    %13 = arith.addf %12, %11 : vector<8x384xf32>
    %14 = arith.divf %12, %13 : vector<8x384xf32>
    %15 = vector.extract_strided_slice %14 {offsets = [0, 0], sizes = [8, 128], strides = [1, 1]} : vector<8x384xf32> to vector<8x128xf32>
    %16 = vector.extract_strided_slice %14 {offsets = [0, 128], sizes = [8, 128], strides = [1, 1]} : vector<8x384xf32> to vector<8x128xf32>
    %17 = vector.extract_strided_slice %14 {offsets = [0, 256], sizes = [8, 128], strides = [1, 1]} : vector<8x384xf32> to vector<8x128xf32>
    %18 = vector.extract_strided_slice %8 {offsets = [0, 384], sizes = [8, 128], strides = [1, 1]} : vector<8x512xf32> to vector<8x128xf32>
    %19 = math.tanh %18 : vector<8x128xf32>
    %20 = arith.mulf %16, %0 : vector<8x128xf32>
    %21 = arith.mulf %15, %19 : vector<8x128xf32>
    %22 = arith.addf %20, %21 : vector<8x128xf32>
    %23 = math.tanh %22 : vector<8x128xf32>
    %24 = arith.mulf %17, %23 : vector<8x128xf32>
    %25 = tpu.concatenate %24, %0 in 1 : vector<8x128xf32>, vector<8x128xf32> -> vector<8x256xf32>
    %c0_7 = arith.constant 0 : index
    %c0_8 = arith.constant 0 : index
    %26 = vector.load %arg4[%c0_7, %c0_8] : memref<256x512xf32, #tpu.memory_space<vmem>>, vector<256x512xf32>
    %cst_9 = arith.constant dense<0.000000e+00> : vector<8x512xf32>
    %27 = tpu.matmul %25, %26, %cst_9 {dimension_numbers = #tpu.dot_dimension_numbers<[1], [0], [0], [1], [0, 0, 1, 1], [], []>} : vector<8x256xf32>, vector<256x512xf32>, vector<8x512xf32> -> vector<8x512xf32>
    %c0_10 = arith.constant 0 : index
    %c0_11 = arith.constant 0 : index
    %28 = vector.load %arg5[%c0_10, %c0_11] : memref<8x512xf32, #tpu.memory_space<vmem>>, vector<8x512xf32>
    %29 = arith.addf %27, %28 : vector<8x512xf32>
    %30 = vector.extract_strided_slice %29 {offsets = [0, 0], sizes = [8, 384], strides = [1, 1]} : vector<8x512xf32> to vector<8x384xf32>
    %31 = arith.negf %30 : vector<8x384xf32>
    %32 = math.exp %31 : vector<8x384xf32>
    %cst_12 = arith.constant 1.000000e+00 : f32
    %33 = vector.broadcast %cst_12 : f32 to vector<8x384xf32>
    %34 = arith.addf %33, %32 : vector<8x384xf32>
    %35 = arith.divf %33, %34 : vector<8x384xf32>
    %36 = vector.extract_strided_slice %35 {offsets = [0, 0], sizes = [8, 128], strides = [1, 1]} : vector<8x384xf32> to vector<8x128xf32>
    %37 = vector.extract_strided_slice %35 {offsets = [0, 128], sizes = [8, 128], strides = [1, 1]} : vector<8x384xf32> to vector<8x128xf32>
    %38 = vector.extract_strided_slice %35 {offsets = [0, 256], sizes = [8, 128], strides = [1, 1]} : vector<8x384xf32> to vector<8x128xf32>
    %39 = vector.extract_strided_slice %29 {offsets = [0, 384], sizes = [8, 128], strides = [1, 1]} : vector<8x512xf32> to vector<8x128xf32>
    %40 = math.tanh %39 : vector<8x128xf32>
    %41 = arith.mulf %37, %0 : vector<8x128xf32>
    %42 = arith.mulf %36, %40 : vector<8x128xf32>
    %43 = arith.addf %41, %42 : vector<8x128xf32>
    %44 = math.tanh %43 : vector<8x128xf32>
    %45 = arith.mulf %38, %44 : vector<8x128xf32>
    %46 = arith.mulf %45, %45 : vector<8x128xf32>
    %cst_13 = arith.constant dense<0.000000e+00> : vector<8xf32>
    %47 = vector.multi_reduction <add>, %46, %cst_13 [1] : vector<8x128xf32> to vector<8xf32>
    %48 = vector.shape_cast %47 : vector<8xf32> to vector<8x1xf32>
    %49 = math.sqrt %48 : vector<8x1xf32>
    %cst_14 = arith.constant 9.99999996E-13 : f32
    %50 = vector.broadcast %cst_14 : f32 to vector<8x1xf32>
    %51 = arith.maximumf %49, %50 : vector<8x1xf32>
    %52 = vector.broadcast %51 : vector<8x1xf32> to vector<8x128xf32>
    %53 = arith.divf %45, %52 : vector<8x128xf32>
    %54 = arith.addf %0, %53 : vector<8x128xf32>
    %c1_i32 = arith.constant 1 : i32
    %55 = arith.index_cast %c1_i32 : i32 to index
    %c0_15 = arith.constant 0 : index
    %c0_16 = arith.constant 0 : index
    %56 = vector.load %arg1[%55, %c0_15, %c0_16] : memref<8x8x128xf32, #tpu.memory_space<vmem>>, vector<1x8x128xf32>
    %57 = vector.shape_cast %56 : vector<1x8x128xf32> to vector<8x128xf32>
    %58 = tpu.concatenate %57, %24 in 1 : vector<8x128xf32>, vector<8x128xf32> -> vector<8x256xf32>
    %c0_17 = arith.constant 0 : index
    %c0_18 = arith.constant 0 : index
    %59 = vector.load %arg2[%c0_17, %c0_18] : memref<256x512xf32, #tpu.memory_space<vmem>>, vector<256x512xf32>
    %cst_19 = arith.constant dense<0.000000e+00> : vector<8x512xf32>
    %60 = tpu.matmul %58, %59, %cst_19 {dimension_numbers = #tpu.dot_dimension_numbers<[1], [0], [0], [1], [0, 0, 1, 1], [], []>} : vector<8x256xf32>, vector<256x512xf32>, vector<8x512xf32> -> vector<8x512xf32>
    %c0_20 = arith.constant 0 : index
    %c0_21 = arith.constant 0 : index
    %61 = vector.load %arg3[%c0_20, %c0_21] : memref<8x512xf32, #tpu.memory_space<vmem>>, vector<8x512xf32>
    %62 = arith.addf %60, %61 : vector<8x512xf32>
    %63 = vector.extract_strided_slice %62 {offsets = [0, 0], sizes = [8, 384], strides = [1, 1]} : vector<8x512xf32> to vector<8x384xf32>
    %64 = arith.negf %63 : vector<8x384xf32>
    %65 = math.exp %64 : vector<8x384xf32>
    %cst_22 = arith.constant 1.000000e+00 : f32
    %66 = vector.broadcast %cst_22 : f32 to vector<8x384xf32>
    %67 = arith.addf %66, %65 : vector<8x384xf32>
    %68 = arith.divf %66, %67 : vector<8x384xf32>
    %69 = vector.extract_strided_slice %68 {offsets = [0, 0], sizes = [8, 128], strides = [1, 1]} : vector<8x384xf32> to vector<8x128xf32>
    %70 = vector.extract_strided_slice %68 {offsets = [0, 128], sizes = [8, 128], strides = [1, 1]} : vector<8x384xf32> to vector<8x128xf32>
    %71 = vector.extract_strided_slice %68 {offsets = [0, 256], sizes = [8, 128], strides = [1, 1]} : vector<8x384xf32> to vector<8x128xf32>
    %72 = vector.extract_strided_slice %62 {offsets = [0, 384], sizes = [8, 128], strides = [1, 1]} : vector<8x512xf32> to vector<8x128xf32>
    %73 = math.tanh %72 : vector<8x128xf32>
    %74 = arith.mulf %70, %22 : vector<8x128xf32>
    %75 = arith.mulf %69, %73 : vector<8x128xf32>
    %76 = arith.addf %74, %75 : vector<8x128xf32>
    %77 = math.tanh %76 : vector<8x128xf32>
    %78 = arith.mulf %71, %77 : vector<8x128xf32>
    %79 = tpu.concatenate %78, %45 in 1 : vector<8x128xf32>, vector<8x128xf32> -> vector<8x256xf32>
    %c0_23 = arith.constant 0 : index
    %c0_24 = arith.constant 0 : index
    %80 = vector.load %arg4[%c0_23, %c0_24] : memref<256x512xf32, #tpu.memory_space<vmem>>, vector<256x512xf32>
    %cst_25 = arith.constant dense<0.000000e+00> : vector<8x512xf32>
    %81 = tpu.matmul %79, %80, %cst_25 {dimension_numbers = #tpu.dot_dimension_numbers<[1], [0], [0], [1], [0, 0, 1, 1], [], []>} : vector<8x256xf32>, vector<256x512xf32>, vector<8x512xf32> -> vector<8x512xf32>
    %c0_26 = arith.constant 0 : index
    %c0_27 = arith.constant 0 : index
    %82 = vector.load %arg5[%c0_26, %c0_27] : memref<8x512xf32, #tpu.memory_space<vmem>>, vector<8x512xf32>
    %83 = arith.addf %81, %82 : vector<8x512xf32>
    %84 = vector.extract_strided_slice %83 {offsets = [0, 0], sizes = [8, 384], strides = [1, 1]} : vector<8x512xf32> to vector<8x384xf32>
    %85 = arith.negf %84 : vector<8x384xf32>
    %86 = math.exp %85 : vector<8x384xf32>
    %cst_28 = arith.constant 1.000000e+00 : f32
    %87 = vector.broadcast %cst_28 : f32 to vector<8x384xf32>
    %88 = arith.addf %87, %86 : vector<8x384xf32>
    %89 = arith.divf %87, %88 : vector<8x384xf32>
    %90 = vector.extract_strided_slice %89 {offsets = [0, 0], sizes = [8, 128], strides = [1, 1]} : vector<8x384xf32> to vector<8x128xf32>
    %91 = vector.extract_strided_slice %89 {offsets = [0, 128], sizes = [8, 128], strides = [1, 1]} : vector<8x384xf32> to vector<8x128xf32>
    %92 = vector.extract_strided_slice %89 {offsets = [0, 256], sizes = [8, 128], strides = [1, 1]} : vector<8x384xf32> to vector<8x128xf32>
    %93 = vector.extract_strided_slice %83 {offsets = [0, 384], sizes = [8, 128], strides = [1, 1]} : vector<8x512xf32> to vector<8x128xf32>
    %94 = math.tanh %93 : vector<8x128xf32>
    %95 = arith.mulf %91, %43 : vector<8x128xf32>
    %96 = arith.mulf %90, %94 : vector<8x128xf32>
    %97 = arith.addf %95, %96 : vector<8x128xf32>
    %98 = math.tanh %97 : vector<8x128xf32>
    %99 = arith.mulf %92, %98 : vector<8x128xf32>
    %100 = arith.mulf %99, %99 : vector<8x128xf32>
    %cst_29 = arith.constant dense<0.000000e+00> : vector<8xf32>
    %101 = vector.multi_reduction <add>, %100, %cst_29 [1] : vector<8x128xf32> to vector<8xf32>
    %102 = vector.shape_cast %101 : vector<8xf32> to vector<8x1xf32>
    %103 = math.sqrt %102 : vector<8x1xf32>
    %cst_30 = arith.constant 9.99999996E-13 : f32
    %104 = vector.broadcast %cst_30 : f32 to vector<8x1xf32>
    %105 = arith.maximumf %103, %104 : vector<8x1xf32>
    %106 = vector.broadcast %105 : vector<8x1xf32> to vector<8x128xf32>
    %107 = arith.divf %99, %106 : vector<8x128xf32>
    %108 = arith.addf %54, %107 : vector<8x128xf32>
    %c2_i32 = arith.constant 2 : i32
    %109 = arith.index_cast %c2_i32 : i32 to index
    %c0_31 = arith.constant 0 : index
    %c0_32 = arith.constant 0 : index
    %110 = vector.load %arg1[%109, %c0_31, %c0_32] : memref<8x8x128xf32, #tpu.memory_space<vmem>>, vector<1x8x128xf32>
    %111 = vector.shape_cast %110 : vector<1x8x128xf32> to vector<8x128xf32>
    %112 = tpu.concatenate %111, %78 in 1 : vector<8x128xf32>, vector<8x128xf32> -> vector<8x256xf32>
    %c0_33 = arith.constant 0 : index
    %c0_34 = arith.constant 0 : index
    %113 = vector.load %arg2[%c0_33, %c0_34] : memref<256x512xf32, #tpu.memory_space<vmem>>, vector<256x512xf32>
    %cst_35 = arith.constant dense<0.000000e+00> : vector<8x512xf32>
    %114 = tpu.matmul %112, %113, %cst_35 {dimension_numbers = #tpu.dot_dimension_numbers<[1], [0], [0], [1], [0, 0, 1, 1], [], []>} : vector<8x256xf32>, vector<256x512xf32>, vector<8x512xf32> -> vector<8x512xf32>
    %c0_36 = arith.constant 0 : index
    %c0_37 = arith.constant 0 : index
    %115 = vector.load %arg3[%c0_36, %c0_37] : memref<8x512xf32, #tpu.memory_space<vmem>>, vector<8x512xf32>
    %116 = arith.addf %114, %115 : vector<8x512xf32>
    %117 = vector.extract_strided_slice %116 {offsets = [0, 0], sizes = [8, 384], strides = [1, 1]} : vector<8x512xf32> to vector<8x384xf32>
    %118 = arith.negf %117 : vector<8x384xf32>
    %119 = math.exp %118 : vector<8x384xf32>
    %cst_38 = arith.constant 1.000000e+00 : f32
    %120 = vector.broadcast %cst_38 : f32 to vector<8x384xf32>
    %121 = arith.addf %120, %119 : vector<8x384xf32>
    %122 = arith.divf %120, %121 : vector<8x384xf32>
    %123 = vector.extract_strided_slice %122 {offsets = [0, 0], sizes = [8, 128], strides = [1, 1]} : vector<8x384xf32> to vector<8x128xf32>
    %124 = vector.extract_strided_slice %122 {offsets = [0, 128], sizes = [8, 128], strides = [1, 1]} : vector<8x384xf32> to vector<8x128xf32>
    %125 = vector.extract_strided_slice %122 {offsets = [0, 256], sizes = [8, 128], strides = [1, 1]} : vector<8x384xf32> to vector<8x128xf32>
    %126 = vector.extract_strided_slice %116 {offsets = [0, 384], sizes = [8, 128], strides = [1, 1]} : vector<8x512xf32> to vector<8x128xf32>
    %127 = math.tanh %126 : vector<8x128xf32>
    %128 = arith.mulf %124, %76 : vector<8x128xf32>
    %129 = arith.mulf %123, %127 : vector<8x128xf32>
    %130 = arith.addf %128, %129 : vector<8x128xf32>
    %131 = math.tanh %130 : vector<8x128xf32>
    %132 = arith.mulf %125, %131 : vector<8x128xf32>
    %133 = tpu.concatenate %132, %99 in 1 : vector<8x128xf32>, vector<8x128xf32> -> vector<8x256xf32>
    %c0_39 = arith.constant 0 : index
    %c0_40 = arith.constant 0 : index
    %134 = vector.load %arg4[%c0_39, %c0_40] : memref<256x512xf32, #tpu.memory_space<vmem>>, vector<256x512xf32>
    %cst_41 = arith.constant dense<0.000000e+00> : vector<8x512xf32>
    %135 = tpu.matmul %133, %134, %cst_41 {dimension_numbers = #tpu.dot_dimension_numbers<[1], [0], [0], [1], [0, 0, 1, 1], [], []>} : vector<8x256xf32>, vector<256x512xf32>, vector<8x512xf32> -> vector<8x512xf32>
    %c0_42 = arith.constant 0 : index
    %c0_43 = arith.constant 0 : index
    %136 = vector.load %arg5[%c0_42, %c0_43] : memref<8x512xf32, #tpu.memory_space<vmem>>, vector<8x512xf32>
    %137 = arith.addf %135, %136 : vector<8x512xf32>
    %138 = vector.extract_strided_slice %137 {offsets = [0, 0], sizes = [8, 384], strides = [1, 1]} : vector<8x512xf32> to vector<8x384xf32>
    %139 = arith.negf %138 : vector<8x384xf32>
    %140 = math.exp %139 : vector<8x384xf32>
    %cst_44 = arith.constant 1.000000e+00 : f32
    %141 = vector.broadcast %cst_44 : f32 to vector<8x384xf32>
    %142 = arith.addf %141, %140 : vector<8x384xf32>
    %143 = arith.divf %141, %142 : vector<8x384xf32>
    %144 = vector.extract_strided_slice %143 {offsets = [0, 0], sizes = [8, 128], strides = [1, 1]} : vector<8x384xf32> to vector<8x128xf32>
    %145 = vector.extract_strided_slice %143 {offsets = [0, 128], sizes = [8, 128], strides = [1, 1]} : vector<8x384xf32> to vector<8x128xf32>
    %146 = vector.extract_strided_slice %143 {offsets = [0, 256], sizes = [8, 128], strides = [1, 1]} : vector<8x384xf32> to vector<8x128xf32>
    %147 = vector.extract_strided_slice %137 {offsets = [0, 384], sizes = [8, 128], strides = [1, 1]} : vector<8x512xf32> to vector<8x128xf32>
    %148 = math.tanh %147 : vector<8x128xf32>
    %149 = arith.mulf %145, %97 : vector<8x128xf32>
    %150 = arith.mulf %144, %148 : vector<8x128xf32>
    %151 = arith.addf %149, %150 : vector<8x128xf32>
    %152 = math.tanh %151 : vector<8x128xf32>
    %153 = arith.mulf %146, %152 : vector<8x128xf32>
    %154 = arith.mulf %153, %153 : vector<8x128xf32>
    %cst_45 = arith.constant dense<0.000000e+00> : vector<8xf32>
    %155 = vector.multi_reduction <add>, %154, %cst_45 [1] : vector<8x128xf32> to vector<8xf32>
    %156 = vector.shape_cast %155 : vector<8xf32> to vector<8x1xf32>
    %157 = math.sqrt %156 : vector<8x1xf32>
    %cst_46 = arith.constant 9.99999996E-13 : f32
    %158 = vector.broadcast %cst_46 : f32 to vector<8x1xf32>
    %159 = arith.maximumf %157, %158 : vector<8x1xf32>
    %160 = vector.broadcast %159 : vector<8x1xf32> to vector<8x128xf32>
    %161 = arith.divf %153, %160 : vector<8x128xf32>
    %162 = arith.addf %108, %161 : vector<8x128xf32>
    %c3_i32 = arith.constant 3 : i32
    %163 = arith.index_cast %c3_i32 : i32 to index
    %c0_47 = arith.constant 0 : index
    %c0_48 = arith.constant 0 : index
    %164 = vector.load %arg1[%163, %c0_47, %c0_48] : memref<8x8x128xf32, #tpu.memory_space<vmem>>, vector<1x8x128xf32>
    %165 = vector.shape_cast %164 : vector<1x8x128xf32> to vector<8x128xf32>
    %166 = tpu.concatenate %165, %132 in 1 : vector<8x128xf32>, vector<8x128xf32> -> vector<8x256xf32>
    %c0_49 = arith.constant 0 : index
    %c0_50 = arith.constant 0 : index
    %167 = vector.load %arg2[%c0_49, %c0_50] : memref<256x512xf32, #tpu.memory_space<vmem>>, vector<256x512xf32>
    %cst_51 = arith.constant dense<0.000000e+00> : vector<8x512xf32>
    %168 = tpu.matmul %166, %167, %cst_51 {dimension_numbers = #tpu.dot_dimension_numbers<[1], [0], [0], [1], [0, 0, 1, 1], [], []>} : vector<8x256xf32>, vector<256x512xf32>, vector<8x512xf32> -> vector<8x512xf32>
    %c0_52 = arith.constant 0 : index
    %c0_53 = arith.constant 0 : index
    %169 = vector.load %arg3[%c0_52, %c0_53] : memref<8x512xf32, #tpu.memory_space<vmem>>, vector<8x512xf32>
    %170 = arith.addf %168, %169 : vector<8x512xf32>
    %171 = vector.extract_strided_slice %170 {offsets = [0, 0], sizes = [8, 384], strides = [1, 1]} : vector<8x512xf32> to vector<8x384xf32>
    %172 = arith.negf %171 : vector<8x384xf32>
    %173 = math.exp %172 : vector<8x384xf32>
    %cst_54 = arith.constant 1.000000e+00 : f32
    %174 = vector.broadcast %cst_54 : f32 to vector<8x384xf32>
    %175 = arith.addf %174, %173 : vector<8x384xf32>
    %176 = arith.divf %174, %175 : vector<8x384xf32>
    %177 = vector.extract_strided_slice %176 {offsets = [0, 0], sizes = [8, 128], strides = [1, 1]} : vector<8x384xf32> to vector<8x128xf32>
    %178 = vector.extract_strided_slice %176 {offsets = [0, 128], sizes = [8, 128], strides = [1, 1]} : vector<8x384xf32> to vector<8x128xf32>
    %179 = vector.extract_strided_slice %176 {offsets = [0, 256], sizes = [8, 128], strides = [1, 1]} : vector<8x384xf32> to vector<8x128xf32>
    %180 = vector.extract_strided_slice %170 {offsets = [0, 384], sizes = [8, 128], strides = [1, 1]} : vector<8x512xf32> to vector<8x128xf32>
    %181 = math.tanh %180 : vector<8x128xf32>
    %182 = arith.mulf %178, %130 : vector<8x128xf32>
    %183 = arith.mulf %177, %181 : vector<8x128xf32>
    %184 = arith.addf %182, %183 : vector<8x128xf32>
    %185 = math.tanh %184 : vector<8x128xf32>
    %186 = arith.mulf %179, %185 : vector<8x128xf32>
    %187 = tpu.concatenate %186, %153 in 1 : vector<8x128xf32>, vector<8x128xf32> -> vector<8x256xf32>
    %c0_55 = arith.constant 0 : index
    %c0_56 = arith.constant 0 : index
    %188 = vector.load %arg4[%c0_55, %c0_56] : memref<256x512xf32, #tpu.memory_space<vmem>>, vector<256x512xf32>
    %cst_57 = arith.constant dense<0.000000e+00> : vector<8x512xf32>
    %189 = tpu.matmul %187, %188, %cst_57 {dimension_numbers = #tpu.dot_dimension_numbers<[1], [0], [0], [1], [0, 0, 1, 1], [], []>} : vector<8x256xf32>, vector<256x512xf32>, vector<8x512xf32> -> vector<8x512xf32>
    %c0_58 = arith.constant 0 : index
    %c0_59 = arith.constant 0 : index
    %190 = vector.load %arg5[%c0_58, %c0_59] : memref<8x512xf32, #tpu.memory_space<vmem>>, vector<8x512xf32>
    %191 = arith.addf %189, %190 : vector<8x512xf32>
    %192 = vector.extract_strided_slice %191 {offsets = [0, 0], sizes = [8, 384], strides = [1, 1]} : vector<8x512xf32> to vector<8x384xf32>
    %193 = arith.negf %192 : vector<8x384xf32>
    %194 = math.exp %193 : vector<8x384xf32>
    %cst_60 = arith.constant 1.000000e+00 : f32
    %195 = vector.broadcast %cst_60 : f32 to vector<8x384xf32>
    %196 = arith.addf %195, %194 : vector<8x384xf32>
    %197 = arith.divf %195, %196 : vector<8x384xf32>
    %198 = vector.extract_strided_slice %197 {offsets = [0, 0], sizes = [8, 128], strides = [1, 1]} : vector<8x384xf32> to vector<8x128xf32>
    %199 = vector.extract_strided_slice %197 {offsets = [0, 128], sizes = [8, 128], strides = [1, 1]} : vector<8x384xf32> to vector<8x128xf32>
    %200 = vector.extract_strided_slice %197 {offsets = [0, 256], sizes = [8, 128], strides = [1, 1]} : vector<8x384xf32> to vector<8x128xf32>
    %201 = vector.extract_strided_slice %191 {offsets = [0, 384], sizes = [8, 128], strides = [1, 1]} : vector<8x512xf32> to vector<8x128xf32>
    %202 = math.tanh %201 : vector<8x128xf32>
    %203 = arith.mulf %199, %151 : vector<8x128xf32>
    %204 = arith.mulf %198, %202 : vector<8x128xf32>
    %205 = arith.addf %203, %204 : vector<8x128xf32>
    %206 = math.tanh %205 : vector<8x128xf32>
    %207 = arith.mulf %200, %206 : vector<8x128xf32>
    %208 = arith.mulf %207, %207 : vector<8x128xf32>
    %cst_61 = arith.constant dense<0.000000e+00> : vector<8xf32>
    %209 = vector.multi_reduction <add>, %208, %cst_61 [1] : vector<8x128xf32> to vector<8xf32>
    %210 = vector.shape_cast %209 : vector<8xf32> to vector<8x1xf32>
    %211 = math.sqrt %210 : vector<8x1xf32>
    %cst_62 = arith.constant 9.99999996E-13 : f32
    %212 = vector.broadcast %cst_62 : f32 to vector<8x1xf32>
    %213 = arith.maximumf %211, %212 : vector<8x1xf32>
    %214 = vector.broadcast %213 : vector<8x1xf32> to vector<8x128xf32>
    %215 = arith.divf %207, %214 : vector<8x128xf32>
    %216 = arith.addf %162, %215 : vector<8x128xf32>
    %c4_i32 = arith.constant 4 : i32
    %217 = arith.index_cast %c4_i32 : i32 to index
    %c0_63 = arith.constant 0 : index
    %c0_64 = arith.constant 0 : index
    %218 = vector.load %arg1[%217, %c0_63, %c0_64] : memref<8x8x128xf32, #tpu.memory_space<vmem>>, vector<1x8x128xf32>
    %219 = vector.shape_cast %218 : vector<1x8x128xf32> to vector<8x128xf32>
    %220 = tpu.concatenate %219, %186 in 1 : vector<8x128xf32>, vector<8x128xf32> -> vector<8x256xf32>
    %c0_65 = arith.constant 0 : index
    %c0_66 = arith.constant 0 : index
    %221 = vector.load %arg2[%c0_65, %c0_66] : memref<256x512xf32, #tpu.memory_space<vmem>>, vector<256x512xf32>
    %cst_67 = arith.constant dense<0.000000e+00> : vector<8x512xf32>
    %222 = tpu.matmul %220, %221, %cst_67 {dimension_numbers = #tpu.dot_dimension_numbers<[1], [0], [0], [1], [0, 0, 1, 1], [], []>} : vector<8x256xf32>, vector<256x512xf32>, vector<8x512xf32> -> vector<8x512xf32>
    %c0_68 = arith.constant 0 : index
    %c0_69 = arith.constant 0 : index
    %223 = vector.load %arg3[%c0_68, %c0_69] : memref<8x512xf32, #tpu.memory_space<vmem>>, vector<8x512xf32>
    %224 = arith.addf %222, %223 : vector<8x512xf32>
    %225 = vector.extract_strided_slice %224 {offsets = [0, 0], sizes = [8, 384], strides = [1, 1]} : vector<8x512xf32> to vector<8x384xf32>
    %226 = arith.negf %225 : vector<8x384xf32>
    %227 = math.exp %226 : vector<8x384xf32>
    %cst_70 = arith.constant 1.000000e+00 : f32
    %228 = vector.broadcast %cst_70 : f32 to vector<8x384xf32>
    %229 = arith.addf %228, %227 : vector<8x384xf32>
    %230 = arith.divf %228, %229 : vector<8x384xf32>
    %231 = vector.extract_strided_slice %230 {offsets = [0, 0], sizes = [8, 128], strides = [1, 1]} : vector<8x384xf32> to vector<8x128xf32>
    %232 = vector.extract_strided_slice %230 {offsets = [0, 128], sizes = [8, 128], strides = [1, 1]} : vector<8x384xf32> to vector<8x128xf32>
    %233 = vector.extract_strided_slice %230 {offsets = [0, 256], sizes = [8, 128], strides = [1, 1]} : vector<8x384xf32> to vector<8x128xf32>
    %234 = vector.extract_strided_slice %224 {offsets = [0, 384], sizes = [8, 128], strides = [1, 1]} : vector<8x512xf32> to vector<8x128xf32>
    %235 = math.tanh %234 : vector<8x128xf32>
    %236 = arith.mulf %232, %184 : vector<8x128xf32>
    %237 = arith.mulf %231, %235 : vector<8x128xf32>
    %238 = arith.addf %236, %237 : vector<8x128xf32>
    %239 = math.tanh %238 : vector<8x128xf32>
    %240 = arith.mulf %233, %239 : vector<8x128xf32>
    %241 = tpu.concatenate %240, %207 in 1 : vector<8x128xf32>, vector<8x128xf32> -> vector<8x256xf32>
    %c0_71 = arith.constant 0 : index
    %c0_72 = arith.constant 0 : index
    %242 = vector.load %arg4[%c0_71, %c0_72] : memref<256x512xf32, #tpu.memory_space<vmem>>, vector<256x512xf32>
    %cst_73 = arith.constant dense<0.000000e+00> : vector<8x512xf32>
    %243 = tpu.matmul %241, %242, %cst_73 {dimension_numbers = #tpu.dot_dimension_numbers<[1], [0], [0], [1], [0, 0, 1, 1], [], []>} : vector<8x256xf32>, vector<256x512xf32>, vector<8x512xf32> -> vector<8x512xf32>
    %c0_74 = arith.constant 0 : index
    %c0_75 = arith.constant 0 : index
    %244 = vector.load %arg5[%c0_74, %c0_75] : memref<8x512xf32, #tpu.memory_space<vmem>>, vector<8x512xf32>
    %245 = arith.addf %243, %244 : vector<8x512xf32>
    %246 = vector.extract_strided_slice %245 {offsets = [0, 0], sizes = [8, 384], strides = [1, 1]} : vector<8x512xf32> to vector<8x384xf32>
    %247 = arith.negf %246 : vector<8x384xf32>
    %248 = math.exp %247 : vector<8x384xf32>
    %cst_76 = arith.constant 1.000000e+00 : f32
    %249 = vector.broadcast %cst_76 : f32 to vector<8x384xf32>
    %250 = arith.addf %249, %248 : vector<8x384xf32>
    %251 = arith.divf %249, %250 : vector<8x384xf32>
    %252 = vector.extract_strided_slice %251 {offsets = [0, 0], sizes = [8, 128], strides = [1, 1]} : vector<8x384xf32> to vector<8x128xf32>
    %253 = vector.extract_strided_slice %251 {offsets = [0, 128], sizes = [8, 128], strides = [1, 1]} : vector<8x384xf32> to vector<8x128xf32>
    %254 = vector.extract_strided_slice %251 {offsets = [0, 256], sizes = [8, 128], strides = [1, 1]} : vector<8x384xf32> to vector<8x128xf32>
    %255 = vector.extract_strided_slice %245 {offsets = [0, 384], sizes = [8, 128], strides = [1, 1]} : vector<8x512xf32> to vector<8x128xf32>
    %256 = math.tanh %255 : vector<8x128xf32>
    %257 = arith.mulf %253, %205 : vector<8x128xf32>
    %258 = arith.mulf %252, %256 : vector<8x128xf32>
    %259 = arith.addf %257, %258 : vector<8x128xf32>
    %260 = math.tanh %259 : vector<8x128xf32>
    %261 = arith.mulf %254, %260 : vector<8x128xf32>
    %262 = arith.mulf %261, %261 : vector<8x128xf32>
    %cst_77 = arith.constant dense<0.000000e+00> : vector<8xf32>
    %263 = vector.multi_reduction <add>, %262, %cst_77 [1] : vector<8x128xf32> to vector<8xf32>
    %264 = vector.shape_cast %263 : vector<8xf32> to vector<8x1xf32>
    %265 = math.sqrt %264 : vector<8x1xf32>
    %cst_78 = arith.constant 9.99999996E-13 : f32
    %266 = vector.broadcast %cst_78 : f32 to vector<8x1xf32>
    %267 = arith.maximumf %265, %266 : vector<8x1xf32>
    %268 = vector.broadcast %267 : vector<8x1xf32> to vector<8x128xf32>
    %269 = arith.divf %261, %268 : vector<8x128xf32>
    %270 = arith.addf %216, %269 : vector<8x128xf32>
    %c5_i32 = arith.constant 5 : i32
    %271 = arith.index_cast %c5_i32 : i32 to index
    %c0_79 = arith.constant 0 : index
    %c0_80 = arith.constant 0 : index
    %272 = vector.load %arg1[%271, %c0_79, %c0_80] : memref<8x8x128xf32, #tpu.memory_space<vmem>>, vector<1x8x128xf32>
    %273 = vector.shape_cast %272 : vector<1x8x128xf32> to vector<8x128xf32>
    %274 = tpu.concatenate %273, %240 in 1 : vector<8x128xf32>, vector<8x128xf32> -> vector<8x256xf32>
    %c0_81 = arith.constant 0 : index
    %c0_82 = arith.constant 0 : index
    %275 = vector.load %arg2[%c0_81, %c0_82] : memref<256x512xf32, #tpu.memory_space<vmem>>, vector<256x512xf32>
    %cst_83 = arith.constant dense<0.000000e+00> : vector<8x512xf32>
    %276 = tpu.matmul %274, %275, %cst_83 {dimension_numbers = #tpu.dot_dimension_numbers<[1], [0], [0], [1], [0, 0, 1, 1], [], []>} : vector<8x256xf32>, vector<256x512xf32>, vector<8x512xf32> -> vector<8x512xf32>
    %c0_84 = arith.constant 0 : index
    %c0_85 = arith.constant 0 : index
    %277 = vector.load %arg3[%c0_84, %c0_85] : memref<8x512xf32, #tpu.memory_space<vmem>>, vector<8x512xf32>
    %278 = arith.addf %276, %277 : vector<8x512xf32>
    %279 = vector.extract_strided_slice %278 {offsets = [0, 0], sizes = [8, 384], strides = [1, 1]} : vector<8x512xf32> to vector<8x384xf32>
    %280 = arith.negf %279 : vector<8x384xf32>
    %281 = math.exp %280 : vector<8x384xf32>
    %cst_86 = arith.constant 1.000000e+00 : f32
    %282 = vector.broadcast %cst_86 : f32 to vector<8x384xf32>
    %283 = arith.addf %282, %281 : vector<8x384xf32>
    %284 = arith.divf %282, %283 : vector<8x384xf32>
    %285 = vector.extract_strided_slice %284 {offsets = [0, 0], sizes = [8, 128], strides = [1, 1]} : vector<8x384xf32> to vector<8x128xf32>
    %286 = vector.extract_strided_slice %284 {offsets = [0, 128], sizes = [8, 128], strides = [1, 1]} : vector<8x384xf32> to vector<8x128xf32>
    %287 = vector.extract_strided_slice %284 {offsets = [0, 256], sizes = [8, 128], strides = [1, 1]} : vector<8x384xf32> to vector<8x128xf32>
    %288 = vector.extract_strided_slice %278 {offsets = [0, 384], sizes = [8, 128], strides = [1, 1]} : vector<8x512xf32> to vector<8x128xf32>
    %289 = math.tanh %288 : vector<8x128xf32>
    %290 = arith.mulf %286, %238 : vector<8x128xf32>
    %291 = arith.mulf %285, %289 : vector<8x128xf32>
    %292 = arith.addf %290, %291 : vector<8x128xf32>
    %293 = math.tanh %292 : vector<8x128xf32>
    %294 = arith.mulf %287, %293 : vector<8x128xf32>
    %295 = tpu.concatenate %294, %261 in 1 : vector<8x128xf32>, vector<8x128xf32> -> vector<8x256xf32>
    %c0_87 = arith.constant 0 : index
    %c0_88 = arith.constant 0 : index
    %296 = vector.load %arg4[%c0_87, %c0_88] : memref<256x512xf32, #tpu.memory_space<vmem>>, vector<256x512xf32>
    %cst_89 = arith.constant dense<0.000000e+00> : vector<8x512xf32>
    %297 = tpu.matmul %295, %296, %cst_89 {dimension_numbers = #tpu.dot_dimension_numbers<[1], [0], [0], [1], [0, 0, 1, 1], [], []>} : vector<8x256xf32>, vector<256x512xf32>, vector<8x512xf32> -> vector<8x512xf32>
    %c0_90 = arith.constant 0 : index
    %c0_91 = arith.constant 0 : index
    %298 = vector.load %arg5[%c0_90, %c0_91] : memref<8x512xf32, #tpu.memory_space<vmem>>, vector<8x512xf32>
    %299 = arith.addf %297, %298 : vector<8x512xf32>
    %300 = vector.extract_strided_slice %299 {offsets = [0, 0], sizes = [8, 384], strides = [1, 1]} : vector<8x512xf32> to vector<8x384xf32>
    %301 = arith.negf %300 : vector<8x384xf32>
    %302 = math.exp %301 : vector<8x384xf32>
    %cst_92 = arith.constant 1.000000e+00 : f32
    %303 = vector.broadcast %cst_92 : f32 to vector<8x384xf32>
    %304 = arith.addf %303, %302 : vector<8x384xf32>
    %305 = arith.divf %303, %304 : vector<8x384xf32>
    %306 = vector.extract_strided_slice %305 {offsets = [0, 0], sizes = [8, 128], strides = [1, 1]} : vector<8x384xf32> to vector<8x128xf32>
    %307 = vector.extract_strided_slice %305 {offsets = [0, 128], sizes = [8, 128], strides = [1, 1]} : vector<8x384xf32> to vector<8x128xf32>
    %308 = vector.extract_strided_slice %305 {offsets = [0, 256], sizes = [8, 128], strides = [1, 1]} : vector<8x384xf32> to vector<8x128xf32>
    %309 = vector.extract_strided_slice %299 {offsets = [0, 384], sizes = [8, 128], strides = [1, 1]} : vector<8x512xf32> to vector<8x128xf32>
    %310 = math.tanh %309 : vector<8x128xf32>
    %311 = arith.mulf %307, %259 : vector<8x128xf32>
    %312 = arith.mulf %306, %310 : vector<8x128xf32>
    %313 = arith.addf %311, %312 : vector<8x128xf32>
    %314 = math.tanh %313 : vector<8x128xf32>
    %315 = arith.mulf %308, %314 : vector<8x128xf32>
    %316 = arith.mulf %315, %315 : vector<8x128xf32>
    %cst_93 = arith.constant dense<0.000000e+00> : vector<8xf32>
    %317 = vector.multi_reduction <add>, %316, %cst_93 [1] : vector<8x128xf32> to vector<8xf32>
    %318 = vector.shape_cast %317 : vector<8xf32> to vector<8x1xf32>
    %319 = math.sqrt %318 : vector<8x1xf32>
    %cst_94 = arith.constant 9.99999996E-13 : f32
    %320 = vector.broadcast %cst_94 : f32 to vector<8x1xf32>
    %321 = arith.maximumf %319, %320 : vector<8x1xf32>
    %322 = vector.broadcast %321 : vector<8x1xf32> to vector<8x128xf32>
    %323 = arith.divf %315, %322 : vector<8x128xf32>
    %324 = arith.addf %270, %323 : vector<8x128xf32>
    %c6_i32 = arith.constant 6 : i32
    %325 = arith.index_cast %c6_i32 : i32 to index
    %c0_95 = arith.constant 0 : index
    %c0_96 = arith.constant 0 : index
    %326 = vector.load %arg1[%325, %c0_95, %c0_96] : memref<8x8x128xf32, #tpu.memory_space<vmem>>, vector<1x8x128xf32>
    %327 = vector.shape_cast %326 : vector<1x8x128xf32> to vector<8x128xf32>
    %328 = tpu.concatenate %327, %294 in 1 : vector<8x128xf32>, vector<8x128xf32> -> vector<8x256xf32>
    %c0_97 = arith.constant 0 : index
    %c0_98 = arith.constant 0 : index
    %329 = vector.load %arg2[%c0_97, %c0_98] : memref<256x512xf32, #tpu.memory_space<vmem>>, vector<256x512xf32>
    %cst_99 = arith.constant dense<0.000000e+00> : vector<8x512xf32>
    %330 = tpu.matmul %328, %329, %cst_99 {dimension_numbers = #tpu.dot_dimension_numbers<[1], [0], [0], [1], [0, 0, 1, 1], [], []>} : vector<8x256xf32>, vector<256x512xf32>, vector<8x512xf32> -> vector<8x512xf32>
    %c0_100 = arith.constant 0 : index
    %c0_101 = arith.constant 0 : index
    %331 = vector.load %arg3[%c0_100, %c0_101] : memref<8x512xf32, #tpu.memory_space<vmem>>, vector<8x512xf32>
    %332 = arith.addf %330, %331 : vector<8x512xf32>
    %333 = vector.extract_strided_slice %332 {offsets = [0, 0], sizes = [8, 384], strides = [1, 1]} : vector<8x512xf32> to vector<8x384xf32>
    %334 = arith.negf %333 : vector<8x384xf32>
    %335 = math.exp %334 : vector<8x384xf32>
    %cst_102 = arith.constant 1.000000e+00 : f32
    %336 = vector.broadcast %cst_102 : f32 to vector<8x384xf32>
    %337 = arith.addf %336, %335 : vector<8x384xf32>
    %338 = arith.divf %336, %337 : vector<8x384xf32>
    %339 = vector.extract_strided_slice %338 {offsets = [0, 0], sizes = [8, 128], strides = [1, 1]} : vector<8x384xf32> to vector<8x128xf32>
    %340 = vector.extract_strided_slice %338 {offsets = [0, 128], sizes = [8, 128], strides = [1, 1]} : vector<8x384xf32> to vector<8x128xf32>
    %341 = vector.extract_strided_slice %338 {offsets = [0, 256], sizes = [8, 128], strides = [1, 1]} : vector<8x384xf32> to vector<8x128xf32>
    %342 = vector.extract_strided_slice %332 {offsets = [0, 384], sizes = [8, 128], strides = [1, 1]} : vector<8x512xf32> to vector<8x128xf32>
    %343 = math.tanh %342 : vector<8x128xf32>
    %344 = arith.mulf %340, %292 : vector<8x128xf32>
    %345 = arith.mulf %339, %343 : vector<8x128xf32>
    %346 = arith.addf %344, %345 : vector<8x128xf32>
    %347 = math.tanh %346 : vector<8x128xf32>
    %348 = arith.mulf %341, %347 : vector<8x128xf32>
    %349 = tpu.concatenate %348, %315 in 1 : vector<8x128xf32>, vector<8x128xf32> -> vector<8x256xf32>
    %c0_103 = arith.constant 0 : index
    %c0_104 = arith.constant 0 : index
    %350 = vector.load %arg4[%c0_103, %c0_104] : memref<256x512xf32, #tpu.memory_space<vmem>>, vector<256x512xf32>
    %cst_105 = arith.constant dense<0.000000e+00> : vector<8x512xf32>
    %351 = tpu.matmul %349, %350, %cst_105 {dimension_numbers = #tpu.dot_dimension_numbers<[1], [0], [0], [1], [0, 0, 1, 1], [], []>} : vector<8x256xf32>, vector<256x512xf32>, vector<8x512xf32> -> vector<8x512xf32>
    %c0_106 = arith.constant 0 : index
    %c0_107 = arith.constant 0 : index
    %352 = vector.load %arg5[%c0_106, %c0_107] : memref<8x512xf32, #tpu.memory_space<vmem>>, vector<8x512xf32>
    %353 = arith.addf %351, %352 : vector<8x512xf32>
    %354 = vector.extract_strided_slice %353 {offsets = [0, 0], sizes = [8, 384], strides = [1, 1]} : vector<8x512xf32> to vector<8x384xf32>
    %355 = arith.negf %354 : vector<8x384xf32>
    %356 = math.exp %355 : vector<8x384xf32>
    %cst_108 = arith.constant 1.000000e+00 : f32
    %357 = vector.broadcast %cst_108 : f32 to vector<8x384xf32>
    %358 = arith.addf %357, %356 : vector<8x384xf32>
    %359 = arith.divf %357, %358 : vector<8x384xf32>
    %360 = vector.extract_strided_slice %359 {offsets = [0, 0], sizes = [8, 128], strides = [1, 1]} : vector<8x384xf32> to vector<8x128xf32>
    %361 = vector.extract_strided_slice %359 {offsets = [0, 128], sizes = [8, 128], strides = [1, 1]} : vector<8x384xf32> to vector<8x128xf32>
    %362 = vector.extract_strided_slice %359 {offsets = [0, 256], sizes = [8, 128], strides = [1, 1]} : vector<8x384xf32> to vector<8x128xf32>
    %363 = vector.extract_strided_slice %353 {offsets = [0, 384], sizes = [8, 128], strides = [1, 1]} : vector<8x512xf32> to vector<8x128xf32>
    %364 = math.tanh %363 : vector<8x128xf32>
    %365 = arith.mulf %361, %313 : vector<8x128xf32>
    %366 = arith.mulf %360, %364 : vector<8x128xf32>
    %367 = arith.addf %365, %366 : vector<8x128xf32>
    %368 = math.tanh %367 : vector<8x128xf32>
    %369 = arith.mulf %362, %368 : vector<8x128xf32>
    %370 = arith.mulf %369, %369 : vector<8x128xf32>
    %cst_109 = arith.constant dense<0.000000e+00> : vector<8xf32>
    %371 = vector.multi_reduction <add>, %370, %cst_109 [1] : vector<8x128xf32> to vector<8xf32>
    %372 = vector.shape_cast %371 : vector<8xf32> to vector<8x1xf32>
    %373 = math.sqrt %372 : vector<8x1xf32>
    %cst_110 = arith.constant 9.99999996E-13 : f32
    %374 = vector.broadcast %cst_110 : f32 to vector<8x1xf32>
    %375 = arith.maximumf %373, %374 : vector<8x1xf32>
    %376 = vector.broadcast %375 : vector<8x1xf32> to vector<8x128xf32>
    %377 = arith.divf %369, %376 : vector<8x128xf32>
    %378 = arith.addf %324, %377 : vector<8x128xf32>
    %c7_i32 = arith.constant 7 : i32
    %379 = arith.index_cast %c7_i32 : i32 to index
    %c0_111 = arith.constant 0 : index
    %c0_112 = arith.constant 0 : index
    %380 = vector.load %arg1[%379, %c0_111, %c0_112] : memref<8x8x128xf32, #tpu.memory_space<vmem>>, vector<1x8x128xf32>
    %381 = vector.shape_cast %380 : vector<1x8x128xf32> to vector<8x128xf32>
    %382 = tpu.concatenate %381, %348 in 1 : vector<8x128xf32>, vector<8x128xf32> -> vector<8x256xf32>
    %c0_113 = arith.constant 0 : index
    %c0_114 = arith.constant 0 : index
    %383 = vector.load %arg2[%c0_113, %c0_114] : memref<256x512xf32, #tpu.memory_space<vmem>>, vector<256x512xf32>
    %cst_115 = arith.constant dense<0.000000e+00> : vector<8x512xf32>
    %384 = tpu.matmul %382, %383, %cst_115 {dimension_numbers = #tpu.dot_dimension_numbers<[1], [0], [0], [1], [0, 0, 1, 1], [], []>} : vector<8x256xf32>, vector<256x512xf32>, vector<8x512xf32> -> vector<8x512xf32>
    %c0_116 = arith.constant 0 : index
    %c0_117 = arith.constant 0 : index
    %385 = vector.load %arg3[%c0_116, %c0_117] : memref<8x512xf32, #tpu.memory_space<vmem>>, vector<8x512xf32>
    %386 = arith.addf %384, %385 : vector<8x512xf32>
    %387 = vector.extract_strided_slice %386 {offsets = [0, 0], sizes = [8, 384], strides = [1, 1]} : vector<8x512xf32> to vector<8x384xf32>
    %388 = arith.negf %387 : vector<8x384xf32>
    %389 = math.exp %388 : vector<8x384xf32>
    %cst_118 = arith.constant 1.000000e+00 : f32
    %390 = vector.broadcast %cst_118 : f32 to vector<8x384xf32>
    %391 = arith.addf %390, %389 : vector<8x384xf32>
    %392 = arith.divf %390, %391 : vector<8x384xf32>
    %393 = vector.extract_strided_slice %392 {offsets = [0, 0], sizes = [8, 128], strides = [1, 1]} : vector<8x384xf32> to vector<8x128xf32>
    %394 = vector.extract_strided_slice %392 {offsets = [0, 128], sizes = [8, 128], strides = [1, 1]} : vector<8x384xf32> to vector<8x128xf32>
    %395 = vector.extract_strided_slice %392 {offsets = [0, 256], sizes = [8, 128], strides = [1, 1]} : vector<8x384xf32> to vector<8x128xf32>
    %396 = vector.extract_strided_slice %386 {offsets = [0, 384], sizes = [8, 128], strides = [1, 1]} : vector<8x512xf32> to vector<8x128xf32>
    %397 = math.tanh %396 : vector<8x128xf32>
    %398 = arith.mulf %394, %346 : vector<8x128xf32>
    %399 = arith.mulf %393, %397 : vector<8x128xf32>
    %400 = arith.addf %398, %399 : vector<8x128xf32>
    %401 = math.tanh %400 : vector<8x128xf32>
    %402 = arith.mulf %395, %401 : vector<8x128xf32>
    %403 = tpu.concatenate %402, %369 in 1 : vector<8x128xf32>, vector<8x128xf32> -> vector<8x256xf32>
    %c0_119 = arith.constant 0 : index
    %c0_120 = arith.constant 0 : index
    %404 = vector.load %arg4[%c0_119, %c0_120] : memref<256x512xf32, #tpu.memory_space<vmem>>, vector<256x512xf32>
    %cst_121 = arith.constant dense<0.000000e+00> : vector<8x512xf32>
    %405 = tpu.matmul %403, %404, %cst_121 {dimension_numbers = #tpu.dot_dimension_numbers<[1], [0], [0], [1], [0, 0, 1, 1], [], []>} : vector<8x256xf32>, vector<256x512xf32>, vector<8x512xf32> -> vector<8x512xf32>
    %c0_122 = arith.constant 0 : index
    %c0_123 = arith.constant 0 : index
    %406 = vector.load %arg5[%c0_122, %c0_123] : memref<8x512xf32, #tpu.memory_space<vmem>>, vector<8x512xf32>
    %407 = arith.addf %405, %406 : vector<8x512xf32>
    %408 = vector.extract_strided_slice %407 {offsets = [0, 0], sizes = [8, 384], strides = [1, 1]} : vector<8x512xf32> to vector<8x384xf32>
    %409 = arith.negf %408 : vector<8x384xf32>
    %410 = math.exp %409 : vector<8x384xf32>
    %cst_124 = arith.constant 1.000000e+00 : f32
    %411 = vector.broadcast %cst_124 : f32 to vector<8x384xf32>
    %412 = arith.addf %411, %410 : vector<8x384xf32>
    %413 = arith.divf %411, %412 : vector<8x384xf32>
    %414 = vector.extract_strided_slice %413 {offsets = [0, 0], sizes = [8, 128], strides = [1, 1]} : vector<8x384xf32> to vector<8x128xf32>
    %415 = vector.extract_strided_slice %413 {offsets = [0, 128], sizes = [8, 128], strides = [1, 1]} : vector<8x384xf32> to vector<8x128xf32>
    %416 = vector.extract_strided_slice %413 {offsets = [0, 256], sizes = [8, 128], strides = [1, 1]} : vector<8x384xf32> to vector<8x128xf32>
    %417 = vector.extract_strided_slice %407 {offsets = [0, 384], sizes = [8, 128], strides = [1, 1]} : vector<8x512xf32> to vector<8x128xf32>
    %418 = math.tanh %417 : vector<8x128xf32>
    %419 = arith.mulf %415, %367 : vector<8x128xf32>
    %420 = arith.mulf %414, %418 : vector<8x128xf32>
    %421 = arith.addf %419, %420 : vector<8x128xf32>
    %422 = math.tanh %421 : vector<8x128xf32>
    %423 = arith.mulf %416, %422 : vector<8x128xf32>
    %424 = arith.mulf %423, %423 : vector<8x128xf32>
    %cst_125 = arith.constant dense<0.000000e+00> : vector<8xf32>
    %425 = vector.multi_reduction <add>, %424, %cst_125 [1] : vector<8x128xf32> to vector<8xf32>
    %426 = vector.shape_cast %425 : vector<8xf32> to vector<8x1xf32>
    %427 = math.sqrt %426 : vector<8x1xf32>
    %cst_126 = arith.constant 9.99999996E-13 : f32
    %428 = vector.broadcast %cst_126 : f32 to vector<8x1xf32>
    %429 = arith.maximumf %427, %428 : vector<8x1xf32>
    %430 = vector.broadcast %429 : vector<8x1xf32> to vector<8x128xf32>
    %431 = arith.divf %423, %430 : vector<8x128xf32>
    %432 = arith.addf %378, %431 : vector<8x128xf32>
    %c8_i32 = arith.constant 8 : i32
    %cst_127 = arith.constant 8.000000e+00 : f32
    %433 = vector.broadcast %cst_127 : f32 to vector<8x128xf32>
    %434 = arith.divf %432, %433 : vector<8x128xf32>
    %435 = arith.mulf %434, %434 : vector<8x128xf32>
    %cst_128 = arith.constant dense<0.000000e+00> : vector<8xf32>
    %436 = vector.multi_reduction <add>, %435, %cst_128 [1] : vector<8x128xf32> to vector<8xf32>
    %437 = vector.shape_cast %436 : vector<8xf32> to vector<8x1xf32>
    %438 = math.sqrt %437 : vector<8x1xf32>
    %cst_129 = arith.constant 9.99999996E-13 : f32
    %439 = vector.broadcast %cst_129 : f32 to vector<8x1xf32>
    %440 = arith.maximumf %438, %439 : vector<8x1xf32>
    %441 = vector.broadcast %440 : vector<8x1xf32> to vector<8x128xf32>
    %442 = arith.divf %434, %441 : vector<8x128xf32>
    %c0_130 = arith.constant 0 : index
    %c0_131 = arith.constant 0 : index
    %443 = vector.load %arg6[%c0_130, %c0_131] : memref<8x128xf32, #tpu.memory_space<vmem>>, vector<8x128xf32>
    tpu.vector_store %arg6[%c0_130, %c0_131], %442 {strides = array<i32>} : memref<8x128xf32, #tpu.memory_space<vmem>>, vector<8x128xf32>,
    return
  }
  func.func @transform_0(%arg0: i32) -> (i32, i32, i32) {
    %c0_i32 = arith.constant 0 : i32
    %c0_i32_0 = arith.constant 0 : i32
    %c0_i32_1 = arith.constant 0 : i32
    %c0_i32_2 = arith.constant 0 : i32
    return %c0_i32, %c0_i32_0, %c0_i32_1 : i32, i32, i32
  }
  func.func @transform_1(%arg0: i32) -> (i32, i32) {
    %c0_i32 = arith.constant 0 : i32
    %c0_i32_0 = arith.constant 0 : i32
    %c0_i32_1 = arith.constant 0 : i32
    return %c0_i32, %c0_i32_0 : i32, i32
  }
  func.func @transform_2(%arg0: i32) -> (i32, i32) {
    %c0_i32 = arith.constant 0 : i32
    %c0_i32_0 = arith.constant 0 : i32
    %c0_i32_1 = arith.constant 0 : i32
    return %c0_i32, %c0_i32_0 : i32, i32
  }
  func.func @transform_3(%arg0: i32) -> (i32, i32) {
    %c0_i32 = arith.constant 0 : i32
    %c0_i32_0 = arith.constant 0 : i32
    %c0_i32_1 = arith.constant 0 : i32
    return %c0_i32, %c0_i32_0 : i32, i32
  }
  func.func @transform_4(%arg0: i32) -> (i32, i32) {
    %c0_i32 = arith.constant 0 : i32
    %c0_i32_0 = arith.constant 0 : i32
    %c0_i32_1 = arith.constant 0 : i32
    return %c0_i32, %c0_i32_0 : i32, i32
  }
  func.func @transform_5(%arg0: i32) -> (i32, i32) {
    %c0_i32 = arith.constant 0 : i32
    %c0_i32_0 = arith.constant 0 : i32
    %c0_i32_1 = arith.constant 0 : i32
    return %c0_i32, %c0_i32_0 : i32, i32
  }
}

</mosaic_0001>

<llo_original>
// kernel: tpu_custom_call.1
$region0: #{tpu_custom_call.1}
  #allocation0 [shape = 'u32[]', space=smem, size = 0x4, offset = 0x4, fixed_abs, tag = 'smem constant byte address 0x4 - core index']
  #allocation1 [shape = 'u32[144,128]{1,0:T(1,128)}', space=vmem, size = 0x12000, scoped, tag = 'internal scratch']
  %s0 = inlined_call_operand.hbm [shape: f32[8,8,128], index: 0, kind: input, shape index: {}]
  %s1 = inlined_call_operand.hbm [shape: f32[256,512], index: 1, kind: input, shape index: {}]
  %s2 = inlined_call_operand.hbm [shape: f32[8,512], index: 2, kind: input, shape index: {}]
  %s3 = inlined_call_operand.hbm [shape: f32[256,512], index: 3, kind: input, shape index: {}]
  %s4 = inlined_call_operand.hbm [shape: f32[8,512], index: 4, kind: input, shape index: {}]
  %s5 = inlined_call_operand.hbm [shape: f32[8,128], index: 5, kind: output, shape index: {}]
  %s6 = sld [smem:[#allocation0]]
  $region50: #{tpu_custom_call.1} parent=0
    _
  %s8 = ssub.s32 1, %s6
  %s9 = scalar_select 0, %s8, %s6
  $region1: #{tpu_custom_call.1} parent=0
    #allocation2 [shape = 'u8[32768]{0}', space=vmem, size = 0x8000, scoped, tag = 'input window, operand 0, single buffered']
    #allocation3 [shape = 's32[1]{0}', space=sflag, size = 0x4, scoped, tag = 'scoped memory for tpu_custom_call.1']
    #allocation4 [shape = 's32[1]{0}', space=sflag, size = 0x4, scoped, tag = 'scoped memory for tpu_custom_call.1']
    #allocation5 [shape = 'u8[524288]{0}', space=vmem, size = 0x80000, scoped, tag = 'input window, operand 1, single buffered']
    #allocation6 [shape = 's32[1]{0}', space=sflag, size = 0x4, scoped, tag = 'scoped memory for tpu_custom_call.1']
    #allocation7 [shape = 'u8[16384]{0}', space=vmem, size = 0x4000, scoped, tag = 'input window, operand 2, single buffered']
    #allocation8 [shape = 'u8[524288]{0}', space=vmem, size = 0x80000, scoped, tag = 'input window, operand 3, single buffered']
    #allocation9 [shape = 's32[1]{0}', space=sflag, size = 0x4, scoped, tag = 'scoped memory for tpu_custom_call.1']
    #allocation10 [shape = 'u8[16384]{0}', space=vmem, size = 0x4000, scoped, tag = 'input window, operand 4, single buffered']
    #allocation11 [shape = 'u8[4096]{0}', space=vmem, size = 0x1000, scoped, tag = 'output window, operand 0, single buffered']
    %10 = vsyncpa [#allocation3], 0
    %11 = vsyncpa [#allocation6], 0
    %12 = vsyncpa [#allocation9], 0
    %13 = vsyncpa [#allocation4], 0
    // Predicated region
    $region2: #{tpu_custom_call.1} parent=1 // pred_check
      _
    $region3: #{tpu_custom_call.1} parent=1 // pred_check_branch
      %15 = sbr.rel (0) target = $region5
    $region4: #{tpu_custom_call.1} parent=1 // pred_region
      %s17 = ssub.s32 1024, 1024
      %18 = vsyncadd [#allocation3], %s17
      %s19 = sshll.u32 [#allocation2], 4
      %s20 = int_to_ptr.vmem [resolvable:$true] %s19
      %25 = dma.hbm_to_vmem [thread:$0]  %s0, 1024, %s20, [#allocation3], 128, 128, 8
    $region5: #{tpu_custom_call.1} parent=1 // pred_fallthru
      _
    // Predicated region
    $region6: #{tpu_custom_call.1} parent=1 // pred_check
      _
    $region7: #{tpu_custom_call.1} parent=1 // pred_check_branch
      %27 = sbr.rel (0) target = $region9
    $region8: #{tpu_custom_call.1} parent=1 // pred_region
      %s29 = ssub.s32 16384, 16384
      %30 = vsyncadd [#allocation6], %s29
      %s31 = sshll.u32 [#allocation5], 4
      %s32 = int_to_ptr.vmem [resolvable:$true] %s31
      %37 = dma.hbm_to_vmem [thread:$0]  %s1, 16384, %s32, [#allocation6], 512, 512, 32
    $region9: #{tpu_custom_call.1} parent=1 // pred_fallthru
      _
    // Predicated region
    $region10: #{tpu_custom_call.1} parent=1 // pred_check
      _
    $region11: #{tpu_custom_call.1} parent=1 // pred_check_branch
      %39 = sbr.rel (0) target = $region13
    $region12: #{tpu_custom_call.1} parent=1 // pred_region
      %s41 = ssub.s32 512, 512
      %42 = vsyncadd [#allocation6], %s41
      %s44 = sshll.u32 [#allocation7], 4
      %s45 = int_to_ptr.vmem [resolvable:$true] %s44
      %47 = dma.hbm_to_vmem [thread:$0]  %s2, 512, %s45, [#allocation6]
    $region13: #{tpu_custom_call.1} parent=1 // pred_fallthru
      _
    // Predicated region
    $region14: #{tpu_custom_call.1} parent=1 // pred_check
      _
    $region15: #{tpu_custom_call.1} parent=1 // pred_check_branch
      %49 = sbr.rel (0) target = $region17
    $region16: #{tpu_custom_call.1} parent=1 // pred_region
      %s51 = ssub.s32 16384, 16384
      %52 = vsyncadd [#allocation9], %s51
      %s53 = sshll.u32 [#allocation8], 4
      %s54 = int_to_ptr.vmem [resolvable:$true] %s53
      %59 = dma.hbm_to_vmem [thread:$0]  %s3, 16384, %s54, [#allocation9], 512, 512, 32
    $region17: #{tpu_custom_call.1} parent=1 // pred_fallthru
      _
    // Predicated region
    $region18: #{tpu_custom_call.1} parent=1 // pred_check
      _
    $region19: #{tpu_custom_call.1} parent=1 // pred_check_branch
      %61 = sbr.rel (0) target = $region21
    $region20: #{tpu_custom_call.1} parent=1 // pred_region
      %s63 = ssub.s32 512, 512
      %64 = vsyncadd [#allocation9], %s63
      %s66 = sshll.u32 [#allocation10], 4
      %s67 = int_to_ptr.vmem [resolvable:$true] %s66
      %69 = dma.hbm_to_vmem [thread:$0]  %s4, 512, %s67, [#allocation9]
    $region21: #{tpu_custom_call.1} parent=1 // pred_fallthru
      _
    // Predicated region
    $region22: #{tpu_custom_call.1} parent=1 // pred_check
      _
    $region23: #{tpu_custom_call.1} parent=1 // pred_check_branch
      %71 = sbr.rel (0) target = $region25
    $region24: #{tpu_custom_call.1} parent=1 // pred_region
      %72 = dma.done [#allocation3], 1024
    $region25: #{tpu_custom_call.1} parent=1 // pred_fallthru
      _
    // Predicated region
    $region26: #{tpu_custom_call.1} parent=1 // pred_check
      _
    $region27: #{tpu_custom_call.1} parent=1 // pred_check_branch
      %74 = sbr.rel (0) target = $region29
    $region28: #{tpu_custom_call.1} parent=1 // pred_region
      %75 = dma.done [#allocation6], 16384
    $region29: #{tpu_custom_call.1} parent=1 // pred_fallthru
      _
    // Predicated region
    $region30: #{tpu_custom_call.1} parent=1 // pred_check
      _
    $region31: #{tpu_custom_call.1} parent=1 // pred_check_branch
      %77 = sbr.rel (0) target = $region33
    $region32: #{tpu_custom_call.1} parent=1 // pred_region
      %78 = dma.done [#allocation6], 512
    $region33: #{tpu_custom_call.1} parent=1 // pred_fallthru
      _
    // Predicated region
    $region34: #{tpu_custom_call.1} parent=1 // pred_check
      _
    $region35: #{tpu_custom_call.1} parent=1 // pred_check_branch
      %80 = sbr.rel (0) target = $region37
    $region36: #{tpu_custom_call.1} parent=1 // pred_region
      %81 = dma.done [#allocation9], 16384
    $region37: #{tpu_custom_call.1} parent=1 // pred_fallthru
      _
    // Predicated region
    $region38: #{tpu_custom_call.1} parent=1 // pred_check
      _
    $region39: #{tpu_custom_call.1} parent=1 // pred_check_branch
      %83 = sbr.rel (0) target = $region41
    $region40: #{tpu_custom_call.1} parent=1 // pred_region
      %84 = dma.done [#allocation9], 512
    $region41: #{tpu_custom_call.1} parent=1 // pred_fallthru
      _
    %v85 = vld [vmem:[#allocation2] sm:$0xff]
    %v86 = vld [vmem:[#allocation5] sm:$0xff]
    %v87 = vld [vmem:[#allocation5 + $0x8] sm:$0xff]
    %v88 = vld [vmem:[#allocation5 + $0x10] sm:$0xff]
    %v89 = vld [vmem:[#allocation5 + $0x18] sm:$0xff]
    %v90 = vld [vmem:[#allocation5 + $0x20] sm:$0xff]
    %v91 = vld [vmem:[#allocation5 + $0x28] sm:$0xff]
    %v92 = vld [vmem:[#allocation5 + $0x30] sm:$0xff]
    %v93 = vld [vmem:[#allocation5 + $0x38] sm:$0xff]
    %v94 = vld [vmem:[#allocation5 + $0x40] sm:$0xff]
    %v95 = vld [vmem:[#allocation5 + $0x48] sm:$0xff]
    %v96 = vld [vmem:[#allocation5 + $0x50] sm:$0xff]
    %v97 = vld [vmem:[#allocation5 + $0x58] sm:$0xff]
    %v98 = vld [vmem:[#allocation5 + $0x60] sm:$0xff]
    %v99 = vld [vmem:[#allocation5 + $0x68] sm:$0xff]
    %v100 = vld [vmem:[#allocation5 + $0x70] sm:$0xff]
    %v101 = vld [vmem:[#allocation5 + $0x78] sm:$0xff]
    %v102 = vld [vmem:[#allocation5 + $0x80] sm:$0xff]
    %v103 = vld [vmem:[#allocation5 + $0x88] sm:$0xff]
    %v104 = vld [vmem:[#allocation5 + $0x90] sm:$0xff]
    %v105 = vld [vmem:[#allocation5 + $0x98] sm:$0xff]
    %v106 = vld [vmem:[#allocation5 + $0xa0] sm:$0xff]
    %v107 = vld [vmem:[#allocation5 + $0xa8] sm:$0xff]
    %v108 = vld [vmem:[#allocation5 + $0xb0] sm:$0xff]
    %v109 = vld [vmem:[#allocation5 + $0xb8] sm:$0xff]
    %v110 = vld [vmem:[#allocation5 + $0xc0] sm:$0xff]
    %v111 = vld [vmem:[#allocation5 + $0xc8] sm:$0xff]
    %v112 = vld [vmem:[#allocation5 + $0xd0] sm:$0xff]
    %v113 = vld [vmem:[#allocation5 + $0xd8] sm:$0xff]
    %v114 = vld [vmem:[#allocation5 + $0xe0] sm:$0xff]
    %v115 = vld [vmem:[#allocation5 + $0xe8] sm:$0xff]
    %v116 = vld [vmem:[#allocation5 + $0xf0] sm:$0xff]
    %v117 = vld [vmem:[#allocation5 + $0xf8] sm:$0xff]
    %v118 = vld [vmem:[#allocation5 + $0x100] sm:$0xff]
    %v119 = vld [vmem:[#allocation5 + $0x108] sm:$0xff]
    %v120 = vld [vmem:[#allocation5 + $0x110] sm:$0xff]
    %v121 = vld [vmem:[#allocation5 + $0x118] sm:$0xff]
    %v122 = vld [vmem:[#allocation5 + $0x120] sm:$0xff]
    %v123 = vld [vmem:[#allocation5 + $0x128] sm:$0xff]
    %v124 = vld [vmem:[#allocation5 + $0x130] sm:$0xff]
    %v125 = vld [vmem:[#allocation5 + $0x138] sm:$0xff]
    %v126 = vld [vmem:[#allocation5 + $0x140] sm:$0xff]
    %v127 = vld [vmem:[#allocation5 + $0x148] sm:$0xff]
    %v128 = vld [vmem:[#allocation5 + $0x150] sm:$0xff]
    %v129 = vld [vmem:[#allocation5 + $0x158] sm:$0xff]
    %v130 = vld [vmem:[#allocation5 + $0x160] sm:$0xff]
    %v131 = vld [vmem:[#allocation5 + $0x168] sm:$0xff]
    %v132 = vld [vmem:[#allocation5 + $0x170] sm:$0xff]
    %v133 = vld [vmem:[#allocation5 + $0x178] sm:$0xff]
    %v134 = vld [vmem:[#allocation5 + $0x180] sm:$0xff]
    %v135 = vld [vmem:[#allocation5 + $0x188] sm:$0xff]
    %v136 = vld [vmem:[#allocation5 + $0x190] sm:$0xff]
    %v137 = vld [vmem:[#allocation5 + $0x198] sm:$0xff]
    %v138 = vld [vmem:[#allocation5 + $0x1a0] sm:$0xff]
    %v139 = vld [vmem:[#allocation5 + $0x1a8] sm:$0xff]
    %v140 = vld [vmem:[#allocation5 + $0x1b0] sm:$0xff]
    %v141 = vld [vmem:[#allocation5 + $0x1b8] sm:$0xff]
    %v142 = vld [vmem:[#allocation5 + $0x1c0] sm:$0xff]
    %v143 = vld [vmem:[#allocation5 + $0x1c8] sm:$0xff]
    %v144 = vld [vmem:[#allocation5 + $0x1d0] sm:$0xff]
    %v145 = vld [vmem:[#allocation5 + $0x1d8] sm:$0xff]
    %v146 = vld [vmem:[#allocation5 + $0x1e0] sm:$0xff]
    %v147 = vld [vmem:[#allocation5 + $0x1e8] sm:$0xff]
    %v148 = vld [vmem:[#allocation5 + $0x1f0] sm:$0xff]
    %v149 = vld [vmem:[#allocation5 + $0x1f8] sm:$0xff]
    %v150 = vld [vmem:[#allocation5 + $0x200] sm:$0xff]
    %v151 = vld [vmem:[#allocation5 + $0x208] sm:$0xff]
    %v152 = vld [vmem:[#allocation5 + $0x210] sm:$0xff]
    %v153 = vld [vmem:[#allocation5 + $0x218] sm:$0xff]
    %v154 = vld [vmem:[#allocation5 + $0x220] sm:$0xff]
    %v155 = vld [vmem:[#allocation5 + $0x228] sm:$0xff]
    %v156 = vld [vmem:[#allocation5 + $0x230] sm:$0xff]
    %v157 = vld [vmem:[#allocation5 + $0x238] sm:$0xff]
    %v158 = vld [vmem:[#allocation5 + $0x240] sm:$0xff]
    %v159 = vld [vmem:[#allocation5 + $0x248] sm:$0xff]
    %v160 = vld [vmem:[#allocation5 + $0x250] sm:$0xff]
    %v161 = vld [vmem:[#allocation5 + $0x258] sm:$0xff]
    %v162 = vld [vmem:[#allocation5 + $0x260] sm:$0xff]
    %v163 = vld [vmem:[#allocation5 + $0x268] sm:$0xff]
    %v164 = vld [vmem:[#allocation5 + $0x270] sm:$0xff]
    %v165 = vld [vmem:[#allocation5 + $0x278] sm:$0xff]
    %v166 = vld [vmem:[#allocation5 + $0x280] sm:$0xff]
    %v167 = vld [vmem:[#allocation5 + $0x288] sm:$0xff]
    %v168 = vld [vmem:[#allocation5 + $0x290] sm:$0xff]
    %v169 = vld [vmem:[#allocation5 + $0x298] sm:$0xff]
    %v170 = vld [vmem:[#allocation5 + $0x2a0] sm:$0xff]
    %v171 = vld [vmem:[#allocation5 + $0x2a8] sm:$0xff]
    %v172 = vld [vmem:[#allocation5 + $0x2b0] sm:$0xff]
    %v173 = vld [vmem:[#allocation5 + $0x2b8] sm:$0xff]
    %v174 = vld [vmem:[#allocation5 + $0x2c0] sm:$0xff]
    %v175 = vld [vmem:[#allocation5 + $0x2c8] sm:$0xff]
    %v176 = vld [vmem:[#allocation5 + $0x2d0] sm:$0xff]
    %v177 = vld [vmem:[#allocation5 + $0x2d8] sm:$0xff]
    %v178 = vld [vmem:[#allocation5 + $0x2e0] sm:$0xff]
    %v179 = vld [vmem:[#allocation5 + $0x2e8] sm:$0xff]
    %v180 = vld [vmem:[#allocation5 + $0x2f0] sm:$0xff]
    %v181 = vld [vmem:[#allocation5 + $0x2f8] sm:$0xff]
    %v182 = vld [vmem:[#allocation5 + $0x300] sm:$0xff]
    %v183 = vld [vmem:[#allocation5 + $0x308] sm:$0xff]
    %v184 = vld [vmem:[#allocation5 + $0x310] sm:$0xff]
    %v185 = vld [vmem:[#allocation5 + $0x318] sm:$0xff]
    %v186 = vld [vmem:[#allocation5 + $0x320] sm:$0xff]
    %v187 = vld [vmem:[#allocation5 + $0x328] sm:$0xff]
    %v188 = vld [vmem:[#allocation5 + $0x330] sm:$0xff]
    %v189 = vld [vmem:[#allocation5 + $0x338] sm:$0xff]
    %v190 = vld [vmem:[#allocation5 + $0x340] sm:$0xff]
    %v191 = vld [vmem:[#allocation5 + $0x348] sm:$0xff]
    %v192 = vld [vmem:[#allocation5 + $0x350] sm:$0xff]
    %v193 = vld [vmem:[#allocation5 + $0x358] sm:$0xff]
    %v194 = vld [vmem:[#allocation5 + $0x360] sm:$0xff]
    %v195 = vld [vmem:[#allocation5 + $0x368] sm:$0xff]
    %v196 = vld [vmem:[#allocation5 + $0x370] sm:$0xff]
    %v197 = vld [vmem:[#allocation5 + $0x378] sm:$0xff]
    %v198 = vld [vmem:[#allocation5 + $0x380] sm:$0xff]
    %v199 = vld [vmem:[#allocation5 + $0x388] sm:$0xff]
    %v200 = vld [vmem:[#allocation5 + $0x390] sm:$0xff]
    %v201 = vld [vmem:[#allocation5 + $0x398] sm:$0xff]
    %v202 = vld [vmem:[#allocation5 + $0x3a0] sm:$0xff]
    %v203 = vld [vmem:[#allocation5 + $0x3a8] sm:$0xff]
    %v204 = vld [vmem:[#allocation5 + $0x3b0] sm:$0xff]
    %v205 = vld [vmem:[#allocation5 + $0x3b8] sm:$0xff]
    %v206 = vld [vmem:[#allocation5 + $0x3c0] sm:$0xff]
    %v207 = vld [vmem:[#allocation5 + $0x3c8] sm:$0xff]
    %v208 = vld [vmem:[#allocation5 + $0x3d0] sm:$0xff]
    %v209 = vld [vmem:[#allocation5 + $0x3d8] sm:$0xff]
    %v210 = vld [vmem:[#allocation5 + $0x3e0] sm:$0xff]
    %v211 = vld [vmem:[#allocation5 + $0x3e8] sm:$0xff]
    %v212 = vld [vmem:[#allocation5 + $0x3f0] sm:$0xff]
    %v213 = vld [vmem:[#allocation5 + $0x3f8] sm:$0xff]
    %v214 = vld [vmem:[#allocation7] sm:$0xff]
    %v215 = vld [vmem:[#allocation7 + $0x8] sm:$0xff]
    %v216 = vld [vmem:[#allocation7 + $0x10] sm:$0xff]
    %v217 = vld [vmem:[#allocation7 + $0x18] sm:$0xff]
    %218 = vmatprep.subr.mxu0 %v147
    %219 = vmatpush1.msra.mxu0 %v146
    %220 = vmatprep.subr.mxu0 %v143
    %221 = vmatpush1.msra.mxu0 %v142
    %222 = vmatprep.subr.mxu0 %v139
    %223 = vmatpush1.msra.mxu0 %v138
    %224 = vmatprep.subr.mxu0 %v135
    %225 = vmatpush1.msra.mxu0 %v134
    %226 = vmatprep.subr.mxu0 %v131
    %227 = vmatpush1.msra.mxu0 %v130
    %228 = vmatprep.subr.mxu0 %v127
    %229 = vmatpush1.msra.mxu0 %v126
    %230 = vmatprep.subr.mxu0 %v123
    %231 = vmatpush1.msra.mxu0 %v122
    %232 = vmatprep.subr.mxu0 %v119
    %233 = vmatpush1.msra.mxu0 %v118
    %234 = vmatprep.subr.mxu0 %v115
    %235 = vmatpush1.msra.mxu0 %v114
    %236 = vmatprep.subr.mxu0 %v111
    %237 = vmatpush1.msra.mxu0 %v110
    %238 = vmatprep.subr.mxu0 %v107
    %239 = vmatpush1.msra.mxu0 %v106
    %240 = vmatprep.subr.mxu0 %v103
    %241 = vmatpush1.msra.mxu0 %v102
    %242 = vmatprep.subr.mxu0 %v99
    %243 = vmatpush1.msra.mxu0 %v98
    %244 = vmatprep.subr.mxu0 %v95
    %245 = vmatpush1.msra.mxu0 %v94
    %246 = vmatprep.subr.mxu0 %v91
    %247 = vmatpush1.msra.mxu0 %v90
    %248 = vmatprep.subr.mxu0 %v87
    %249 = vmatpush1.msra.mxu0 %v86
    %250 = vmatprep.subr.mxu0 %v211
    %251 = vmatpush2.msra.mxu0 %v210
    %252 = vmatprep.subr.mxu0 %v207
    %253 = vmatpush2.msra.mxu0 %v206
    %254 = vmatprep.subr.mxu0 %v203
    %255 = vmatpush2.msra.mxu0 %v202
    %256 = vmatprep.subr.mxu0 %v199
    %257 = vmatpush2.msra.mxu0 %v198
    %258 = vmatprep.subr.mxu0 %v195
    %259 = vmatpush2.msra.mxu0 %v194
    %260 = vmatprep.subr.mxu0 %v191
    %261 = vmatpush2.msra.mxu0 %v190
    %262 = vmatprep.subr.mxu0 %v187
    %263 = vmatpush2.msra.mxu0 %v186
    %264 = vmatprep.subr.mxu0 %v183
    %265 = vmatpush2.msra.mxu0 %v182
    %266 = vmatprep.subr.mxu0 %v179
    %267 = vmatpush2.msra.mxu0 %v178
    %268 = vmatprep.subr.mxu0 %v175
    %269 = vmatpush2.msra.mxu0 %v174
    %270 = vmatprep.subr.mxu0 %v171
    %271 = vmatpush2.msra.mxu0 %v170
    %272 = vmatprep.subr.mxu0 %v167
    %273 = vmatpush2.msra.mxu0 %v166
    %274 = vmatprep.subr.mxu0 %v163
    %275 = vmatpush2.msra.mxu0 %v162
    %276 = vmatprep.subr.mxu0 %v159
    %277 = vmatpush2.msra.mxu0 %v158
    %278 = vmatprep.subr.mxu0 %v155
    %279 = vmatpush2.msra.mxu0 %v154
    %280 = vmatprep.subr.mxu0 %v151
    %281 = vmatpush2.msra.mxu0 %v150
    %282 = vmatprep.mubr.f32.mxu0 0.0
    %283 = vmatmul.mubr.f32.gmra.mxu0 %v85
    %v284 = vpop.f32.mrf.mxu0
    %v285 = vadd.f32 %v214, %v284
    %v286 = vpop.f32.mrf.mxu0
    %v287 = vadd.f32 %v215, %v286
    %288 = vdwg.mxu0
    %289 = vmatprep.subr.mxu0 %v149
    %290 = vmatpush1.msra.mxu0 %v148
    %291 = vmatprep.subr.mxu0 %v145
    %292 = vmatpush1.msra.mxu0 %v144
    %293 = vmatprep.subr.mxu0 %v141
    %294 = vmatpush1.msra.mxu0 %v140
    %295 = vmatprep.subr.mxu0 %v137
    %296 = vmatpush1.msra.mxu0 %v136
    %297 = vmatprep.subr.mxu0 %v133
    %298 = vmatpush1.msra.mxu0 %v132
    %299 = vmatprep.subr.mxu0 %v129
    %300 = vmatpush1.msra.mxu0 %v128
    %301 = vmatprep.subr.mxu0 %v125
    %302 = vmatpush1.msra.mxu0 %v124
    %303 = vmatprep.subr.mxu0 %v121
    %304 = vmatpush1.msra.mxu0 %v120
    %305 = vmatprep.subr.mxu0 %v117
    %306 = vmatpush1.msra.mxu0 %v116
    %307 = vmatprep.subr.mxu0 %v113
    %308 = vmatpush1.msra.mxu0 %v112
    %309 = vmatprep.subr.mxu0 %v109
    %310 = vmatpush1.msra.mxu0 %v108
    %311 = vmatprep.subr.mxu0 %v105
    %312 = vmatpush1.msra.mxu0 %v104
    %313 = vmatprep.subr.mxu0 %v101
    %314 = vmatpush1.msra.mxu0 %v100
    %315 = vmatprep.subr.mxu0 %v97
    %316 = vmatpush1.msra.mxu0 %v96
    %317 = vmatprep.subr.mxu0 %v93
    %318 = vmatpush1.msra.mxu0 %v92
    %319 = vmatprep.subr.mxu0 %v89
    %320 = vmatpush1.msra.mxu0 %v88
    %321 = vmatprep.subr.mxu0 %v213
    %322 = vmatpush2.msra.mxu0 %v212
    %323 = vmatprep.subr.mxu0 %v209
    %324 = vmatpush2.msra.mxu0 %v208
    %325 = vmatprep.subr.mxu0 %v205
    %326 = vmatpush2.msra.mxu0 %v204
    %327 = vmatprep.subr.mxu0 %v201
    %328 = vmatpush2.msra.mxu0 %v200
    %329 = vmatprep.subr.mxu0 %v197
    %330 = vmatpush2.msra.mxu0 %v196
    %331 = vmatprep.subr.mxu0 %v193
    %332 = vmatpush2.msra.mxu0 %v192
    %333 = vmatprep.subr.mxu0 %v189
    %334 = vmatpush2.msra.mxu0 %v188
    %335 = vmatprep.subr.mxu0 %v185
    %336 = vmatpush2.msra.mxu0 %v184
    %337 = vmatprep.subr.mxu0 %v181
    %338 = vmatpush2.msra.mxu0 %v180
    %339 = vmatprep.subr.mxu0 %v177
    %340 = vmatpush2.msra.mxu0 %v176
    %341 = vmatprep.subr.mxu0 %v173
    %342 = vmatpush2.msra.mxu0 %v172
    %343 = vmatprep.subr.mxu0 %v169
    %344 = vmatpush2.msra.mxu0 %v168
    %345 = vmatprep.subr.mxu0 %v165
    %346 = vmatpush2.msra.mxu0 %v164
    %347 = vmatprep.subr.mxu0 %v161
    %348 = vmatpush2.msra.mxu0 %v160
    %349 = vmatprep.subr.mxu0 %v157
    %350 = vmatpush2.msra.mxu0 %v156
    %351 = vmatprep.subr.mxu0 %v153
    %352 = vmatpush2.msra.mxu0 %v152
    %353 = vmatprep.mubr.f32.mxu0 0.0
    %354 = vmatmul.mubr.f32.gmra.mxu0 %v85
    %v355 = vpop.f32.mrf.mxu0
    %v356 = vadd.f32 %v216, %v355
    %v357 = vpop.f32.mrf.mxu0
    %v358 = vadd.f32 %v217, %v357
    %359 = vdwg.mxu0
    %v360 = vxor.u32 %v285, 2147483648
    %v361 = vxor.u32 %v287, 2147483648
    %v362 = vxor.u32 %v356, 2147483648
    %v363 = vmul.f32 %v360, 1.442695
    %v364 = vpow.pop %v363
    %v365 = vmul.f32 %v361, 1.442695
    %v366 = vpow.pop %v365
    %v367 = vmul.f32 %v362, 1.442695
    %v368 = vpow.pop %v367
    %v369 = vadd.f32 %v364, 1.0
    %v370 = vadd.f32 %v366, 1.0
    %v371 = vadd.f32 %v368, 1.0
    %v372 = vrcp.pop %v369
    %v373 = vmul.f32 1.0, %v372
    %v374 = vrcp.pop %v370
    %v375 = vmul.f32 1.0, %v374
    %v376 = vrcp.pop %v371
    %v377 = vmul.f32 1.0, %v376
    %v378 = vtanh.pop %v358
    %v379 = vmul.f32 %v375, 0.0
    %v380 = vmul.f32 %v373, %v378
    %v381 = vadd.f32 %v379, %v380
    %v382 = vtanh.pop %v381
    %v383 = vmul.f32 %v377, %v382
    %v384 = vld [vmem:[#allocation8] sm:$0xff]
    %v385 = vld [vmem:[#allocation8 + $0x8] sm:$0xff]
    %v386 = vld [vmem:[#allocation8 + $0x10] sm:$0xff]
    %v387 = vld [vmem:[#allocation8 + $0x18] sm:$0xff]
    %v388 = vld [vmem:[#allocation8 + $0x20] sm:$0xff]
    %v389 = vld [vmem:[#allocation8 + $0x28] sm:$0xff]
    %v390 = vld [vmem:[#allocation8 + $0x30] sm:$0xff]
    %v391 = vld [vmem:[#allocation8 + $0x38] sm:$0xff]
    %v392 = vld [vmem:[#allocation8 + $0x40] sm:$0xff]
    %v393 = vld [vmem:[#allocation8 + $0x48] sm:$0xff]
    %v394 = vld [vmem:[#allocation8 + $0x50] sm:$0xff]
    %v395 = vld [vmem:[#allocation8 + $0x58] sm:$0xff]
    %v396 = vld [vmem:[#allocation8 + $0x60] sm:$0xff]
    %v397 = vld [vmem:[#allocation8 + $0x68] sm:$0xff]
    %v398 = vld [vmem:[#allocation8 + $0x70] sm:$0xff]
    %v399 = vld [vmem:[#allocation8 + $0x78] sm:$0xff]
    %v400 = vld [vmem:[#allocation8 + $0x80] sm:$0xff]
    %v401 = vld [vmem:[#allocation8 + $0x88] sm:$0xff]
    %v402 = vld [vmem:[#allocation8 + $0x90] sm:$0xff]
    %v403 = vld [vmem:[#allocation8 + $0x98] sm:$0xff]
    %v404 = vld [vmem:[#allocation8 + $0xa0] sm:$0xff]
    %v405 = vld [vmem:[#allocation8 + $0xa8] sm:$0xff]
    %v406 = vld [vmem:[#allocation8 + $0xb0] sm:$0xff]
    %v407 = vld [vmem:[#allocation8 + $0xb8] sm:$0xff]
    %v408 = vld [vmem:[#allocation8 + $0xc0] sm:$0xff]
    %v409 = vld [vmem:[#allocation8 + $0xc8] sm:$0xff]
    %v410 = vld [vmem:[#allocation8 + $0xd0] sm:$0xff]
    %v411 = vld [vmem:[#allocation8 + $0xd8] sm:$0xff]
    %v412 = vld [vmem:[#allocation8 + $0xe0] sm:$0xff]
    %v413 = vld [vmem:[#allocation8 + $0xe8] sm:$0xff]
    %v414 = vld [vmem:[#allocation8 + $0xf0] sm:$0xff]
    %v415 = vld [vmem:[#allocation8 + $0xf8] sm:$0xff]
    %v416 = vld [vmem:[#allocation8 + $0x100] sm:$0xff]
    %v417 = vld [vmem:[#allocation8 + $0x108] sm:$0xff]
    %v418 = vld [vmem:[#allocation8 + $0x110] sm:$0xff]
    %v419 = vld [vmem:[#allocation8 + $0x118] sm:$0xff]
    %v420 = vld [vmem:[#allocation8 + $0x120] sm:$0xff]
    %v421 = vld [vmem:[#allocation8 + $0x128] sm:$0xff]
    %v422 = vld [vmem:[#allocation8 + $0x130] sm:$0xff]
    %v423 = vld [vmem:[#allocation8 + $0x138] sm:$0xff]
    %v424 = vld [vmem:[#allocation8 + $0x140] sm:$0xff]
    %v425 = vld [vmem:[#allocation8 + $0x148] sm:$0xff]
    %v426 = vld [vmem:[#allocation8 + $0x150] sm:$0xff]
    %v427 = vld [vmem:[#allocation8 + $0x158] sm:$0xff]
    %v428 = vld [vmem:[#allocation8 + $0x160] sm:$0xff]
    %v429 = vld [vmem:[#allocation8 + $0x168] sm:$0xff]
    %v430 = vld [vmem:[#allocation8 + $0x170] sm:$0xff]
    %v431 = vld [vmem:[#allocation8 + $0x178] sm:$0xff]
    %v432 = vld [vmem:[#allocation8 + $0x180] sm:$0xff]
    %v433 = vld [vmem:[#allocation8 + $0x188] sm:$0xff]
    %v434 = vld [vmem:[#allocation8 + $0x190] sm:$0xff]
    %v435 = vld [vmem:[#allocation8 + $0x198] sm:$0xff]
    %v436 = vld [vmem:[#allocation8 + $0x1a0] sm:$0xff]
    %v437 = vld [vmem:[#allocation8 + $0x1a8] sm:$0xff]
    %v438 = vld [vmem:[#allocation8 + $0x1b0] sm:$0xff]
    %v439 = vld [vmem:[#allocation8 + $0x1b8] sm:$0xff]
    %v440 = vld [vmem:[#allocation8 + $0x1c0] sm:$0xff]
    %v441 = vld [vmem:[#allocation8 + $0x1c8] sm:$0xff]
    %v442 = vld [vmem:[#allocation8 + $0x1d0] sm:$0xff]
    %v443 = vld [vmem:[#allocation8 + $0x1d8] sm:$0xff]
    %v444 = vld [vmem:[#allocation8 + $0x1e0] sm:$0xff]
    %v445 = vld [vmem:[#allocation8 + $0x1e8] sm:$0xff]
    %v446 = vld [vmem:[#allocation8 + $0x1f0] sm:$0xff]
    %v447 = vld [vmem:[#allocation8 + $0x1f8] sm:$0xff]
    %v448 = vld [vmem:[#allocation8 + $0x200] sm:$0xff]
    %v449 = vld [vmem:[#allocation8 + $0x208] sm:$0xff]
    %v450 = vld [vmem:[#allocation8 + $0x210] sm:$0xff]
    %v451 = vld [vmem:[#allocation8 + $0x218] sm:$0xff]
    %v452 = vld [vmem:[#allocation8 + $0x220] sm:$0xff]
    %v453 = vld [vmem:[#allocation8 + $0x228] sm:$0xff]
    %v454 = vld [vmem:[#allocation8 + $0x230] sm:$0xff]
    %v455 = vld [vmem:[#allocation8 + $0x238] sm:$0xff]
    %v456 = vld [vmem:[#allocation8 + $0x240] sm:$0xff]
    %v457 = vld [vmem:[#allocation8 + $0x248] sm:$0xff]
    %v458 = vld [vmem:[#allocation8 + $0x250] sm:$0xff]
    %v459 = vld [vmem:[#allocation8 + $0x258] sm:$0xff]
    %v460 = vld [vmem:[#allocation8 + $0x260] sm:$0xff]
    %v461 = vld [vmem:[#allocation8 + $0x268] sm:$0xff]
    %v462 = vld [vmem:[#allocation8 + $0x270] sm:$0xff]
    %v463 = vld [vmem:[#allocation8 + $0x278] sm:$0xff]
    %v464 = vld [vmem:[#allocation8 + $0x280] sm:$0xff]
    %v465 = vld [vmem:[#allocation8 + $0x288] sm:$0xff]
    %v466 = vld [vmem:[#allocation8 + $0x290] sm:$0xff]
    %v467 = vld [vmem:[#allocation8 + $0x298] sm:$0xff]
    %v468 = vld [vmem:[#allocation8 + $0x2a0] sm:$0xff]
    %v469 = vld [vmem:[#allocation8 + $0x2a8] sm:$0xff]
    %v470 = vld [vmem:[#allocation8 + $0x2b0] sm:$0xff]
    %v471 = vld [vmem:[#allocation8 + $0x2b8] sm:$0xff]
    %v472 = vld [vmem:[#allocation8 + $0x2c0] sm:$0xff]
    %v473 = vld [vmem:[#allocation8 + $0x2c8] sm:$0xff]
    %v474 = vld [vmem:[#allocation8 + $0x2d0] sm:$0xff]
    %v475 = vld [vmem:[#allocation8 + $0x2d8] sm:$0xff]
    %v476 = vld [vmem:[#allocation8 + $0x2e0] sm:$0xff]
    %v477 = vld [vmem:[#allocation8 + $0x2e8] sm:$0xff]
    %v478 = vld [vmem:[#allocation8 + $0x2f0] sm:$0xff]
    %v479 = vld [vmem:[#allocation8 + $0x2f8] sm:$0xff]
    %v480 = vld [vmem:[#allocation8 + $0x300] sm:$0xff]
    %v481 = vld [vmem:[#allocation8 + $0x308] sm:$0xff]
    %v482 = vld [vmem:[#allocation8 + $0x310] sm:$0xff]
    %v483 = vld [vmem:[#allocation8 + $0x318] sm:$0xff]
    %v484 = vld [vmem:[#allocation8 + $0x320] sm:$0xff]
    %v485 = vld [vmem:[#allocation8 + $0x328] sm:$0xff]
    %v486 = vld [vmem:[#allocation8 + $0x330] sm:$0xff]
    %v487 = vld [vmem:[#allocation8 + $0x338] sm:$0xff]
    %v488 = vld [vmem:[#allocation8 + $0x340] sm:$0xff]
    %v489 = vld [vmem:[#allocation8 + $0x348] sm:$0xff]
    %v490 = vld [vmem:[#allocation8 + $0x350] sm:$0xff]
    %v491 = vld [vmem:[#allocation8 + $0x358] sm:$0xff]
    %v492 = vld [vmem:[#allocation8 + $0x360] sm:$0xff]
    %v493 = vld [vmem:[#allocation8 + $0x368] sm:$0xff]
    %v494 = vld [vmem:[#allocation8 + $0x370] sm:$0xff]
    %v495 = vld [vmem:[#allocation8 + $0x378] sm:$0xff]
    %v496 = vld [vmem:[#allocation8 + $0x380] sm:$0xff]
    %v497 = vld [vmem:[#allocation8 + $0x388] sm:$0xff]
    %v498 = vld [vmem:[#allocation8 + $0x390] sm:$0xff]
    %v499 = vld [vmem:[#allocation8 + $0x398] sm:$0xff]
    %v500 = vld [vmem:[#allocation8 + $0x3a0] sm:$0xff]
    %v501 = vld [vmem:[#allocation8 + $0x3a8] sm:$0xff]
    %v502 = vld [vmem:[#allocation8 + $0x3b0] sm:$0xff]
    %v503 = vld [vmem:[#allocation8 + $0x3b8] sm:$0xff]
    %v504 = vld [vmem:[#allocation8 + $0x3c0] sm:$0xff]
    %v505 = vld [vmem:[#allocation8 + $0x3c8] sm:$0xff]
    %v506 = vld [vmem:[#allocation8 + $0x3d0] sm:$0xff]
    %v507 = vld [vmem:[#allocation8 + $0x3d8] sm:$0xff]
    %v508 = vld [vmem:[#allocation8 + $0x3e0] sm:$0xff]
    %v509 = vld [vmem:[#allocation8 + $0x3e8] sm:$0xff]
    %v510 = vld [vmem:[#allocation8 + $0x3f0] sm:$0xff]
    %v511 = vld [vmem:[#allocation8 + $0x3f8] sm:$0xff]
    %v512 = vld [vmem:[#allocation10] sm:$0xff]
    %v513 = vld [vmem:[#allocation10 + $0x8] sm:$0xff]
    %v514 = vld [vmem:[#allocation10 + $0x10] sm:$0xff]
    %v515 = vld [vmem:[#allocation10 + $0x18] sm:$0xff]
    %516 = vmatprep.subr.mxu0 %v445
    %517 = vmatpush1.msra.mxu0 %v444
    %518 = vmatprep.subr.mxu0 %v441
    %519 = vmatpush1.msra.mxu0 %v440
    %520 = vmatprep.subr.mxu0 %v437
    %521 = vmatpush1.msra.mxu0 %v436
    %522 = vmatprep.subr.mxu0 %v433
    %523 = vmatpush1.msra.mxu0 %v432
    %524 = vmatprep.subr.mxu0 %v429
    %525 = vmatpush1.msra.mxu0 %v428
    %526 = vmatprep.subr.mxu0 %v425
    %527 = vmatpush1.msra.mxu0 %v424
    %528 = vmatprep.subr.mxu0 %v421
    %529 = vmatpush1.msra.mxu0 %v420
    %530 = vmatprep.subr.mxu0 %v417
    %531 = vmatpush1.msra.mxu0 %v416
    %532 = vmatprep.subr.mxu0 %v413
    %533 = vmatpush1.msra.mxu0 %v412
    %534 = vmatprep.subr.mxu0 %v409
    %535 = vmatpush1.msra.mxu0 %v408
    %536 = vmatprep.subr.mxu0 %v405
    %537 = vmatpush1.msra.mxu0 %v404
    %538 = vmatprep.subr.mxu0 %v401
    %539 = vmatpush1.msra.mxu0 %v400
    %540 = vmatprep.subr.mxu0 %v397
    %541 = vmatpush1.msra.mxu0 %v396
    %542 = vmatprep.subr.mxu0 %v393
    %543 = vmatpush1.msra.mxu0 %v392
    %544 = vmatprep.subr.mxu0 %v389
    %545 = vmatpush1.msra.mxu0 %v388
    %546 = vmatprep.subr.mxu0 %v385
    %547 = vmatpush1.msra.mxu0 %v384
    %548 = vmatprep.subr.mxu0 %v509
    %549 = vmatpush2.msra.mxu0 %v508
    %550 = vmatprep.subr.mxu0 %v505
    %551 = vmatpush2.msra.mxu0 %v504
    %552 = vmatprep.subr.mxu0 %v501
    %553 = vmatpush2.msra.mxu0 %v500
    %554 = vmatprep.subr.mxu0 %v497
    %555 = vmatpush2.msra.mxu0 %v496
    %556 = vmatprep.subr.mxu0 %v493
    %557 = vmatpush2.msra.mxu0 %v492
    %558 = vmatprep.subr.mxu0 %v489
    %559 = vmatpush2.msra.mxu0 %v488
    %560 = vmatprep.subr.mxu0 %v485
    %561 = vmatpush2.msra.mxu0 %v484
    %562 = vmatprep.subr.mxu0 %v481
    %563 = vmatpush2.msra.mxu0 %v480
    %564 = vmatprep.subr.mxu0 %v477
    %565 = vmatpush2.msra.mxu0 %v476
    %566 = vmatprep.subr.mxu0 %v473
    %567 = vmatpush2.msra.mxu0 %v472
    %568 = vmatprep.subr.mxu0 %v469
    %569 = vmatpush2.msra.mxu0 %v468
    %570 = vmatprep.subr.mxu0 %v465
    %571 = vmatpush2.msra.mxu0 %v464
    %572 = vmatprep.subr.mxu0 %v461
    %573 = vmatpush2.msra.mxu0 %v460
    %574 = vmatprep.subr.mxu0 %v457
    %575 = vmatpush2.msra.mxu0 %v456
    %576 = vmatprep.subr.mxu0 %v453
    %577 = vmatpush2.msra.mxu0 %v452
    %578 = vmatprep.subr.mxu0 %v449
    %579 = vmatpush2.msra.mxu0 %v448
    %580 = vmatprep.mubr.f32.mxu0 0.0
    %581 = vmatmul.mubr.f32.gmra.mxu0 %v383
    %v582 = vpop.f32.mrf.mxu0
    %v583 = vadd.f32 %v512, %v582
    %v584 = vpop.f32.mrf.mxu0
    %v585 = vadd.f32 %v513, %v584
    %586 = vdwg.mxu0
    %587 = vmatprep.subr.mxu0 %v447
    %588 = vmatpush1.msra.mxu0 %v446
    %589 = vmatprep.subr.mxu0 %v443
    %590 = vmatpush1.msra.mxu0 %v442
    %591 = vmatprep.subr.mxu0 %v439
    %592 = vmatpush1.msra.mxu0 %v438
    %593 = vmatprep.subr.mxu0 %v435
    %594 = vmatpush1.msra.mxu0 %v434
    %595 = vmatprep.subr.mxu0 %v431
    %596 = vmatpush1.msra.mxu0 %v430
    %597 = vmatprep.subr.mxu0 %v427
    %598 = vmatpush1.msra.mxu0 %v426
    %599 = vmatprep.subr.mxu0 %v423
    %600 = vmatpush1.msra.mxu0 %v422
    %601 = vmatprep.subr.mxu0 %v419
    %602 = vmatpush1.msra.mxu0 %v418
    %603 = vmatprep.subr.mxu0 %v415
    %604 = vmatpush1.msra.mxu0 %v414
    %605 = vmatprep.subr.mxu0 %v411
    %606 = vmatpush1.msra.mxu0 %v410
    %607 = vmatprep.subr.mxu0 %v407
    %608 = vmatpush1.msra.mxu0 %v406
    %609 = vmatprep.subr.mxu0 %v403
    %610 = vmatpush1.msra.mxu0 %v402
    %611 = vmatprep.subr.mxu0 %v399
    %612 = vmatpush1.msra.mxu0 %v398
    %613 = vmatprep.subr.mxu0 %v395
    %614 = vmatpush1.msra.mxu0 %v394
    %615 = vmatprep.subr.mxu0 %v391
    %616 = vmatpush1.msra.mxu0 %v390
    %617 = vmatprep.subr.mxu0 %v387
    %618 = vmatpush1.msra.mxu0 %v386
    %619 = vmatprep.subr.mxu0 %v511
    %620 = vmatpush2.msra.mxu0 %v510
    %621 = vmatprep.subr.mxu0 %v507
    %622 = vmatpush2.msra.mxu0 %v506
    %623 = vmatprep.subr.mxu0 %v503
    %624 = vmatpush2.msra.mxu0 %v502
    %625 = vmatprep.subr.mxu0 %v499
    %626 = vmatpush2.msra.mxu0 %v498
    %627 = vmatprep.subr.mxu0 %v495
    %628 = vmatpush2.msra.mxu0 %v494
    %629 = vmatprep.subr.mxu0 %v491
    %630 = vmatpush2.msra.mxu0 %v490
    %631 = vmatprep.subr.mxu0 %v487
    %632 = vmatpush2.msra.mxu0 %v486
    %633 = vmatprep.subr.mxu0 %v483
    %634 = vmatpush2.msra.mxu0 %v482
    %635 = vmatprep.subr.mxu0 %v479
    %636 = vmatpush2.msra.mxu0 %v478
    %637 = vmatprep.subr.mxu0 %v475
    %638 = vmatpush2.msra.mxu0 %v474
    %639 = vmatprep.subr.mxu0 %v471
    %640 = vmatpush2.msra.mxu0 %v470
    %641 = vmatprep.subr.mxu0 %v467
    %642 = vmatpush2.msra.mxu0 %v466
    %643 = vmatprep.subr.mxu0 %v463
    %644 = vmatpush2.msra.mxu0 %v462
    %645 = vmatprep.subr.mxu0 %v459
    %646 = vmatpush2.msra.mxu0 %v458
    %647 = vmatprep.subr.mxu0 %v455
    %648 = vmatpush2.msra.mxu0 %v454
    %649 = vmatprep.subr.mxu0 %v451
    %650 = vmatpush2.msra.mxu0 %v450
    %651 = vmatprep.mubr.f32.mxu0 0.0
    %652 = vmatmul.mubr.f32.gmra.mxu0 %v383
    %v653 = vpop.f32.mrf.mxu0
    %v654 = vadd.f32 %v514, %v653
    %v655 = vpop.f32.mrf.mxu0
    %v656 = vadd.f32 %v515, %v655
    %657 = vdwg.mxu0
    %v658 = vxor.u32 %v583, 2147483648
    %v659 = vxor.u32 %v585, 2147483648
    %v660 = vxor.u32 %v654, 2147483648
    %v661 = vmul.f32 %v658, 1.442695
    %v662 = vpow.pop %v661
    %v663 = vmul.f32 %v659, 1.442695
    %v664 = vpow.pop %v663
    %v665 = vmul.f32 %v660, 1.442695
    %v666 = vpow.pop %v665
    %v667 = vadd.f32 %v662, 1.0
    %v668 = vadd.f32 %v664, 1.0
    %v669 = vadd.f32 %v666, 1.0
    %v670 = vrcp.pop %v667
    %v671 = vmul.f32 1.0, %v670
    %v672 = vrcp.pop %v668
    %v673 = vmul.f32 1.0, %v672
    %v674 = vrcp.pop %v669
    %v675 = vmul.f32 1.0, %v674
    %v676 = vtanh.pop %v656
    %v677 = vmul.f32 %v673, 0.0
    %v678 = vmul.f32 %v671, %v676
    %v679 = vadd.f32 %v677, %v678
    %v680 = vtanh.pop %v679
    %v681 = vmul.f32 %v675, %v680
    %v682 = vmul.f32 %v681, %v681
    %683 = vadd.xlane.f32.xlu0 %v682
    %v684 = vpop.xlane.xlu0 %683
    %v685 = vrsqrt.pop %v684
    %v686 = vmul.f32 %v684, %v685
    %vm687 = vcmp.eq.f32.partialorder %v684, inf
    %v688 = vsel %vm687, %v684, %v686
    %vm689 = vcmp.eq.f32.partialorder %v684, 0.0
    %v690 = vand.u32 %v684, 2147483648
    %v691 = vsel %vm689, %v690, %v688
    %v692 = vmax.f32 %v691, 1e-12
    %v693 = vrcp.pop %v692
    %v694 = vmul.f32 %v681, %v693
    %v695 = vadd.f32 %v694, 0.0
    %s696 = scalar_lea.vmem [#allocation2], 8
    %v697 = vld [vmem:[%s696] sm:$0xff]
    %698 = vmatprep.subr.mxu0 %v147
    %699 = vmatpush1.msra.mxu0 %v146
    %700 = vmatprep.subr.mxu0 %v143
    %701 = vmatpush1.msra.mxu0 %v142
    %702 = vmatprep.subr.mxu0 %v139
    %703 = vmatpush1.msra.mxu0 %v138
    %704 = vmatprep.subr.mxu0 %v135
    %705 = vmatpush1.msra.mxu0 %v134
    %706 = vmatprep.subr.mxu0 %v131
    %707 = vmatpush1.msra.mxu0 %v130
    %708 = vmatprep.subr.mxu0 %v127
    %709 = vmatpush1.msra.mxu0 %v126
    %710 = vmatprep.subr.mxu0 %v123
    %711 = vmatpush1.msra.mxu0 %v122
    %712 = vmatprep.subr.mxu0 %v119
    %713 = vmatpush1.msra.mxu0 %v118
    %714 = vmatprep.subr.mxu0 %v115
    %715 = vmatpush1.msra.mxu0 %v114
    %716 = vmatprep.subr.mxu0 %v111
    %717 = vmatpush1.msra.mxu0 %v110
    %718 = vmatprep.subr.mxu0 %v107
    %719 = vmatpush1.msra.mxu0 %v106
    %720 = vmatprep.subr.mxu0 %v103
    %721 = vmatpush1.msra.mxu0 %v102
    %722 = vmatprep.subr.mxu0 %v99
    %723 = vmatpush1.msra.mxu0 %v98
    %724 = vmatprep.subr.mxu0 %v95
    %725 = vmatpush1.msra.mxu0 %v94
    %726 = vmatprep.subr.mxu0 %v91
    %727 = vmatpush1.msra.mxu0 %v90
    %728 = vmatprep.subr.mxu0 %v87
    %729 = vmatpush1.msra.mxu0 %v86
    %730 = vmatprep.subr.mxu0 %v211
    %731 = vmatpush2.msra.mxu0 %v210
    %732 = vmatprep.subr.mxu0 %v207
    %733 = vmatpush2.msra.mxu0 %v206
    %734 = vmatprep.subr.mxu0 %v203
    %735 = vmatpush2.msra.mxu0 %v202
    %736 = vmatprep.subr.mxu0 %v199
    %737 = vmatpush2.msra.mxu0 %v198
    %738 = vmatprep.subr.mxu0 %v195
    %739 = vmatpush2.msra.mxu0 %v194
    %740 = vmatprep.subr.mxu0 %v191
    %741 = vmatpush2.msra.mxu0 %v190
    %742 = vmatprep.subr.mxu0 %v187
    %743 = vmatpush2.msra.mxu0 %v186
    %744 = vmatprep.subr.mxu0 %v183
    %745 = vmatpush2.msra.mxu0 %v182
    %746 = vmatprep.subr.mxu0 %v179
    %747 = vmatpush2.msra.mxu0 %v178
    %748 = vmatprep.subr.mxu0 %v175
    %749 = vmatpush2.msra.mxu0 %v174
    %750 = vmatprep.subr.mxu0 %v171
    %751 = vmatpush2.msra.mxu0 %v170
    %752 = vmatprep.subr.mxu0 %v167
    %753 = vmatpush2.msra.mxu0 %v166
    %754 = vmatprep.subr.mxu0 %v163
    %755 = vmatpush2.msra.mxu0 %v162
    %756 = vmatprep.subr.mxu0 %v159
    %757 = vmatpush2.msra.mxu0 %v158
    %758 = vmatprep.subr.mxu0 %v155
    %759 = vmatpush2.msra.mxu0 %v154
    %760 = vmatprep.subr.mxu0 %v151
    %761 = vmatpush2.msra.mxu0 %v150
    %762 = vmatprep.mubr.f32.mxu0 %v383
    %763 = vmatmul.mubr.f32.gmra.mxu0 %v697
    %v764 = vpop.f32.mrf.mxu0
    %v765 = vadd.f32 %v214, %v764
    %v766 = vpop.f32.mrf.mxu0
    %v767 = vadd.f32 %v215, %v766
    %768 = vdwg.mxu0
    %769 = vmatprep.subr.mxu0 %v149
    %770 = vmatpush1.msra.mxu0 %v148
    %771 = vmatprep.subr.mxu0 %v145
    %772 = vmatpush1.msra.mxu0 %v144
    %773 = vmatprep.subr.mxu0 %v141
    %774 = vmatpush1.msra.mxu0 %v140
    %775 = vmatprep.subr.mxu0 %v137
    %776 = vmatpush1.msra.mxu0 %v136
    %777 = vmatprep.subr.mxu0 %v133
    %778 = vmatpush1.msra.mxu0 %v132
    %779 = vmatprep.subr.mxu0 %v129
    %780 = vmatpush1.msra.mxu0 %v128
    %781 = vmatprep.subr.mxu0 %v125
    %782 = vmatpush1.msra.mxu0 %v124
    %783 = vmatprep.subr.mxu0 %v121
    %784 = vmatpush1.msra.mxu0 %v120
    %785 = vmatprep.subr.mxu0 %v117
    %786 = vmatpush1.msra.mxu0 %v116
    %787 = vmatprep.subr.mxu0 %v113
    %788 = vmatpush1.msra.mxu0 %v112
    %789 = vmatprep.subr.mxu0 %v109
    %790 = vmatpush1.msra.mxu0 %v108
    %791 = vmatprep.subr.mxu0 %v105
    %792 = vmatpush1.msra.mxu0 %v104
    %793 = vmatprep.subr.mxu0 %v101
    %794 = vmatpush1.msra.mxu0 %v100
    %795 = vmatprep.subr.mxu0 %v97
    %796 = vmatpush1.msra.mxu0 %v96
    %797 = vmatprep.subr.mxu0 %v93
    %798 = vmatpush1.msra.mxu0 %v92
    %799 = vmatprep.subr.mxu0 %v89
    %800 = vmatpush1.msra.mxu0 %v88
    %801 = vmatprep.subr.mxu0 %v213
    %802 = vmatpush2.msra.mxu0 %v212
    %803 = vmatprep.subr.mxu0 %v209
    %804 = vmatpush2.msra.mxu0 %v208
    %805 = vmatprep.subr.mxu0 %v205
    %806 = vmatpush2.msra.mxu0 %v204
    %807 = vmatprep.subr.mxu0 %v201
    %808 = vmatpush2.msra.mxu0 %v200
    %809 = vmatprep.subr.mxu0 %v197
    %810 = vmatpush2.msra.mxu0 %v196
    %811 = vmatprep.subr.mxu0 %v193
    %812 = vmatpush2.msra.mxu0 %v192
    %813 = vmatprep.subr.mxu0 %v189
    %814 = vmatpush2.msra.mxu0 %v188
    %815 = vmatprep.subr.mxu0 %v185
    %816 = vmatpush2.msra.mxu0 %v184
    %817 = vmatprep.subr.mxu0 %v181
    %818 = vmatpush2.msra.mxu0 %v180
    %819 = vmatprep.subr.mxu0 %v177
    %820 = vmatpush2.msra.mxu0 %v176
    %821 = vmatprep.subr.mxu0 %v173
    %822 = vmatpush2.msra.mxu0 %v172
    %823 = vmatprep.subr.mxu0 %v169
    %824 = vmatpush2.msra.mxu0 %v168
    %825 = vmatprep.subr.mxu0 %v165
    %826 = vmatpush2.msra.mxu0 %v164
    %827 = vmatprep.subr.mxu0 %v161
    %828 = vmatpush2.msra.mxu0 %v160
    %829 = vmatprep.subr.mxu0 %v157
    %830 = vmatpush2.msra.mxu0 %v156
    %831 = vmatprep.subr.mxu0 %v153
    %832 = vmatpush2.msra.mxu0 %v152
    %833 = vmatprep.mubr.f32.mxu0 %v383
    %834 = vmatmul.mubr.f32.gmra.mxu0 %v697
    %v835 = vpop.f32.mrf.mxu0
    %v836 = vadd.f32 %v216, %v835
    %v837 = vpop.f32.mrf.mxu0
    %v838 = vadd.f32 %v217, %v837
    %839 = vdwg.mxu0
    %v840 = vxor.u32 %v765, 2147483648
    %v841 = vxor.u32 %v767, 2147483648
    %v842 = vxor.u32 %v836, 2147483648
    %v843 = vmul.f32 %v840, 1.442695
    %v844 = vpow.pop %v843
    %v845 = vmul.f32 %v841, 1.442695
    %v846 = vpow.pop %v845
    %v847 = vmul.f32 %v842, 1.442695
    %v848 = vpow.pop %v847
    %v849 = vadd.f32 %v844, 1.0
    %v850 = vadd.f32 %v846, 1.0
    %v851 = vadd.f32 %v848, 1.0
    %v852 = vrcp.pop %v849
    %v853 = vmul.f32 1.0, %v852
    %v854 = vrcp.pop %v850
    %v855 = vmul.f32 1.0, %v854
    %v856 = vrcp.pop %v851
    %v857 = vmul.f32 1.0, %v856
    %v858 = vtanh.pop %v838
    %v859 = vmul.f32 %v855, %v381
    %v860 = vmul.f32 %v853, %v858
    %v861 = vadd.f32 %v859, %v860
    %v862 = vtanh.pop %v861
    %v863 = vmul.f32 %v857, %v862
    %864 = vmatprep.subr.mxu0 %v445
    %865 = vmatpush1.msra.mxu0 %v444
    %866 = vmatprep.subr.mxu0 %v441
    %867 = vmatpush1.msra.mxu0 %v440
    %868 = vmatprep.subr.mxu0 %v437
    %869 = vmatpush1.msra.mxu0 %v436
    %870 = vmatprep.subr.mxu0 %v433
    %871 = vmatpush1.msra.mxu0 %v432
    %872 = vmatprep.subr.mxu0 %v429
    %873 = vmatpush1.msra.mxu0 %v428
    %874 = vmatprep.subr.mxu0 %v425
    %875 = vmatpush1.msra.mxu0 %v424
    %876 = vmatprep.subr.mxu0 %v421
    %877 = vmatpush1.msra.mxu0 %v420
    %878 = vmatprep.subr.mxu0 %v417
    %879 = vmatpush1.msra.mxu0 %v416
    %880 = vmatprep.subr.mxu0 %v413
    %881 = vmatpush1.msra.mxu0 %v412
    %882 = vmatprep.subr.mxu0 %v409
    %883 = vmatpush1.msra.mxu0 %v408
    %884 = vmatprep.subr.mxu0 %v405
    %885 = vmatpush1.msra.mxu0 %v404
    %886 = vmatprep.subr.mxu0 %v401
    %887 = vmatpush1.msra.mxu0 %v400
    %888 = vmatprep.subr.mxu0 %v397
    %889 = vmatpush1.msra.mxu0 %v396
    %890 = vmatprep.subr.mxu0 %v393
    %891 = vmatpush1.msra.mxu0 %v392
    %892 = vmatprep.subr.mxu0 %v389
    %893 = vmatpush1.msra.mxu0 %v388
    %894 = vmatprep.subr.mxu0 %v385
    %895 = vmatpush1.msra.mxu0 %v384
    %896 = vmatprep.subr.mxu0 %v509
    %897 = vmatpush2.msra.mxu0 %v508
    %898 = vmatprep.subr.mxu0 %v505
    %899 = vmatpush2.msra.mxu0 %v504
    %900 = vmatprep.subr.mxu0 %v501
    %901 = vmatpush2.msra.mxu0 %v500
    %902 = vmatprep.subr.mxu0 %v497
    %903 = vmatpush2.msra.mxu0 %v496
    %904 = vmatprep.subr.mxu0 %v493
    %905 = vmatpush2.msra.mxu0 %v492
    %906 = vmatprep.subr.mxu0 %v489
    %907 = vmatpush2.msra.mxu0 %v488
    %908 = vmatprep.subr.mxu0 %v485
    %909 = vmatpush2.msra.mxu0 %v484
    %910 = vmatprep.subr.mxu0 %v481
    %911 = vmatpush2.msra.mxu0 %v480
    %912 = vmatprep.subr.mxu0 %v477
    %913 = vmatpush2.msra.mxu0 %v476
    %914 = vmatprep.subr.mxu0 %v473
    %915 = vmatpush2.msra.mxu0 %v472
    %916 = vmatprep.subr.mxu0 %v469
    %917 = vmatpush2.msra.mxu0 %v468
    %918 = vmatprep.subr.mxu0 %v465
    %919 = vmatpush2.msra.mxu0 %v464
    %920 = vmatprep.subr.mxu0 %v461
    %921 = vmatpush2.msra.mxu0 %v460
    %922 = vmatprep.subr.mxu0 %v457
    %923 = vmatpush2.msra.mxu0 %v456
    %924 = vmatprep.subr.mxu0 %v453
    %925 = vmatpush2.msra.mxu0 %v452
    %926 = vmatprep.subr.mxu0 %v449
    %927 = vmatpush2.msra.mxu0 %v448
    %928 = vmatprep.mubr.f32.mxu0 %v681
    %929 = vmatmul.mubr.f32.gmra.mxu0 %v863
    %v930 = vpop.f32.mrf.mxu0
    %v931 = vadd.f32 %v512, %v930
    %v932 = vpop.f32.mrf.mxu0
    %v933 = vadd.f32 %v513, %v932
    %934 = vdwg.mxu0
    %935 = vmatprep.subr.mxu0 %v447
    %936 = vmatpush1.msra.mxu0 %v446
    %937 = vmatprep.subr.mxu0 %v443
    %938 = vmatpush1.msra.mxu0 %v442
    %939 = vmatprep.subr.mxu0 %v439
    %940 = vmatpush1.msra.mxu0 %v438
    %941 = vmatprep.subr.mxu0 %v435
    %942 = vmatpush1.msra.mxu0 %v434
    %943 = vmatprep.subr.mxu0 %v431
    %944 = vmatpush1.msra.mxu0 %v430
    %945 = vmatprep.subr.mxu0 %v427
    %946 = vmatpush1.msra.mxu0 %v426
    %947 = vmatprep.subr.mxu0 %v423
    %948 = vmatpush1.msra.mxu0 %v422
    %949 = vmatprep.subr.mxu0 %v419
    %950 = vmatpush1.msra.mxu0 %v418
    %951 = vmatprep.subr.mxu0 %v415
    %952 = vmatpush1.msra.mxu0 %v414
    %953 = vmatprep.subr.mxu0 %v411
    %954 = vmatpush1.msra.mxu0 %v410
    %955 = vmatprep.subr.mxu0 %v407
    %956 = vmatpush1.msra.mxu0 %v406
    %957 = vmatprep.subr.mxu0 %v403
    %958 = vmatpush1.msra.mxu0 %v402
    %959 = vmatprep.subr.mxu0 %v399
    %960 = vmatpush1.msra.mxu0 %v398
    %961 = vmatprep.subr.mxu0 %v395
    %962 = vmatpush1.msra.mxu0 %v394
    %963 = vmatprep.subr.mxu0 %v391
    %964 = vmatpush1.msra.mxu0 %v390
    %965 = vmatprep.subr.mxu0 %v387
    %966 = vmatpush1.msra.mxu0 %v386
    %967 = vmatprep.subr.mxu0 %v511
    %968 = vmatpush2.msra.mxu0 %v510
    %969 = vmatprep.subr.mxu0 %v507
    %970 = vmatpush2.msra.mxu0 %v506
    %971 = vmatprep.subr.mxu0 %v503
    %972 = vmatpush2.msra.mxu0 %v502
    %973 = vmatprep.subr.mxu0 %v499
    %974 = vmatpush2.msra.mxu0 %v498
    %975 = vmatprep.subr.mxu0 %v495
    %976 = vmatpush2.msra.mxu0 %v494
    %977 = vmatprep.subr.mxu0 %v491
    %978 = vmatpush2.msra.mxu0 %v490
    %979 = vmatprep.subr.mxu0 %v487
    %980 = vmatpush2.msra.mxu0 %v486
    %981 = vmatprep.subr.mxu0 %v483
    %982 = vmatpush2.msra.mxu0 %v482
    %983 = vmatprep.subr.mxu0 %v479
    %984 = vmatpush2.msra.mxu0 %v478
    %985 = vmatprep.subr.mxu0 %v475
    %986 = vmatpush2.msra.mxu0 %v474
    %987 = vmatprep.subr.mxu0 %v471
    %988 = vmatpush2.msra.mxu0 %v470
    %989 = vmatprep.subr.mxu0 %v467
    %990 = vmatpush2.msra.mxu0 %v466
    %991 = vmatprep.subr.mxu0 %v463
    %992 = vmatpush2.msra.mxu0 %v462
    %993 = vmatprep.subr.mxu0 %v459
    %994 = vmatpush2.msra.mxu0 %v458
    %995 = vmatprep.subr.mxu0 %v455
    %996 = vmatpush2.msra.mxu0 %v454
    %997 = vmatprep.subr.mxu0 %v451
    %998 = vmatpush2.msra.mxu0 %v450
    %999 = vmatprep.mubr.f32.mxu0 %v681
    %1000 = vmatmul.mubr.f32.gmra.mxu0 %v863
    %v1001 = vpop.f32.mrf.mxu0
    %v1002 = vadd.f32 %v514, %v1001
    %v1003 = vpop.f32.mrf.mxu0
    %v1004 = vadd.f32 %v515, %v1003
    %1005 = vdwg.mxu0
    %v1006 = vxor.u32 %v931, 2147483648
    %v1007 = vxor.u32 %v933, 2147483648
    %v1008 = vxor.u32 %v1002, 2147483648
    %v1009 = vmul.f32 %v1006, 1.442695
    %v1010 = vpow.pop %v1009
    %v1011 = vmul.f32 %v1007, 1.442695
    %v1012 = vpow.pop %v1011
    %v1013 = vmul.f32 %v1008, 1.442695
    %v1014 = vpow.pop %v1013
    %v1015 = vadd.f32 %v1010, 1.0
    %v1016 = vadd.f32 %v1012, 1.0
    %v1017 = vadd.f32 %v1014, 1.0
    %v1018 = vrcp.pop %v1015
    %v1019 = vmul.f32 1.0, %v1018
    %v1020 = vrcp.pop %v1016
    %v1021 = vmul.f32 1.0, %v1020
    %v1022 = vrcp.pop %v1017
    %v1023 = vmul.f32 1.0, %v1022
    %v1024 = vtanh.pop %v1004
    %v1025 = vmul.f32 %v1021, %v679
    %v1026 = vmul.f32 %v1019, %v1024
    %v1027 = vadd.f32 %v1025, %v1026
    %v1028 = vtanh.pop %v1027
    %v1029 = vmul.f32 %v1023, %v1028
    %v1030 = vmul.f32 %v1029, %v1029
    %1031 = vadd.xlane.f32.xlu0 %v1030
    %v1032 = vpop.xlane.xlu0 %1031
    %v1033 = vrsqrt.pop %v1032
    %v1034 = vmul.f32 %v1032, %v1033
    %vm1035 = vcmp.eq.f32.partialorder %v1032, inf
    %v1036 = vsel %vm1035, %v1032, %v1034
    %vm1037 = vcmp.eq.f32.partialorder %v1032, 0.0
    %v1038 = vand.u32 %v1032, 2147483648
    %v1039 = vsel %vm1037, %v1038, %v1036
    %v1040 = vmax.f32 %v1039, 1e-12
    %v1041 = vrcp.pop %v1040
    %v1042 = vmul.f32 %v1029, %v1041
    %v1043 = vadd.f32 %v695, %v1042
    %s1044 = scalar_lea.vmem [#allocation2], 16
    %v1045 = vld [vmem:[%s1044] sm:$0xff]
    %1046 = vmatprep.subr.mxu0 %v147
    %1047 = vmatpush1.msra.mxu0 %v146
    %1048 = vmatprep.subr.mxu0 %v143
    %1049 = vmatpush1.msra.mxu0 %v142
    %1050 = vmatprep.subr.mxu0 %v139
    %1051 = vmatpush1.msra.mxu0 %v138
    %1052 = vmatprep.subr.mxu0 %v135
    %1053 = vmatpush1.msra.mxu0 %v134
    %1054 = vmatprep.subr.mxu0 %v131
    %1055 = vmatpush1.msra.mxu0 %v130
    %1056 = vmatprep.subr.mxu0 %v127
    %1057 = vmatpush1.msra.mxu0 %v126
    %1058 = vmatprep.subr.mxu0 %v123
    %1059 = vmatpush1.msra.mxu0 %v122
    %1060 = vmatprep.subr.mxu0 %v119
    %1061 = vmatpush1.msra.mxu0 %v118
    %1062 = vmatprep.subr.mxu0 %v115
    %1063 = vmatpush1.msra.mxu0 %v114
    %1064 = vmatprep.subr.mxu0 %v111
    %1065 = vmatpush1.msra.mxu0 %v110
    %1066 = vmatprep.subr.mxu0 %v107
    %1067 = vmatpush1.msra.mxu0 %v106
    %1068 = vmatprep.subr.mxu0 %v103
    %1069 = vmatpush1.msra.mxu0 %v102
    %1070 = vmatprep.subr.mxu0 %v99
    %1071 = vmatpush1.msra.mxu0 %v98
    %1072 = vmatprep.subr.mxu0 %v95
    %1073 = vmatpush1.msra.mxu0 %v94
    %1074 = vmatprep.subr.mxu0 %v91
    %1075 = vmatpush1.msra.mxu0 %v90
    %1076 = vmatprep.subr.mxu0 %v87
    %1077 = vmatpush1.msra.mxu0 %v86
    %1078 = vmatprep.subr.mxu0 %v211
    %1079 = vmatpush2.msra.mxu0 %v210
    %1080 = vmatprep.subr.mxu0 %v207
    %1081 = vmatpush2.msra.mxu0 %v206
    %1082 = vmatprep.subr.mxu0 %v203
    %1083 = vmatpush2.msra.mxu0 %v202
    %1084 = vmatprep.subr.mxu0 %v199
    %1085 = vmatpush2.msra.mxu0 %v198
    %1086 = vmatprep.subr.mxu0 %v195
    %1087 = vmatpush2.msra.mxu0 %v194
    %1088 = vmatprep.subr.mxu0 %v191
    %1089 = vmatpush2.msra.mxu0 %v190
    %1090 = vmatprep.subr.mxu0 %v187
    %1091 = vmatpush2.msra.mxu0 %v186
    %1092 = vmatprep.subr.mxu0 %v183
    %1093 = vmatpush2.msra.mxu0 %v182
    %1094 = vmatprep.subr.mxu0 %v179
    %1095 = vmatpush2.msra.mxu0 %v178
    %1096 = vmatprep.subr.mxu0 %v175
    %1097 = vmatpush2.msra.mxu0 %v174
    %1098 = vmatprep.subr.mxu0 %v171
    %1099 = vmatpush2.msra.mxu0 %v170
    %1100 = vmatprep.subr.mxu0 %v167
    %1101 = vmatpush2.msra.mxu0 %v166
    %1102 = vmatprep.subr.mxu0 %v163
    %1103 = vmatpush2.msra.mxu0 %v162
    %1104 = vmatprep.subr.mxu0 %v159
    %1105 = vmatpush2.msra.mxu0 %v158
    %1106 = vmatprep.subr.mxu0 %v155
    %1107 = vmatpush2.msra.mxu0 %v154
    %1108 = vmatprep.subr.mxu0 %v151
    %1109 = vmatpush2.msra.mxu0 %v150
    %1110 = vmatprep.mubr.f32.mxu0 %v863
    %1111 = vmatmul.mubr.f32.gmra.mxu0 %v1045
    %v1112 = vpop.f32.mrf.mxu0
    %v1113 = vadd.f32 %v214, %v1112
    %v1114 = vpop.f32.mrf.mxu0
    %v1115 = vadd.f32 %v215, %v1114
    %1116 = vdwg.mxu0
    %1117 = vmatprep.subr.mxu0 %v149
    %1118 = vmatpush1.msra.mxu0 %v148
    %1119 = vmatprep.subr.mxu0 %v145
    %1120 = vmatpush1.msra.mxu0 %v144
    %1121 = vmatprep.subr.mxu0 %v141
    %1122 = vmatpush1.msra.mxu0 %v140
    %1123 = vmatprep.subr.mxu0 %v137
    %1124 = vmatpush1.msra.mxu0 %v136
    %1125 = vmatprep.subr.mxu0 %v133
    %1126 = vmatpush1.msra.mxu0 %v132
    %1127 = vmatprep.subr.mxu0 %v129
    %1128 = vmatpush1.msra.mxu0 %v128
    %1129 = vmatprep.subr.mxu0 %v125
    %1130 = vmatpush1.msra.mxu0 %v124
    %1131 = vmatprep.subr.mxu0 %v121
    %1132 = vmatpush1.msra.mxu0 %v120
    %1133 = vmatprep.subr.mxu0 %v117
    %1134 = vmatpush1.msra.mxu0 %v116
    %1135 = vmatprep.subr.mxu0 %v113
    %1136 = vmatpush1.msra.mxu0 %v112
    %1137 = vmatprep.subr.mxu0 %v109
    %1138 = vmatpush1.msra.mxu0 %v108
    %1139 = vmatprep.subr.mxu0 %v105
    %1140 = vmatpush1.msra.mxu0 %v104
    %1141 = vmatprep.subr.mxu0 %v101
    %1142 = vmatpush1.msra.mxu0 %v100
    %1143 = vmatprep.subr.mxu0 %v97
    %1144 = vmatpush1.msra.mxu0 %v96
    %1145 = vmatprep.subr.mxu0 %v93
    %1146 = vmatpush1.msra.mxu0 %v92
    %1147 = vmatprep.subr.mxu0 %v89
    %1148 = vmatpush1.msra.mxu0 %v88
    %1149 = vmatprep.subr.mxu0 %v213
    %1150 = vmatpush2.msra.mxu0 %v212
    %1151 = vmatprep.subr.mxu0 %v209
    %1152 = vmatpush2.msra.mxu0 %v208
    %1153 = vmatprep.subr.mxu0 %v205
    %1154 = vmatpush2.msra.mxu0 %v204
    %1155 = vmatprep.subr.mxu0 %v201
    %1156 = vmatpush2.msra.mxu0 %v200
    %1157 = vmatprep.subr.mxu0 %v197
    %1158 = vmatpush2.msra.mxu0 %v196
    %1159 = vmatprep.subr.mxu0 %v193
    %1160 = vmatpush2.msra.mxu0 %v192
    %1161 = vmatprep.subr.mxu0 %v189
    %1162 = vmatpush2.msra.mxu0 %v188
    %1163 = vmatprep.subr.mxu0 %v185
    %1164 = vmatpush2.msra.mxu0 %v184
    %1165 = vmatprep.subr.mxu0 %v181
    %1166 = vmatpush2.msra.mxu0 %v180
    %1167 = vmatprep.subr.mxu0 %v177
    %1168 = vmatpush2.msra.mxu0 %v176
    %1169 = vmatprep.subr.mxu0 %v173
    %1170 = vmatpush2.msra.mxu0 %v172
    %1171 = vmatprep.subr.mxu0 %v169
    %1172 = vmatpush2.msra.mxu0 %v168
    %1173 = vmatprep.subr.mxu0 %v165
    %1174 = vmatpush2.msra.mxu0 %v164
    %1175 = vmatprep.subr.mxu0 %v161
    %1176 = vmatpush2.msra.mxu0 %v160
    %1177 = vmatprep.subr.mxu0 %v157
    %1178 = vmatpush2.msra.mxu0 %v156
    %1179 = vmatprep.subr.mxu0 %v153
    %1180 = vmatpush2.msra.mxu0 %v152
    %1181 = vmatprep.mubr.f32.mxu0 %v863
    %1182 = vmatmul.mubr.f32.gmra.mxu0 %v1045
    %v1183 = vpop.f32.mrf.mxu0
    %v1184 = vadd.f32 %v216, %v1183
    %v1185 = vpop.f32.mrf.mxu0
    %v1186 = vadd.f32 %v217, %v1185
    %1187 = vdwg.mxu0
    %v1188 = vxor.u32 %v1113, 2147483648
    %v1189 = vxor.u32 %v1115, 2147483648
    %v1190 = vxor.u32 %v1184, 2147483648
    %v1191 = vmul.f32 %v1188, 1.442695
    %v1192 = vpow.pop %v1191
    %v1193 = vmul.f32 %v1189, 1.442695
    %v1194 = vpow.pop %v1193
    %v1195 = vmul.f32 %v1190, 1.442695
    %v1196 = vpow.pop %v1195
    %v1197 = vadd.f32 %v1192, 1.0
    %v1198 = vadd.f32 %v1194, 1.0
    %v1199 = vadd.f32 %v1196, 1.0
    %v1200 = vrcp.pop %v1197
    %v1201 = vmul.f32 1.0, %v1200
    %v1202 = vrcp.pop %v1198
    %v1203 = vmul.f32 1.0, %v1202
    %v1204 = vrcp.pop %v1199
    %v1205 = vmul.f32 1.0, %v1204
    %v1206 = vtanh.pop %v1186
    %v1207 = vmul.f32 %v1203, %v861
    %v1208 = vmul.f32 %v1201, %v1206
    %v1209 = vadd.f32 %v1207, %v1208
    %v1210 = vtanh.pop %v1209
    %v1211 = vmul.f32 %v1205, %v1210
    %1212 = vmatprep.subr.mxu0 %v445
    %1213 = vmatpush1.msra.mxu0 %v444
    %1214 = vmatprep.subr.mxu0 %v441
    %1215 = vmatpush1.msra.mxu0 %v440
    %1216 = vmatprep.subr.mxu0 %v437
    %1217 = vmatpush1.msra.mxu0 %v436
    %1218 = vmatprep.subr.mxu0 %v433
    %1219 = vmatpush1.msra.mxu0 %v432
    %1220 = vmatprep.subr.mxu0 %v429
    %1221 = vmatpush1.msra.mxu0 %v428
    %1222 = vmatprep.subr.mxu0 %v425
    %1223 = vmatpush1.msra.mxu0 %v424
    %1224 = vmatprep.subr.mxu0 %v421
    %1225 = vmatpush1.msra.mxu0 %v420
    %1226 = vmatprep.subr.mxu0 %v417
    %1227 = vmatpush1.msra.mxu0 %v416
    %1228 = vmatprep.subr.mxu0 %v413
    %1229 = vmatpush1.msra.mxu0 %v412
    %1230 = vmatprep.subr.mxu0 %v409
    %1231 = vmatpush1.msra.mxu0 %v408
    %1232 = vmatprep.subr.mxu0 %v405
    %1233 = vmatpush1.msra.mxu0 %v404
    %1234 = vmatprep.subr.mxu0 %v401
    %1235 = vmatpush1.msra.mxu0 %v400
    %1236 = vmatprep.subr.mxu0 %v397
    %1237 = vmatpush1.msra.mxu0 %v396
    %1238 = vmatprep.subr.mxu0 %v393
    %1239 = vmatpush1.msra.mxu0 %v392
    %1240 = vmatprep.subr.mxu0 %v389
    %1241 = vmatpush1.msra.mxu0 %v388
    %1242 = vmatprep.subr.mxu0 %v385
    %1243 = vmatpush1.msra.mxu0 %v384
    %1244 = vmatprep.subr.mxu0 %v509
    %1245 = vmatpush2.msra.mxu0 %v508
    %1246 = vmatprep.subr.mxu0 %v505
    %1247 = vmatpush2.msra.mxu0 %v504
    %1248 = vmatprep.subr.mxu0 %v501
    %1249 = vmatpush2.msra.mxu0 %v500
    %1250 = vmatprep.subr.mxu0 %v497
    %1251 = vmatpush2.msra.mxu0 %v496
    %1252 = vmatprep.subr.mxu0 %v493
    %1253 = vmatpush2.msra.mxu0 %v492
    %1254 = vmatprep.subr.mxu0 %v489
    %1255 = vmatpush2.msra.mxu0 %v488
    %1256 = vmatprep.subr.mxu0 %v485
    %1257 = vmatpush2.msra.mxu0 %v484
    %1258 = vmatprep.subr.mxu0 %v481
    %1259 = vmatpush2.msra.mxu0 %v480
    %1260 = vmatprep.subr.mxu0 %v477
    %1261 = vmatpush2.msra.mxu0 %v476
    %1262 = vmatprep.subr.mxu0 %v473
    %1263 = vmatpush2.msra.mxu0 %v472
    %1264 = vmatprep.subr.mxu0 %v469
    %1265 = vmatpush2.msra.mxu0 %v468
    %1266 = vmatprep.subr.mxu0 %v465
    %1267 = vmatpush2.msra.mxu0 %v464
    %1268 = vmatprep.subr.mxu0 %v461
    %1269 = vmatpush2.msra.mxu0 %v460
    %1270 = vmatprep.subr.mxu0 %v457
    %1271 = vmatpush2.msra.mxu0 %v456
    %1272 = vmatprep.subr.mxu0 %v453
    %1273 = vmatpush2.msra.mxu0 %v452
    %1274 = vmatprep.subr.mxu0 %v449
    %1275 = vmatpush2.msra.mxu0 %v448
    %1276 = vmatprep.mubr.f32.mxu0 %v1029
    %1277 = vmatmul.mubr.f32.gmra.mxu0 %v1211
    %v1278 = vpop.f32.mrf.mxu0
    %v1279 = vadd.f32 %v512, %v1278
    %v1280 = vpop.f32.mrf.mxu0
    %v1281 = vadd.f32 %v513, %v1280
    %1282 = vdwg.mxu0
    %1283 = vmatprep.subr.mxu0 %v447
    %1284 = vmatpush1.msra.mxu0 %v446
    %1285 = vmatprep.subr.mxu0 %v443
    %1286 = vmatpush1.msra.mxu0 %v442
    %1287 = vmatprep.subr.mxu0 %v439
    %1288 = vmatpush1.msra.mxu0 %v438
    %1289 = vmatprep.subr.mxu0 %v435
    %1290 = vmatpush1.msra.mxu0 %v434
    %1291 = vmatprep.subr.mxu0 %v431
    %1292 = vmatpush1.msra.mxu0 %v430
    %1293 = vmatprep.subr.mxu0 %v427
    %1294 = vmatpush1.msra.mxu0 %v426
    %1295 = vmatprep.subr.mxu0 %v423
    %1296 = vmatpush1.msra.mxu0 %v422
    %1297 = vmatprep.subr.mxu0 %v419
    %1298 = vmatpush1.msra.mxu0 %v418
    %1299 = vmatprep.subr.mxu0 %v415
    %1300 = vmatpush1.msra.mxu0 %v414
    %1301 = vmatprep.subr.mxu0 %v411
    %1302 = vmatpush1.msra.mxu0 %v410
    %1303 = vmatprep.subr.mxu0 %v407
    %1304 = vmatpush1.msra.mxu0 %v406
    %1305 = vmatprep.subr.mxu0 %v403
    %1306 = vmatpush1.msra.mxu0 %v402
    %1307 = vmatprep.subr.mxu0 %v399
    %1308 = vmatpush1.msra.mxu0 %v398
    %1309 = vmatprep.subr.mxu0 %v395
    %1310 = vmatpush1.msra.mxu0 %v394
    %1311 = vmatprep.subr.mxu0 %v391
    %1312 = vmatpush1.msra.mxu0 %v390
    %1313 = vmatprep.subr.mxu0 %v387
    %1314 = vmatpush1.msra.mxu0 %v386
    %1315 = vmatprep.subr.mxu0 %v511
    %1316 = vmatpush2.msra.mxu0 %v510
    %1317 = vmatprep.subr.mxu0 %v507
    %1318 = vmatpush2.msra.mxu0 %v506
    %1319 = vmatprep.subr.mxu0 %v503
    %1320 = vmatpush2.msra.mxu0 %v502
    %1321 = vmatprep.subr.mxu0 %v499
    %1322 = vmatpush2.msra.mxu0 %v498
    %1323 = vmatprep.subr.mxu0 %v495
    %1324 = vmatpush2.msra.mxu0 %v494
    %1325 = vmatprep.subr.mxu0 %v491
    %1326 = vmatpush2.msra.mxu0 %v490
    %1327 = vmatprep.subr.mxu0 %v487
    %1328 = vmatpush2.msra.mxu0 %v486
    %1329 = vmatprep.subr.mxu0 %v483
    %1330 = vmatpush2.msra.mxu0 %v482
    %1331 = vmatprep.subr.mxu0 %v479
    %1332 = vmatpush2.msra.mxu0 %v478
    %1333 = vmatprep.subr.mxu0 %v475
    %1334 = vmatpush2.msra.mxu0 %v474
    %1335 = vmatprep.subr.mxu0 %v471
    %1336 = vmatpush2.msra.mxu0 %v470
    %1337 = vmatprep.subr.mxu0 %v467
    %1338 = vmatpush2.msra.mxu0 %v466
    %1339 = vmatprep.subr.mxu0 %v463
    %1340 = vmatpush2.msra.mxu0 %v462
    %1341 = vmatprep.subr.mxu0 %v459
    %1342 = vmatpush2.msra.mxu0 %v458
    %1343 = vmatprep.subr.mxu0 %v455
    %1344 = vmatpush2.msra.mxu0 %v454
    %1345 = vmatprep.subr.mxu0 %v451
    %1346 = vmatpush2.msra.mxu0 %v450
    %1347 = vmatprep.mubr.f32.mxu0 %v1029
    %1348 = vmatmul.mubr.f32.gmra.mxu0 %v1211
    %v1349 = vpop.f32.mrf.mxu0
    %v1350 = vadd.f32 %v514, %v1349
    %v1351 = vpop.f32.mrf.mxu0
    %v1352 = vadd.f32 %v515, %v1351
    %1353 = vdwg.mxu0
    %v1354 = vxor.u32 %v1279, 2147483648
    %v1355 = vxor.u32 %v1281, 2147483648
    %v1356 = vxor.u32 %v1350, 2147483648
    %v1357 = vmul.f32 %v1354, 1.442695
    %v1358 = vpow.pop %v1357
    %v1359 = vmul.f32 %v1355, 1.442695
    %v1360 = vpow.pop %v1359
    %v1361 = vmul.f32 %v1356, 1.442695
    %v1362 = vpow.pop %v1361
    %v1363 = vadd.f32 %v1358, 1.0
    %v1364 = vadd.f32 %v1360, 1.0
    %v1365 = vadd.f32 %v1362, 1.0
    %v1366 = vrcp.pop %v1363
    %v1367 = vmul.f32 1.0, %v1366
    %v1368 = vrcp.pop %v1364
    %v1369 = vmul.f32 1.0, %v1368
    %v1370 = vrcp.pop %v1365
    %v1371 = vmul.f32 1.0, %v1370
    %v1372 = vtanh.pop %v1352
    %v1373 = vmul.f32 %v1369, %v1027
    %v1374 = vmul.f32 %v1367, %v1372
    %v1375 = vadd.f32 %v1373, %v1374
    %v1376 = vtanh.pop %v1375
    %v1377 = vmul.f32 %v1371, %v1376
    %v1378 = vmul.f32 %v1377, %v1377
    %1379 = vadd.xlane.f32.xlu0 %v1378
    %v1380 = vpop.xlane.xlu0 %1379
    %v1381 = vrsqrt.pop %v1380
    %v1382 = vmul.f32 %v1380, %v1381
    %vm1383 = vcmp.eq.f32.partialorder %v1380, inf
    %v1384 = vsel %vm1383, %v1380, %v1382
    %vm1385 = vcmp.eq.f32.partialorder %v1380, 0.0
    %v1386 = vand.u32 %v1380, 2147483648
    %v1387 = vsel %vm1385, %v1386, %v1384
    %v1388 = vmax.f32 %v1387, 1e-12
    %v1389 = vrcp.pop %v1388
    %v1390 = vmul.f32 %v1377, %v1389
    %v1391 = vadd.f32 %v1043, %v1390
    %s1392 = scalar_lea.vmem [#allocation2], 24
    %v1393 = vld [vmem:[%s1392] sm:$0xff]
    %1394 = vmatprep.subr.mxu0 %v147
    %1395 = vmatpush1.msra.mxu0 %v146
    %1396 = vmatprep.subr.mxu0 %v143
    %1397 = vmatpush1.msra.mxu0 %v142
    %1398 = vmatprep.subr.mxu0 %v139
    %1399 = vmatpush1.msra.mxu0 %v138
    %1400 = vmatprep.subr.mxu0 %v135
    %1401 = vmatpush1.msra.mxu0 %v134
    %1402 = vmatprep.subr.mxu0 %v131
    %1403 = vmatpush1.msra.mxu0 %v130
    %1404 = vmatprep.subr.mxu0 %v127
    %1405 = vmatpush1.msra.mxu0 %v126
    %1406 = vmatprep.subr.mxu0 %v123
    %1407 = vmatpush1.msra.mxu0 %v122
    %1408 = vmatprep.subr.mxu0 %v119
    %1409 = vmatpush1.msra.mxu0 %v118
    %1410 = vmatprep.subr.mxu0 %v115
    %1411 = vmatpush1.msra.mxu0 %v114
    %1412 = vmatprep.subr.mxu0 %v111
    %1413 = vmatpush1.msra.mxu0 %v110
    %1414 = vmatprep.subr.mxu0 %v107
    %1415 = vmatpush1.msra.mxu0 %v106
    %1416 = vmatprep.subr.mxu0 %v103
    %1417 = vmatpush1.msra.mxu0 %v102
    %1418 = vmatprep.subr.mxu0 %v99
    %1419 = vmatpush1.msra.mxu0 %v98
    %1420 = vmatprep.subr.mxu0 %v95
    %1421 = vmatpush1.msra.mxu0 %v94
    %1422 = vmatprep.subr.mxu0 %v91
    %1423 = vmatpush1.msra.mxu0 %v90
    %1424 = vmatprep.subr.mxu0 %v87
    %1425 = vmatpush1.msra.mxu0 %v86
    %1426 = vmatprep.subr.mxu0 %v211
    %1427 = vmatpush2.msra.mxu0 %v210
    %1428 = vmatprep.subr.mxu0 %v207
    %1429 = vmatpush2.msra.mxu0 %v206
    %1430 = vmatprep.subr.mxu0 %v203
    %1431 = vmatpush2.msra.mxu0 %v202
    %1432 = vmatprep.subr.mxu0 %v199
    %1433 = vmatpush2.msra.mxu0 %v198
    %1434 = vmatprep.subr.mxu0 %v195
    %1435 = vmatpush2.msra.mxu0 %v194
    %1436 = vmatprep.subr.mxu0 %v191
    %1437 = vmatpush2.msra.mxu0 %v190
    %1438 = vmatprep.subr.mxu0 %v187
    %1439 = vmatpush2.msra.mxu0 %v186
    %1440 = vmatprep.subr.mxu0 %v183
    %1441 = vmatpush2.msra.mxu0 %v182
    %1442 = vmatprep.subr.mxu0 %v179
    %1443 = vmatpush2.msra.mxu0 %v178
    %1444 = vmatprep.subr.mxu0 %v175
    %1445 = vmatpush2.msra.mxu0 %v174
    %1446 = vmatprep.subr.mxu0 %v171
    %1447 = vmatpush2.msra.mxu0 %v170
    %1448 = vmatprep.subr.mxu0 %v167
    %1449 = vmatpush2.msra.mxu0 %v166
    %1450 = vmatprep.subr.mxu0 %v163
    %1451 = vmatpush2.msra.mxu0 %v162
    %1452 = vmatprep.subr.mxu0 %v159
    %1453 = vmatpush2.msra.mxu0 %v158
    %1454 = vmatprep.subr.mxu0 %v155
    %1455 = vmatpush2.msra.mxu0 %v154
    %1456 = vmatprep.subr.mxu0 %v151
    %1457 = vmatpush2.msra.mxu0 %v150
    %1458 = vmatprep.mubr.f32.mxu0 %v1211
    %1459 = vmatmul.mubr.f32.gmra.mxu0 %v1393
    %v1460 = vpop.f32.mrf.mxu0
    %v1461 = vadd.f32 %v214, %v1460
    %v1462 = vpop.f32.mrf.mxu0
    %v1463 = vadd.f32 %v215, %v1462
    %1464 = vdwg.mxu0
    %1465 = vmatprep.subr.mxu0 %v149
    %1466 = vmatpush1.msra.mxu0 %v148
    %1467 = vmatprep.subr.mxu0 %v145
    %1468 = vmatpush1.msra.mxu0 %v144
    %1469 = vmatprep.subr.mxu0 %v141
    %1470 = vmatpush1.msra.mxu0 %v140
    %1471 = vmatprep.subr.mxu0 %v137
    %1472 = vmatpush1.msra.mxu0 %v136
    %1473 = vmatprep.subr.mxu0 %v133
    %1474 = vmatpush1.msra.mxu0 %v132
    %1475 = vmatprep.subr.mxu0 %v129
    %1476 = vmatpush1.msra.mxu0 %v128
    %1477 = vmatprep.subr.mxu0 %v125
    %1478 = vmatpush1.msra.mxu0 %v124
    %1479 = vmatprep.subr.mxu0 %v121
    %1480 = vmatpush1.msra.mxu0 %v120
    %1481 = vmatprep.subr.mxu0 %v117
    %1482 = vmatpush1.msra.mxu0 %v116
    %1483 = vmatprep.subr.mxu0 %v113
    %1484 = vmatpush1.msra.mxu0 %v112
    %1485 = vmatprep.subr.mxu0 %v109
    %1486 = vmatpush1.msra.mxu0 %v108
    %1487 = vmatprep.subr.mxu0 %v105
    %1488 = vmatpush1.msra.mxu0 %v104
    %1489 = vmatprep.subr.mxu0 %v101
    %1490 = vmatpush1.msra.mxu0 %v100
    %1491 = vmatprep.subr.mxu0 %v97
    %1492 = vmatpush1.msra.mxu0 %v96
    %1493 = vmatprep.subr.mxu0 %v93
    %1494 = vmatpush1.msra.mxu0 %v92
    %1495 = vmatprep.subr.mxu0 %v89
    %1496 = vmatpush1.msra.mxu0 %v88
    %1497 = vmatprep.subr.mxu0 %v213
    %1498 = vmatpush2.msra.mxu0 %v212
    %1499 = vmatprep.subr.mxu0 %v209
    %1500 = vmatpush2.msra.mxu0 %v208
    %1501 = vmatprep.subr.mxu0 %v205
    %1502 = vmatpush2.msra.mxu0 %v204
    %1503 = vmatprep.subr.mxu0 %v201
    %1504 = vmatpush2.msra.mxu0 %v200
    %1505 = vmatprep.subr.mxu0 %v197
    %1506 = vmatpush2.msra.mxu0 %v196
    %1507 = vmatprep.subr.mxu0 %v193
    %1508 = vmatpush2.msra.mxu0 %v192
    %1509 = vmatprep.subr.mxu0 %v189
    %1510 = vmatpush2.msra.mxu0 %v188
    %1511 = vmatprep.subr.mxu0 %v185
    %1512 = vmatpush2.msra.mxu0 %v184
    %1513 = vmatprep.subr.mxu0 %v181
    %1514 = vmatpush2.msra.mxu0 %v180
    %1515 = vmatprep.subr.mxu0 %v177
    %1516 = vmatpush2.msra.mxu0 %v176
    %1517 = vmatprep.subr.mxu0 %v173
    %1518 = vmatpush2.msra.mxu0 %v172
    %1519 = vmatprep.subr.mxu0 %v169
    %1520 = vmatpush2.msra.mxu0 %v168
    %1521 = vmatprep.subr.mxu0 %v165
    %1522 = vmatpush2.msra.mxu0 %v164
    %1523 = vmatprep.subr.mxu0 %v161
    %1524 = vmatpush2.msra.mxu0 %v160
    %1525 = vmatprep.subr.mxu0 %v157
    %1526 = vmatpush2.msra.mxu0 %v156
    %1527 = vmatprep.subr.mxu0 %v153
    %1528 = vmatpush2.msra.mxu0 %v152
    %1529 = vmatprep.mubr.f32.mxu0 %v1211
    %1530 = vmatmul.mubr.f32.gmra.mxu0 %v1393
    %v1531 = vpop.f32.mrf.mxu0
    %v1532 = vadd.f32 %v216, %v1531
    %v1533 = vpop.f32.mrf.mxu0
    %v1534 = vadd.f32 %v217, %v1533
    %1535 = vdwg.mxu0
    %v1536 = vxor.u32 %v1461, 2147483648
    %v1537 = vxor.u32 %v1463, 2147483648
    %v1538 = vxor.u32 %v1532, 2147483648
    %v1539 = vmul.f32 %v1536, 1.442695
    %v1540 = vpow.pop %v1539
    %v1541 = vmul.f32 %v1537, 1.442695
    %v1542 = vpow.pop %v1541
    %v1543 = vmul.f32 %v1538, 1.442695
    %v1544 = vpow.pop %v1543
    %v1545 = vadd.f32 %v1540, 1.0
    %v1546 = vadd.f32 %v1542, 1.0
    %v1547 = vadd.f32 %v1544, 1.0
    %v1548 = vrcp.pop %v1545
    %v1549 = vmul.f32 1.0, %v1548
    %v1550 = vrcp.pop %v1546
    %v1551 = vmul.f32 1.0, %v1550
    %v1552 = vrcp.pop %v1547
    %v1553 = vmul.f32 1.0, %v1552
    %v1554 = vtanh.pop %v1534
    %v1555 = vmul.f32 %v1551, %v1209
    %v1556 = vmul.f32 %v1549, %v1554
    %v1557 = vadd.f32 %v1555, %v1556
    %v1558 = vtanh.pop %v1557
    %v1559 = vmul.f32 %v1553, %v1558
    %1560 = vmatprep.subr.mxu0 %v445
    %1561 = vmatpush1.msra.mxu0 %v444
    %1562 = vmatprep.subr.mxu0 %v441
    %1563 = vmatpush1.msra.mxu0 %v440
    %1564 = vmatprep.subr.mxu0 %v437
    %1565 = vmatpush1.msra.mxu0 %v436
    %1566 = vmatprep.subr.mxu0 %v433
    %1567 = vmatpush1.msra.mxu0 %v432
    %1568 = vmatprep.subr.mxu0 %v429
    %1569 = vmatpush1.msra.mxu0 %v428
    %1570 = vmatprep.subr.mxu0 %v425
    %1571 = vmatpush1.msra.mxu0 %v424
    %1572 = vmatprep.subr.mxu0 %v421
    %1573 = vmatpush1.msra.mxu0 %v420
    %1574 = vmatprep.subr.mxu0 %v417
    %1575 = vmatpush1.msra.mxu0 %v416
    %1576 = vmatprep.subr.mxu0 %v413
    %1577 = vmatpush1.msra.mxu0 %v412
    %1578 = vmatprep.subr.mxu0 %v409
    %1579 = vmatpush1.msra.mxu0 %v408
    %1580 = vmatprep.subr.mxu0 %v405
    %1581 = vmatpush1.msra.mxu0 %v404
    %1582 = vmatprep.subr.mxu0 %v401
    %1583 = vmatpush1.msra.mxu0 %v400
    %1584 = vmatprep.subr.mxu0 %v397
    %1585 = vmatpush1.msra.mxu0 %v396
    %1586 = vmatprep.subr.mxu0 %v393
    %1587 = vmatpush1.msra.mxu0 %v392
    %1588 = vmatprep.subr.mxu0 %v389
    %1589 = vmatpush1.msra.mxu0 %v388
    %1590 = vmatprep.subr.mxu0 %v385
    %1591 = vmatpush1.msra.mxu0 %v384
    %1592 = vmatprep.subr.mxu0 %v509
    %1593 = vmatpush2.msra.mxu0 %v508
    %1594 = vmatprep.subr.mxu0 %v505
    %1595 = vmatpush2.msra.mxu0 %v504
    %1596 = vmatprep.subr.mxu0 %v501
    %1597 = vmatpush2.msra.mxu0 %v500
    %1598 = vmatprep.subr.mxu0 %v497
    %1599 = vmatpush2.msra.mxu0 %v496
    %1600 = vmatprep.subr.mxu0 %v493
    %1601 = vmatpush2.msra.mxu0 %v492
    %1602 = vmatprep.subr.mxu0 %v489
    %1603 = vmatpush2.msra.mxu0 %v488
    %1604 = vmatprep.subr.mxu0 %v485
    %1605 = vmatpush2.msra.mxu0 %v484
    %1606 = vmatprep.subr.mxu0 %v481
    %1607 = vmatpush2.msra.mxu0 %v480
    %1608 = vmatprep.subr.mxu0 %v477
    %1609 = vmatpush2.msra.mxu0 %v476
    %1610 = vmatprep.subr.mxu0 %v473
    %1611 = vmatpush2.msra.mxu0 %v472
    %1612 = vmatprep.subr.mxu0 %v469
    %1613 = vmatpush2.msra.mxu0 %v468
    %1614 = vmatprep.subr.mxu0 %v465
    %1615 = vmatpush2.msra.mxu0 %v464
    %1616 = vmatprep.subr.mxu0 %v461
    %1617 = vmatpush2.msra.mxu0 %v460
    %1618 = vmatprep.subr.mxu0 %v457
    %1619 = vmatpush2.msra.mxu0 %v456
    %1620 = vmatprep.subr.mxu0 %v453
    %1621 = vmatpush2.msra.mxu0 %v452
    %1622 = vmatprep.subr.mxu0 %v449
    %1623 = vmatpush2.msra.mxu0 %v448
    %1624 = vmatprep.mubr.f32.mxu0 %v1377
    %1625 = vmatmul.mubr.f32.gmra.mxu0 %v1559
    %v1626 = vpop.f32.mrf.mxu0
    %v1627 = vadd.f32 %v512, %v1626
    %v1628 = vpop.f32.mrf.mxu0
    %v1629 = vadd.f32 %v513, %v1628
    %1630 = vdwg.mxu0
    %1631 = vmatprep.subr.mxu0 %v447
    %1632 = vmatpush1.msra.mxu0 %v446
    %1633 = vmatprep.subr.mxu0 %v443
    %1634 = vmatpush1.msra.mxu0 %v442
    %1635 = vmatprep.subr.mxu0 %v439
    %1636 = vmatpush1.msra.mxu0 %v438
    %1637 = vmatprep.subr.mxu0 %v435
    %1638 = vmatpush1.msra.mxu0 %v434
    %1639 = vmatprep.subr.mxu0 %v431
    %1640 = vmatpush1.msra.mxu0 %v430
    %1641 = vmatprep.subr.mxu0 %v427
    %1642 = vmatpush1.msra.mxu0 %v426
    %1643 = vmatprep.subr.mxu0 %v423
    %1644 = vmatpush1.msra.mxu0 %v422
    %1645 = vmatprep.subr.mxu0 %v419
    %1646 = vmatpush1.msra.mxu0 %v418
    %1647 = vmatprep.subr.mxu0 %v415
    %1648 = vmatpush1.msra.mxu0 %v414
    %1649 = vmatprep.subr.mxu0 %v411
    %1650 = vmatpush1.msra.mxu0 %v410
    %1651 = vmatprep.subr.mxu0 %v407
    %1652 = vmatpush1.msra.mxu0 %v406
    %1653 = vmatprep.subr.mxu0 %v403
    %1654 = vmatpush1.msra.mxu0 %v402
    %1655 = vmatprep.subr.mxu0 %v399
    %1656 = vmatpush1.msra.mxu0 %v398
    %1657 = vmatprep.subr.mxu0 %v395
    %1658 = vmatpush1.msra.mxu0 %v394
    %1659 = vmatprep.subr.mxu0 %v391
    %1660 = vmatpush1.msra.mxu0 %v390
    %1661 = vmatprep.subr.mxu0 %v387
    %1662 = vmatpush1.msra.mxu0 %v386
    %1663 = vmatprep.subr.mxu0 %v511
    %1664 = vmatpush2.msra.mxu0 %v510
    %1665 = vmatprep.subr.mxu0 %v507
    %1666 = vmatpush2.msra.mxu0 %v506
    %1667 = vmatprep.subr.mxu0 %v503
    %1668 = vmatpush2.msra.mxu0 %v502
    %1669 = vmatprep.subr.mxu0 %v499
    %1670 = vmatpush2.msra.mxu0 %v498
    %1671 = vmatprep.subr.mxu0 %v495
    %1672 = vmatpush2.msra.mxu0 %v494
    %1673 = vmatprep.subr.mxu0 %v491
    %1674 = vmatpush2.msra.mxu0 %v490
    %1675 = vmatprep.subr.mxu0 %v487
    %1676 = vmatpush2.msra.mxu0 %v486
    %1677 = vmatprep.subr.mxu0 %v483
    %1678 = vmatpush2.msra.mxu0 %v482
    %1679 = vmatprep.subr.mxu0 %v479
    %1680 = vmatpush2.msra.mxu0 %v478
    %1681 = vmatprep.subr.mxu0 %v475
    %1682 = vmatpush2.msra.mxu0 %v474
    %1683 = vmatprep.subr.mxu0 %v471
    %1684 = vmatpush2.msra.mxu0 %v470
    %1685 = vmatprep.subr.mxu0 %v467
    %1686 = vmatpush2.msra.mxu0 %v466
    %1687 = vmatprep.subr.mxu0 %v463
    %1688 = vmatpush2.msra.mxu0 %v462
    %1689 = vmatprep.subr.mxu0 %v459
    %1690 = vmatpush2.msra.mxu0 %v458
    %1691 = vmatprep.subr.mxu0 %v455
    %1692 = vmatpush2.msra.mxu0 %v454
    %1693 = vmatprep.subr.mxu0 %v451
    %1694 = vmatpush2.msra.mxu0 %v450
    %1695 = vmatprep.mubr.f32.mxu0 %v1377
    %1696 = vmatmul.mubr.f32.gmra.mxu0 %v1559
    %v1697 = vpop.f32.mrf.mxu0
    %v1698 = vadd.f32 %v514, %v1697
    %v1699 = vpop.f32.mrf.mxu0
    %v1700 = vadd.f32 %v515, %v1699
    %1701 = vdwg.mxu0
    %v1702 = vxor.u32 %v1627, 2147483648
    %v1703 = vxor.u32 %v1629, 2147483648
    %v1704 = vxor.u32 %v1698, 2147483648
    %v1705 = vmul.f32 %v1702, 1.442695
    %v1706 = vpow.pop %v1705
    %v1707 = vmul.f32 %v1703, 1.442695
    %v1708 = vpow.pop %v1707
    %v1709 = vmul.f32 %v1704, 1.442695
    %v1710 = vpow.pop %v1709
    %v1711 = vadd.f32 %v1706, 1.0
    %v1712 = vadd.f32 %v1708, 1.0
    %v1713 = vadd.f32 %v1710, 1.0
    %v1714 = vrcp.pop %v1711
    %v1715 = vmul.f32 1.0, %v1714
    %v1716 = vrcp.pop %v1712
    %v1717 = vmul.f32 1.0, %v1716
    %v1718 = vrcp.pop %v1713
    %v1719 = vmul.f32 1.0, %v1718
    %v1720 = vtanh.pop %v1700
    %v1721 = vmul.f32 %v1717, %v1375
    %v1722 = vmul.f32 %v1715, %v1720
    %v1723 = vadd.f32 %v1721, %v1722
    %v1724 = vtanh.pop %v1723
    %v1725 = vmul.f32 %v1719, %v1724
    %v1726 = vmul.f32 %v1725, %v1725
    %1727 = vadd.xlane.f32.xlu0 %v1726
    %v1728 = vpop.xlane.xlu0 %1727
    %v1729 = vrsqrt.pop %v1728
    %v1730 = vmul.f32 %v1728, %v1729
    %vm1731 = vcmp.eq.f32.partialorder %v1728, inf
    %v1732 = vsel %vm1731, %v1728, %v1730
    %vm1733 = vcmp.eq.f32.partialorder %v1728, 0.0
    %v1734 = vand.u32 %v1728, 2147483648
    %v1735 = vsel %vm1733, %v1734, %v1732
    %v1736 = vmax.f32 %v1735, 1e-12
    %v1737 = vrcp.pop %v1736
    %v1738 = vmul.f32 %v1725, %v1737
    %v1739 = vadd.f32 %v1391, %v1738
    %s1740 = scalar_lea.vmem [#allocation2], 32
    %v1741 = vld [vmem:[%s1740] sm:$0xff]
    %1742 = vmatprep.subr.mxu0 %v147
    %1743 = vmatpush1.msra.mxu0 %v146
    %1744 = vmatprep.subr.mxu0 %v143
    %1745 = vmatpush1.msra.mxu0 %v142
    %1746 = vmatprep.subr.mxu0 %v139
    %1747 = vmatpush1.msra.mxu0 %v138
    %1748 = vmatprep.subr.mxu0 %v135
    %1749 = vmatpush1.msra.mxu0 %v134
    %1750 = vmatprep.subr.mxu0 %v131
    %1751 = vmatpush1.msra.mxu0 %v130
    %1752 = vmatprep.subr.mxu0 %v127
    %1753 = vmatpush1.msra.mxu0 %v126
    %1754 = vmatprep.subr.mxu0 %v123
    %1755 = vmatpush1.msra.mxu0 %v122
    %1756 = vmatprep.subr.mxu0 %v119
    %1757 = vmatpush1.msra.mxu0 %v118
    %1758 = vmatprep.subr.mxu0 %v115
    %1759 = vmatpush1.msra.mxu0 %v114
    %1760 = vmatprep.subr.mxu0 %v111
    %1761 = vmatpush1.msra.mxu0 %v110
    %1762 = vmatprep.subr.mxu0 %v107
    %1763 = vmatpush1.msra.mxu0 %v106
    %1764 = vmatprep.subr.mxu0 %v103
    %1765 = vmatpush1.msra.mxu0 %v102
    %1766 = vmatprep.subr.mxu0 %v99
    %1767 = vmatpush1.msra.mxu0 %v98
    %1768 = vmatprep.subr.mxu0 %v95
    %1769 = vmatpush1.msra.mxu0 %v94
    %1770 = vmatprep.subr.mxu0 %v91
    %1771 = vmatpush1.msra.mxu0 %v90
    %1772 = vmatprep.subr.mxu0 %v87
    %1773 = vmatpush1.msra.mxu0 %v86
    %1774 = vmatprep.subr.mxu0 %v211
    %1775 = vmatpush2.msra.mxu0 %v210
    %1776 = vmatprep.subr.mxu0 %v207
    %1777 = vmatpush2.msra.mxu0 %v206
    %1778 = vmatprep.subr.mxu0 %v203
    %1779 = vmatpush2.msra.mxu0 %v202
    %1780 = vmatprep.subr.mxu0 %v199
    %1781 = vmatpush2.msra.mxu0 %v198
    %1782 = vmatprep.subr.mxu0 %v195
    %1783 = vmatpush2.msra.mxu0 %v194
    %1784 = vmatprep.subr.mxu0 %v191
    %1785 = vmatpush2.msra.mxu0 %v190
    %1786 = vmatprep.subr.mxu0 %v187
    %1787 = vmatpush2.msra.mxu0 %v186
    %1788 = vmatprep.subr.mxu0 %v183
    %1789 = vmatpush2.msra.mxu0 %v182
    %1790 = vmatprep.subr.mxu0 %v179
    %1791 = vmatpush2.msra.mxu0 %v178
    %1792 = vmatprep.subr.mxu0 %v175
    %1793 = vmatpush2.msra.mxu0 %v174
    %1794 = vmatprep.subr.mxu0 %v171
    %1795 = vmatpush2.msra.mxu0 %v170
    %1796 = vmatprep.subr.mxu0 %v167
    %1797 = vmatpush2.msra.mxu0 %v166
    %1798 = vmatprep.subr.mxu0 %v163
    %1799 = vmatpush2.msra.mxu0 %v162
    %1800 = vmatprep.subr.mxu0 %v159
    %1801 = vmatpush2.msra.mxu0 %v158
    %1802 = vmatprep.subr.mxu0 %v155
    %1803 = vmatpush2.msra.mxu0 %v154
    %1804 = vmatprep.subr.mxu0 %v151
    %1805 = vmatpush2.msra.mxu0 %v150
    %1806 = vmatprep.mubr.f32.mxu0 %v1559
    %1807 = vmatmul.mubr.f32.gmra.mxu0 %v1741
    %v1808 = vpop.f32.mrf.mxu0
    %v1809 = vadd.f32 %v214, %v1808
    %v1810 = vpop.f32.mrf.mxu0
    %v1811 = vadd.f32 %v215, %v1810
    %1812 = vdwg.mxu0
    %1813 = vmatprep.subr.mxu0 %v149
    %1814 = vmatpush1.msra.mxu0 %v148
    %1815 = vmatprep.subr.mxu0 %v145
    %1816 = vmatpush1.msra.mxu0 %v144
    %1817 = vmatprep.subr.mxu0 %v141
    %1818 = vmatpush1.msra.mxu0 %v140
    %1819 = vmatprep.subr.mxu0 %v137
    %1820 = vmatpush1.msra.mxu0 %v136
    %1821 = vmatprep.subr.mxu0 %v133
    %1822 = vmatpush1.msra.mxu0 %v132
    %1823 = vmatprep.subr.mxu0 %v129
    %1824 = vmatpush1.msra.mxu0 %v128
    %1825 = vmatprep.subr.mxu0 %v125
    %1826 = vmatpush1.msra.mxu0 %v124
    %1827 = vmatprep.subr.mxu0 %v121
    %1828 = vmatpush1.msra.mxu0 %v120
    %1829 = vmatprep.subr.mxu0 %v117
    %1830 = vmatpush1.msra.mxu0 %v116
    %1831 = vmatprep.subr.mxu0 %v113
    %1832 = vmatpush1.msra.mxu0 %v112
    %1833 = vmatprep.subr.mxu0 %v109
    %1834 = vmatpush1.msra.mxu0 %v108
    %1835 = vmatprep.subr.mxu0 %v105
    %1836 = vmatpush1.msra.mxu0 %v104
    %1837 = vmatprep.subr.mxu0 %v101
    %1838 = vmatpush1.msra.mxu0 %v100
    %1839 = vmatprep.subr.mxu0 %v97
    %1840 = vmatpush1.msra.mxu0 %v96
    %1841 = vmatprep.subr.mxu0 %v93
    %1842 = vmatpush1.msra.mxu0 %v92
    %1843 = vmatprep.subr.mxu0 %v89
    %1844 = vmatpush1.msra.mxu0 %v88
    %1845 = vmatprep.subr.mxu0 %v213
    %1846 = vmatpush2.msra.mxu0 %v212
    %1847 = vmatprep.subr.mxu0 %v209
    %1848 = vmatpush2.msra.mxu0 %v208
    %1849 = vmatprep.subr.mxu0 %v205
    %1850 = vmatpush2.msra.mxu0 %v204
    %1851 = vmatprep.subr.mxu0 %v201
    %1852 = vmatpush2.msra.mxu0 %v200
    %1853 = vmatprep.subr.mxu0 %v197
    %1854 = vmatpush2.msra.mxu0 %v196
    %1855 = vmatprep.subr.mxu0 %v193
    %1856 = vmatpush2.msra.mxu0 %v192
    %1857 = vmatprep.subr.mxu0 %v189
    %1858 = vmatpush2.msra.mxu0 %v188
    %1859 = vmatprep.subr.mxu0 %v185
    %1860 = vmatpush2.msra.mxu0 %v184
    %1861 = vmatprep.subr.mxu0 %v181
    %1862 = vmatpush2.msra.mxu0 %v180
    %1863 = vmatprep.subr.mxu0 %v177
    %1864 = vmatpush2.msra.mxu0 %v176
    %1865 = vmatprep.subr.mxu0 %v173
    %1866 = vmatpush2.msra.mxu0 %v172
    %1867 = vmatprep.subr.mxu0 %v169
    %1868 = vmatpush2.msra.mxu0 %v168
    %1869 = vmatprep.subr.mxu0 %v165
    %1870 = vmatpush2.msra.mxu0 %v164
    %1871 = vmatprep.subr.mxu0 %v161
    %1872 = vmatpush2.msra.mxu0 %v160
    %1873 = vmatprep.subr.mxu0 %v157
    %1874 = vmatpush2.msra.mxu0 %v156
    %1875 = vmatprep.subr.mxu0 %v153
    %1876 = vmatpush2.msra.mxu0 %v152
    %1877 = vmatprep.mubr.f32.mxu0 %v1559
    %1878 = vmatmul.mubr.f32.gmra.mxu0 %v1741
    %v1879 = vpop.f32.mrf.mxu0
    %v1880 = vadd.f32 %v216, %v1879
    %v1881 = vpop.f32.mrf.mxu0
    %v1882 = vadd.f32 %v217, %v1881
    %1883 = vdwg.mxu0
    %v1884 = vxor.u32 %v1809, 2147483648
    %v1885 = vxor.u32 %v1811, 2147483648
    %v1886 = vxor.u32 %v1880, 2147483648
    %v1887 = vmul.f32 %v1884, 1.442695
    %v1888 = vpow.pop %v1887
    %v1889 = vmul.f32 %v1885, 1.442695
    %v1890 = vpow.pop %v1889
    %v1891 = vmul.f32 %v1886, 1.442695
    %v1892 = vpow.pop %v1891
    %v1893 = vadd.f32 %v1888, 1.0
    %v1894 = vadd.f32 %v1890, 1.0
    %v1895 = vadd.f32 %v1892, 1.0
    %v1896 = vrcp.pop %v1893
    %v1897 = vmul.f32 1.0, %v1896
    %v1898 = vrcp.pop %v1894
    %v1899 = vmul.f32 1.0, %v1898
    %v1900 = vrcp.pop %v1895
    %v1901 = vmul.f32 1.0, %v1900
    %v1902 = vtanh.pop %v1882
    %v1903 = vmul.f32 %v1899, %v1557
    %v1904 = vmul.f32 %v1897, %v1902
    %v1905 = vadd.f32 %v1903, %v1904
    %v1906 = vtanh.pop %v1905
    %v1907 = vmul.f32 %v1901, %v1906
    %1908 = vmatprep.subr.mxu0 %v445
    %1909 = vmatpush1.msra.mxu0 %v444
    %1910 = vmatprep.subr.mxu0 %v441
    %1911 = vmatpush1.msra.mxu0 %v440
    %1912 = vmatprep.subr.mxu0 %v437
    %1913 = vmatpush1.msra.mxu0 %v436
    %1914 = vmatprep.subr.mxu0 %v433
    %1915 = vmatpush1.msra.mxu0 %v432
    %1916 = vmatprep.subr.mxu0 %v429
    %1917 = vmatpush1.msra.mxu0 %v428
    %1918 = vmatprep.subr.mxu0 %v425
    %1919 = vmatpush1.msra.mxu0 %v424
    %1920 = vmatprep.subr.mxu0 %v421
    %1921 = vmatpush1.msra.mxu0 %v420
    %1922 = vmatprep.subr.mxu0 %v417
    %1923 = vmatpush1.msra.mxu0 %v416
    %1924 = vmatprep.subr.mxu0 %v413
    %1925 = vmatpush1.msra.mxu0 %v412
    %1926 = vmatprep.subr.mxu0 %v409
    %1927 = vmatpush1.msra.mxu0 %v408
    %1928 = vmatprep.subr.mxu0 %v405
    %1929 = vmatpush1.msra.mxu0 %v404
    %1930 = vmatprep.subr.mxu0 %v401
    %1931 = vmatpush1.msra.mxu0 %v400
    %1932 = vmatprep.subr.mxu0 %v397
    %1933 = vmatpush1.msra.mxu0 %v396
    %1934 = vmatprep.subr.mxu0 %v393
    %1935 = vmatpush1.msra.mxu0 %v392
    %1936 = vmatprep.subr.mxu0 %v389
    %1937 = vmatpush1.msra.mxu0 %v388
    %1938 = vmatprep.subr.mxu0 %v385
    %1939 = vmatpush1.msra.mxu0 %v384
    %1940 = vmatprep.subr.mxu0 %v509
    %1941 = vmatpush2.msra.mxu0 %v508
    %1942 = vmatprep.subr.mxu0 %v505
    %1943 = vmatpush2.msra.mxu0 %v504
    %1944 = vmatprep.subr.mxu0 %v501
    %1945 = vmatpush2.msra.mxu0 %v500
    %1946 = vmatprep.subr.mxu0 %v497
    %1947 = vmatpush2.msra.mxu0 %v496
    %1948 = vmatprep.subr.mxu0 %v493
    %1949 = vmatpush2.msra.mxu0 %v492
    %1950 = vmatprep.subr.mxu0 %v489
    %1951 = vmatpush2.msra.mxu0 %v488
    %1952 = vmatprep.subr.mxu0 %v485
    %1953 = vmatpush2.msra.mxu0 %v484
    %1954 = vmatprep.subr.mxu0 %v481
    %1955 = vmatpush2.msra.mxu0 %v480
    %1956 = vmatprep.subr.mxu0 %v477
    %1957 = vmatpush2.msra.mxu0 %v476
    %1958 = vmatprep.subr.mxu0 %v473
    %1959 = vmatpush2.msra.mxu0 %v472
    %1960 = vmatprep.subr.mxu0 %v469
    %1961 = vmatpush2.msra.mxu0 %v468
    %1962 = vmatprep.subr.mxu0 %v465
    %1963 = vmatpush2.msra.mxu0 %v464
    %1964 = vmatprep.subr.mxu0 %v461
    %1965 = vmatpush2.msra.mxu0 %v460
    %1966 = vmatprep.subr.mxu0 %v457
    %1967 = vmatpush2.msra.mxu0 %v456
    %1968 = vmatprep.subr.mxu0 %v453
    %1969 = vmatpush2.msra.mxu0 %v452
    %1970 = vmatprep.subr.mxu0 %v449
    %1971 = vmatpush2.msra.mxu0 %v448
    %1972 = vmatprep.mubr.f32.mxu0 %v1725
    %1973 = vmatmul.mubr.f32.gmra.mxu0 %v1907
    %v1974 = vpop.f32.mrf.mxu0
    %v1975 = vadd.f32 %v512, %v1974
    %v1976 = vpop.f32.mrf.mxu0
    %v1977 = vadd.f32 %v513, %v1976
    %1978 = vdwg.mxu0
    %1979 = vmatprep.subr.mxu0 %v447
    %1980 = vmatpush1.msra.mxu0 %v446
    %1981 = vmatprep.subr.mxu0 %v443
    %1982 = vmatpush1.msra.mxu0 %v442
    %1983 = vmatprep.subr.mxu0 %v439
    %1984 = vmatpush1.msra.mxu0 %v438
    %1985 = vmatprep.subr.mxu0 %v435
    %1986 = vmatpush1.msra.mxu0 %v434
    %1987 = vmatprep.subr.mxu0 %v431
    %1988 = vmatpush1.msra.mxu0 %v430
    %1989 = vmatprep.subr.mxu0 %v427
    %1990 = vmatpush1.msra.mxu0 %v426
    %1991 = vmatprep.subr.mxu0 %v423
    %1992 = vmatpush1.msra.mxu0 %v422
    %1993 = vmatprep.subr.mxu0 %v419
    %1994 = vmatpush1.msra.mxu0 %v418
    %1995 = vmatprep.subr.mxu0 %v415
    %1996 = vmatpush1.msra.mxu0 %v414
    %1997 = vmatprep.subr.mxu0 %v411
    %1998 = vmatpush1.msra.mxu0 %v410
    %1999 = vmatprep.subr.mxu0 %v407
    %2000 = vmatpush1.msra.mxu0 %v406
    %2001 = vmatprep.subr.mxu0 %v403
    %2002 = vmatpush1.msra.mxu0 %v402
    %2003 = vmatprep.subr.mxu0 %v399
    %2004 = vmatpush1.msra.mxu0 %v398
    %2005 = vmatprep.subr.mxu0 %v395
    %2006 = vmatpush1.msra.mxu0 %v394
    %2007 = vmatprep.subr.mxu0 %v391
    %2008 = vmatpush1.msra.mxu0 %v390
    %2009 = vmatprep.subr.mxu0 %v387
    %2010 = vmatpush1.msra.mxu0 %v386
    %2011 = vmatprep.subr.mxu0 %v511
    %2012 = vmatpush2.msra.mxu0 %v510
    %2013 = vmatprep.subr.mxu0 %v507
    %2014 = vmatpush2.msra.mxu0 %v506
    %2015 = vmatprep.subr.mxu0 %v503
    %2016 = vmatpush2.msra.mxu0 %v502
    %2017 = vmatprep.subr.mxu0 %v499
    %2018 = vmatpush2.msra.mxu0 %v498
    %2019 = vmatprep.subr.mxu0 %v495
    %2020 = vmatpush2.msra.mxu0 %v494
    %2021 = vmatprep.subr.mxu0 %v491
    %2022 = vmatpush2.msra.mxu0 %v490
    %2023 = vmatprep.subr.mxu0 %v487
    %2024 = vmatpush2.msra.mxu0 %v486
    %2025 = vmatprep.subr.mxu0 %v483
    %2026 = vmatpush2.msra.mxu0 %v482
    %2027 = vmatprep.subr.mxu0 %v479
    %2028 = vmatpush2.msra.mxu0 %v478
    %2029 = vmatprep.subr.mxu0 %v475
    %2030 = vmatpush2.msra.mxu0 %v474
    %2031 = vmatprep.subr.mxu0 %v471
    %2032 = vmatpush2.msra.mxu0 %v470
    %2033 = vmatprep.subr.mxu0 %v467
    %2034 = vmatpush2.msra.mxu0 %v466
    %2035 = vmatprep.subr.mxu0 %v463
    %2036 = vmatpush2.msra.mxu0 %v462
    %2037 = vmatprep.subr.mxu0 %v459
    %2038 = vmatpush2.msra.mxu0 %v458
    %2039 = vmatprep.subr.mxu0 %v455
    %2040 = vmatpush2.msra.mxu0 %v454
    %2041 = vmatprep.subr.mxu0 %v451
    %2042 = vmatpush2.msra.mxu0 %v450
    %2043 = vmatprep.mubr.f32.mxu0 %v1725
    %2044 = vmatmul.mubr.f32.gmra.mxu0 %v1907
    %v2045 = vpop.f32.mrf.mxu0
    %v2046 = vadd.f32 %v514, %v2045
    %v2047 = vpop.f32.mrf.mxu0
    %v2048 = vadd.f32 %v515, %v2047
    %2049 = vdwg.mxu0
    %v2050 = vxor.u32 %v1975, 2147483648
    %v2051 = vxor.u32 %v1977, 2147483648
    %v2052 = vxor.u32 %v2046, 2147483648
    %v2053 = vmul.f32 %v2050, 1.442695
    %v2054 = vpow.pop %v2053
    %v2055 = vmul.f32 %v2051, 1.442695
    %v2056 = vpow.pop %v2055
    %v2057 = vmul.f32 %v2052, 1.442695
    %v2058 = vpow.pop %v2057
    %v2059 = vadd.f32 %v2054, 1.0
    %v2060 = vadd.f32 %v2056, 1.0
    %v2061 = vadd.f32 %v2058, 1.0
    %v2062 = vrcp.pop %v2059
    %v2063 = vmul.f32 1.0, %v2062
    %v2064 = vrcp.pop %v2060
    %v2065 = vmul.f32 1.0, %v2064
    %v2066 = vrcp.pop %v2061
    %v2067 = vmul.f32 1.0, %v2066
    %v2068 = vtanh.pop %v2048
    %v2069 = vmul.f32 %v2065, %v1723
    %v2070 = vmul.f32 %v2063, %v2068
    %v2071 = vadd.f32 %v2069, %v2070
    %v2072 = vtanh.pop %v2071
    %v2073 = vmul.f32 %v2067, %v2072
    %v2074 = vmul.f32 %v2073, %v2073
    %2075 = vadd.xlane.f32.xlu0 %v2074
    %v2076 = vpop.xlane.xlu0 %2075
    %v2077 = vrsqrt.pop %v2076
    %v2078 = vmul.f32 %v2076, %v2077
    %vm2079 = vcmp.eq.f32.partialorder %v2076, inf
    %v2080 = vsel %vm2079, %v2076, %v2078
    %vm2081 = vcmp.eq.f32.partialorder %v2076, 0.0
    %v2082 = vand.u32 %v2076, 2147483648
    %v2083 = vsel %vm2081, %v2082, %v2080
    %v2084 = vmax.f32 %v2083, 1e-12
    %v2085 = vrcp.pop %v2084
    %v2086 = vmul.f32 %v2073, %v2085
    %v2087 = vadd.f32 %v1739, %v2086
    %s2088 = scalar_lea.vmem [#allocation2], 40
    %v2089 = vld [vmem:[%s2088] sm:$0xff]
    %2090 = vmatprep.subr.mxu0 %v147
    %2091 = vmatpush1.msra.mxu0 %v146
    %2092 = vmatprep.subr.mxu0 %v143
    %2093 = vmatpush1.msra.mxu0 %v142
    %2094 = vmatprep.subr.mxu0 %v139
    %2095 = vmatpush1.msra.mxu0 %v138
    %2096 = vmatprep.subr.mxu0 %v135
    %2097 = vmatpush1.msra.mxu0 %v134
    %2098 = vmatprep.subr.mxu0 %v131
    %2099 = vmatpush1.msra.mxu0 %v130
    %2100 = vmatprep.subr.mxu0 %v127
    %2101 = vmatpush1.msra.mxu0 %v126
    %2102 = vmatprep.subr.mxu0 %v123
    %2103 = vmatpush1.msra.mxu0 %v122
    %2104 = vmatprep.subr.mxu0 %v119
    %2105 = vmatpush1.msra.mxu0 %v118
    %2106 = vmatprep.subr.mxu0 %v115
    %2107 = vmatpush1.msra.mxu0 %v114
    %2108 = vmatprep.subr.mxu0 %v111
    %2109 = vmatpush1.msra.mxu0 %v110
    %2110 = vmatprep.subr.mxu0 %v107
    %2111 = vmatpush1.msra.mxu0 %v106
    %2112 = vmatprep.subr.mxu0 %v103
    %2113 = vmatpush1.msra.mxu0 %v102
    %2114 = vmatprep.subr.mxu0 %v99
    %2115 = vmatpush1.msra.mxu0 %v98
    %2116 = vmatprep.subr.mxu0 %v95
    %2117 = vmatpush1.msra.mxu0 %v94
    %2118 = vmatprep.subr.mxu0 %v91
    %2119 = vmatpush1.msra.mxu0 %v90
    %2120 = vmatprep.subr.mxu0 %v87
    %2121 = vmatpush1.msra.mxu0 %v86
    %2122 = vmatprep.subr.mxu0 %v211
    %2123 = vmatpush2.msra.mxu0 %v210
    %2124 = vmatprep.subr.mxu0 %v207
    %2125 = vmatpush2.msra.mxu0 %v206
    %2126 = vmatprep.subr.mxu0 %v203
    %2127 = vmatpush2.msra.mxu0 %v202
    %2128 = vmatprep.subr.mxu0 %v199
    %2129 = vmatpush2.msra.mxu0 %v198
    %2130 = vmatprep.subr.mxu0 %v195
    %2131 = vmatpush2.msra.mxu0 %v194
    %2132 = vmatprep.subr.mxu0 %v191
    %2133 = vmatpush2.msra.mxu0 %v190
    %2134 = vmatprep.subr.mxu0 %v187
    %2135 = vmatpush2.msra.mxu0 %v186
    %2136 = vmatprep.subr.mxu0 %v183
    %2137 = vmatpush2.msra.mxu0 %v182
    %2138 = vmatprep.subr.mxu0 %v179
    %2139 = vmatpush2.msra.mxu0 %v178
    %2140 = vmatprep.subr.mxu0 %v175
    %2141 = vmatpush2.msra.mxu0 %v174
    %2142 = vmatprep.subr.mxu0 %v171
    %2143 = vmatpush2.msra.mxu0 %v170
    %2144 = vmatprep.subr.mxu0 %v167
    %2145 = vmatpush2.msra.mxu0 %v166
    %2146 = vmatprep.subr.mxu0 %v163
    %2147 = vmatpush2.msra.mxu0 %v162
    %2148 = vmatprep.subr.mxu0 %v159
    %2149 = vmatpush2.msra.mxu0 %v158
    %2150 = vmatprep.subr.mxu0 %v155
    %2151 = vmatpush2.msra.mxu0 %v154
    %2152 = vmatprep.subr.mxu0 %v151
    %2153 = vmatpush2.msra.mxu0 %v150
    %2154 = vmatprep.mubr.f32.mxu0 %v1907
    %2155 = vmatmul.mubr.f32.gmra.mxu0 %v2089
    %v2156 = vpop.f32.mrf.mxu0
    %v2157 = vadd.f32 %v214, %v2156
    %v2158 = vpop.f32.mrf.mxu0
    %v2159 = vadd.f32 %v215, %v2158
    %2160 = vdwg.mxu0
    %2161 = vmatprep.subr.mxu0 %v149
    %2162 = vmatpush1.msra.mxu0 %v148
    %2163 = vmatprep.subr.mxu0 %v145
    %2164 = vmatpush1.msra.mxu0 %v144
    %2165 = vmatprep.subr.mxu0 %v141
    %2166 = vmatpush1.msra.mxu0 %v140
    %2167 = vmatprep.subr.mxu0 %v137
    %2168 = vmatpush1.msra.mxu0 %v136
    %2169 = vmatprep.subr.mxu0 %v133
    %2170 = vmatpush1.msra.mxu0 %v132
    %2171 = vmatprep.subr.mxu0 %v129
    %2172 = vmatpush1.msra.mxu0 %v128
    %2173 = vmatprep.subr.mxu0 %v125
    %2174 = vmatpush1.msra.mxu0 %v124
    %2175 = vmatprep.subr.mxu0 %v121
    %2176 = vmatpush1.msra.mxu0 %v120
    %2177 = vmatprep.subr.mxu0 %v117
    %2178 = vmatpush1.msra.mxu0 %v116
    %2179 = vmatprep.subr.mxu0 %v113
    %2180 = vmatpush1.msra.mxu0 %v112
    %2181 = vmatprep.subr.mxu0 %v109
    %2182 = vmatpush1.msra.mxu0 %v108
    %2183 = vmatprep.subr.mxu0 %v105
    %2184 = vmatpush1.msra.mxu0 %v104
    %2185 = vmatprep.subr.mxu0 %v101
    %2186 = vmatpush1.msra.mxu0 %v100
    %2187 = vmatprep.subr.mxu0 %v97
    %2188 = vmatpush1.msra.mxu0 %v96
    %2189 = vmatprep.subr.mxu0 %v93
    %2190 = vmatpush1.msra.mxu0 %v92
    %2191 = vmatprep.subr.mxu0 %v89
    %2192 = vmatpush1.msra.mxu0 %v88
    %2193 = vmatprep.subr.mxu0 %v213
    %2194 = vmatpush2.msra.mxu0 %v212
    %2195 = vmatprep.subr.mxu0 %v209
    %2196 = vmatpush2.msra.mxu0 %v208
    %2197 = vmatprep.subr.mxu0 %v205
    %2198 = vmatpush2.msra.mxu0 %v204
    %2199 = vmatprep.subr.mxu0 %v201
    %2200 = vmatpush2.msra.mxu0 %v200
    %2201 = vmatprep.subr.mxu0 %v197
    %2202 = vmatpush2.msra.mxu0 %v196
    %2203 = vmatprep.subr.mxu0 %v193
    %2204 = vmatpush2.msra.mxu0 %v192
    %2205 = vmatprep.subr.mxu0 %v189
    %2206 = vmatpush2.msra.mxu0 %v188
    %2207 = vmatprep.subr.mxu0 %v185
    %2208 = vmatpush2.msra.mxu0 %v184
    %2209 = vmatprep.subr.mxu0 %v181
    %2210 = vmatpush2.msra.mxu0 %v180
    %2211 = vmatprep.subr.mxu0 %v177
    %2212 = vmatpush2.msra.mxu0 %v176
    %2213 = vmatprep.subr.mxu0 %v173
    %2214 = vmatpush2.msra.mxu0 %v172
    %2215 = vmatprep.subr.mxu0 %v169
    %2216 = vmatpush2.msra.mxu0 %v168
    %2217 = vmatprep.subr.mxu0 %v165
    %2218 = vmatpush2.msra.mxu0 %v164
    %2219 = vmatprep.subr.mxu0 %v161
    %2220 = vmatpush2.msra.mxu0 %v160
    %2221 = vmatprep.subr.mxu0 %v157
    %2222 = vmatpush2.msra.mxu0 %v156
    %2223 = vmatprep.subr.mxu0 %v153
    %2224 = vmatpush2.msra.mxu0 %v152
    %2225 = vmatprep.mubr.f32.mxu0 %v1907
    %2226 = vmatmul.mubr.f32.gmra.mxu0 %v2089
    %v2227 = vpop.f32.mrf.mxu0
    %v2228 = vadd.f32 %v216, %v2227
    %v2229 = vpop.f32.mrf.mxu0
    %v2230 = vadd.f32 %v217, %v2229
    %2231 = vdwg.mxu0
    %v2232 = vxor.u32 %v2157, 2147483648
    %v2233 = vxor.u32 %v2159, 2147483648
    %v2234 = vxor.u32 %v2228, 2147483648
    %v2235 = vmul.f32 %v2232, 1.442695
    %v2236 = vpow.pop %v2235
    %v2237 = vmul.f32 %v2233, 1.442695
    %v2238 = vpow.pop %v2237
    %v2239 = vmul.f32 %v2234, 1.442695
    %v2240 = vpow.pop %v2239
    %v2241 = vadd.f32 %v2236, 1.0
    %v2242 = vadd.f32 %v2238, 1.0
    %v2243 = vadd.f32 %v2240, 1.0
    %v2244 = vrcp.pop %v2241
    %v2245 = vmul.f32 1.0, %v2244
    %v2246 = vrcp.pop %v2242
    %v2247 = vmul.f32 1.0, %v2246
    %v2248 = vrcp.pop %v2243
    %v2249 = vmul.f32 1.0, %v2248
    %v2250 = vtanh.pop %v2230
    %v2251 = vmul.f32 %v2247, %v1905
    %v2252 = vmul.f32 %v2245, %v2250
    %v2253 = vadd.f32 %v2251, %v2252
    %v2254 = vtanh.pop %v2253
    %v2255 = vmul.f32 %v2249, %v2254
    %2256 = vmatprep.subr.mxu0 %v445
    %2257 = vmatpush1.msra.mxu0 %v444
    %2258 = vmatprep.subr.mxu0 %v441
    %2259 = vmatpush1.msra.mxu0 %v440
    %2260 = vmatprep.subr.mxu0 %v437
    %2261 = vmatpush1.msra.mxu0 %v436
    %2262 = vmatprep.subr.mxu0 %v433
    %2263 = vmatpush1.msra.mxu0 %v432
    %2264 = vmatprep.subr.mxu0 %v429
    %2265 = vmatpush1.msra.mxu0 %v428
    %2266 = vmatprep.subr.mxu0 %v425
    %2267 = vmatpush1.msra.mxu0 %v424
    %2268 = vmatprep.subr.mxu0 %v421
    %2269 = vmatpush1.msra.mxu0 %v420
    %2270 = vmatprep.subr.mxu0 %v417
    %2271 = vmatpush1.msra.mxu0 %v416
    %2272 = vmatprep.subr.mxu0 %v413
    %2273 = vmatpush1.msra.mxu0 %v412
    %2274 = vmatprep.subr.mxu0 %v409
    %2275 = vmatpush1.msra.mxu0 %v408
    %2276 = vmatprep.subr.mxu0 %v405
    %2277 = vmatpush1.msra.mxu0 %v404
    %2278 = vmatprep.subr.mxu0 %v401
    %2279 = vmatpush1.msra.mxu0 %v400
    %2280 = vmatprep.subr.mxu0 %v397
    %2281 = vmatpush1.msra.mxu0 %v396
    %2282 = vmatprep.subr.mxu0 %v393
    %2283 = vmatpush1.msra.mxu0 %v392
    %2284 = vmatprep.subr.mxu0 %v389
    %2285 = vmatpush1.msra.mxu0 %v388
    %2286 = vmatprep.subr.mxu0 %v385
    %2287 = vmatpush1.msra.mxu0 %v384
    %2288 = vmatprep.subr.mxu0 %v509
    %2289 = vmatpush2.msra.mxu0 %v508
    %2290 = vmatprep.subr.mxu0 %v505
    %2291 = vmatpush2.msra.mxu0 %v504
    %2292 = vmatprep.subr.mxu0 %v501
    %2293 = vmatpush2.msra.mxu0 %v500
    %2294 = vmatprep.subr.mxu0 %v497
    %2295 = vmatpush2.msra.mxu0 %v496
    %2296 = vmatprep.subr.mxu0 %v493
    %2297 = vmatpush2.msra.mxu0 %v492
    %2298 = vmatprep.subr.mxu0 %v489
    %2299 = vmatpush2.msra.mxu0 %v488
    %2300 = vmatprep.subr.mxu0 %v485
    %2301 = vmatpush2.msra.mxu0 %v484
    %2302 = vmatprep.subr.mxu0 %v481
    %2303 = vmatpush2.msra.mxu0 %v480
    %2304 = vmatprep.subr.mxu0 %v477
    %2305 = vmatpush2.msra.mxu0 %v476
    %2306 = vmatprep.subr.mxu0 %v473
    %2307 = vmatpush2.msra.mxu0 %v472
    %2308 = vmatprep.subr.mxu0 %v469
    %2309 = vmatpush2.msra.mxu0 %v468
    %2310 = vmatprep.subr.mxu0 %v465
    %2311 = vmatpush2.msra.mxu0 %v464
    %2312 = vmatprep.subr.mxu0 %v461
    %2313 = vmatpush2.msra.mxu0 %v460
    %2314 = vmatprep.subr.mxu0 %v457
    %2315 = vmatpush2.msra.mxu0 %v456
    %2316 = vmatprep.subr.mxu0 %v453
    %2317 = vmatpush2.msra.mxu0 %v452
    %2318 = vmatprep.subr.mxu0 %v449
    %2319 = vmatpush2.msra.mxu0 %v448
    %2320 = vmatprep.mubr.f32.mxu0 %v2073
    %2321 = vmatmul.mubr.f32.gmra.mxu0 %v2255
    %v2322 = vpop.f32.mrf.mxu0
    %v2323 = vadd.f32 %v512, %v2322
    %v2324 = vpop.f32.mrf.mxu0
    %v2325 = vadd.f32 %v513, %v2324
    %2326 = vdwg.mxu0
    %2327 = vmatprep.subr.mxu0 %v447
    %2328 = vmatpush1.msra.mxu0 %v446
    %2329 = vmatprep.subr.mxu0 %v443
    %2330 = vmatpush1.msra.mxu0 %v442
    %2331 = vmatprep.subr.mxu0 %v439
    %2332 = vmatpush1.msra.mxu0 %v438
    %2333 = vmatprep.subr.mxu0 %v435
    %2334 = vmatpush1.msra.mxu0 %v434
    %2335 = vmatprep.subr.mxu0 %v431
    %2336 = vmatpush1.msra.mxu0 %v430
    %2337 = vmatprep.subr.mxu0 %v427
    %2338 = vmatpush1.msra.mxu0 %v426
    %2339 = vmatprep.subr.mxu0 %v423
    %2340 = vmatpush1.msra.mxu0 %v422
    %2341 = vmatprep.subr.mxu0 %v419
    %2342 = vmatpush1.msra.mxu0 %v418
    %2343 = vmatprep.subr.mxu0 %v415
    %2344 = vmatpush1.msra.mxu0 %v414
    %2345 = vmatprep.subr.mxu0 %v411
    %2346 = vmatpush1.msra.mxu0 %v410
    %2347 = vmatprep.subr.mxu0 %v407
    %2348 = vmatpush1.msra.mxu0 %v406
    %2349 = vmatprep.subr.mxu0 %v403
    %2350 = vmatpush1.msra.mxu0 %v402
    %2351 = vmatprep.subr.mxu0 %v399
    %2352 = vmatpush1.msra.mxu0 %v398
    %2353 = vmatprep.subr.mxu0 %v395
    %2354 = vmatpush1.msra.mxu0 %v394
    %2355 = vmatprep.subr.mxu0 %v391
    %2356 = vmatpush1.msra.mxu0 %v390
    %2357 = vmatprep.subr.mxu0 %v387
    %2358 = vmatpush1.msra.mxu0 %v386
    %2359 = vmatprep.subr.mxu0 %v511
    %2360 = vmatpush2.msra.mxu0 %v510
    %2361 = vmatprep.subr.mxu0 %v507
    %2362 = vmatpush2.msra.mxu0 %v506
    %2363 = vmatprep.subr.mxu0 %v503
    %2364 = vmatpush2.msra.mxu0 %v502
    %2365 = vmatprep.subr.mxu0 %v499
    %2366 = vmatpush2.msra.mxu0 %v498
    %2367 = vmatprep.subr.mxu0 %v495
    %2368 = vmatpush2.msra.mxu0 %v494
    %2369 = vmatprep.subr.mxu0 %v491
    %2370 = vmatpush2.msra.mxu0 %v490
    %2371 = vmatprep.subr.mxu0 %v487
    %2372 = vmatpush2.msra.mxu0 %v486
    %2373 = vmatprep.subr.mxu0 %v483
    %2374 = vmatpush2.msra.mxu0 %v482
    %2375 = vmatprep.subr.mxu0 %v479
    %2376 = vmatpush2.msra.mxu0 %v478
    %2377 = vmatprep.subr.mxu0 %v475
    %2378 = vmatpush2.msra.mxu0 %v474
    %2379 = vmatprep.subr.mxu0 %v471
    %2380 = vmatpush2.msra.mxu0 %v470
    %2381 = vmatprep.subr.mxu0 %v467
    %2382 = vmatpush2.msra.mxu0 %v466
    %2383 = vmatprep.subr.mxu0 %v463
    %2384 = vmatpush2.msra.mxu0 %v462
    %2385 = vmatprep.subr.mxu0 %v459
    %2386 = vmatpush2.msra.mxu0 %v458
    %2387 = vmatprep.subr.mxu0 %v455
    %2388 = vmatpush2.msra.mxu0 %v454
    %2389 = vmatprep.subr.mxu0 %v451
    %2390 = vmatpush2.msra.mxu0 %v450
    %2391 = vmatprep.mubr.f32.mxu0 %v2073
    %2392 = vmatmul.mubr.f32.gmra.mxu0 %v2255
    %v2393 = vpop.f32.mrf.mxu0
    %v2394 = vadd.f32 %v514, %v2393
    %v2395 = vpop.f32.mrf.mxu0
    %v2396 = vadd.f32 %v515, %v2395
    %2397 = vdwg.mxu0
    %v2398 = vxor.u32 %v2323, 2147483648
    %v2399 = vxor.u32 %v2325, 2147483648
    %v2400 = vxor.u32 %v2394, 2147483648
    %v2401 = vmul.f32 %v2398, 1.442695
    %v2402 = vpow.pop %v2401
    %v2403 = vmul.f32 %v2399, 1.442695
    %v2404 = vpow.pop %v2403
    %v2405 = vmul.f32 %v2400, 1.442695
    %v2406 = vpow.pop %v2405
    %v2407 = vadd.f32 %v2402, 1.0
    %v2408 = vadd.f32 %v2404, 1.0
    %v2409 = vadd.f32 %v2406, 1.0
    %v2410 = vrcp.pop %v2407
    %v2411 = vmul.f32 1.0, %v2410
    %v2412 = vrcp.pop %v2408
    %v2413 = vmul.f32 1.0, %v2412
    %v2414 = vrcp.pop %v2409
    %v2415 = vmul.f32 1.0, %v2414
    %v2416 = vtanh.pop %v2396
    %v2417 = vmul.f32 %v2413, %v2071
    %v2418 = vmul.f32 %v2411, %v2416
    %v2419 = vadd.f32 %v2417, %v2418
    %v2420 = vtanh.pop %v2419
    %v2421 = vmul.f32 %v2415, %v2420
    %v2422 = vmul.f32 %v2421, %v2421
    %2423 = vadd.xlane.f32.xlu0 %v2422
    %v2424 = vpop.xlane.xlu0 %2423
    %v2425 = vrsqrt.pop %v2424
    %v2426 = vmul.f32 %v2424, %v2425
    %vm2427 = vcmp.eq.f32.partialorder %v2424, inf
    %v2428 = vsel %vm2427, %v2424, %v2426
    %vm2429 = vcmp.eq.f32.partialorder %v2424, 0.0
    %v2430 = vand.u32 %v2424, 2147483648
    %v2431 = vsel %vm2429, %v2430, %v2428
    %v2432 = vmax.f32 %v2431, 1e-12
    %v2433 = vrcp.pop %v2432
    %v2434 = vmul.f32 %v2421, %v2433
    %v2435 = vadd.f32 %v2087, %v2434
    %s2436 = scalar_lea.vmem [#allocation2], 48
    %v2437 = vld [vmem:[%s2436] sm:$0xff]
    %2438 = vmatprep.subr.mxu0 %v147
    %2439 = vmatpush1.msra.mxu0 %v146
    %2440 = vmatprep.subr.mxu0 %v143
    %2441 = vmatpush1.msra.mxu0 %v142
    %2442 = vmatprep.subr.mxu0 %v139
    %2443 = vmatpush1.msra.mxu0 %v138
    %2444 = vmatprep.subr.mxu0 %v135
    %2445 = vmatpush1.msra.mxu0 %v134
    %2446 = vmatprep.subr.mxu0 %v131
    %2447 = vmatpush1.msra.mxu0 %v130
    %2448 = vmatprep.subr.mxu0 %v127
    %2449 = vmatpush1.msra.mxu0 %v126
    %2450 = vmatprep.subr.mxu0 %v123
    %2451 = vmatpush1.msra.mxu0 %v122
    %2452 = vmatprep.subr.mxu0 %v119
    %2453 = vmatpush1.msra.mxu0 %v118
    %2454 = vmatprep.subr.mxu0 %v115
    %2455 = vmatpush1.msra.mxu0 %v114
    %2456 = vmatprep.subr.mxu0 %v111
    %2457 = vmatpush1.msra.mxu0 %v110
    %2458 = vmatprep.subr.mxu0 %v107
    %2459 = vmatpush1.msra.mxu0 %v106
    %2460 = vmatprep.subr.mxu0 %v103
    %2461 = vmatpush1.msra.mxu0 %v102
    %2462 = vmatprep.subr.mxu0 %v99
    %2463 = vmatpush1.msra.mxu0 %v98
    %2464 = vmatprep.subr.mxu0 %v95
    %2465 = vmatpush1.msra.mxu0 %v94
    %2466 = vmatprep.subr.mxu0 %v91
    %2467 = vmatpush1.msra.mxu0 %v90
    %2468 = vmatprep.subr.mxu0 %v87
    %2469 = vmatpush1.msra.mxu0 %v86
    %2470 = vmatprep.subr.mxu0 %v211
    %2471 = vmatpush2.msra.mxu0 %v210
    %2472 = vmatprep.subr.mxu0 %v207
    %2473 = vmatpush2.msra.mxu0 %v206
    %2474 = vmatprep.subr.mxu0 %v203
    %2475 = vmatpush2.msra.mxu0 %v202
    %2476 = vmatprep.subr.mxu0 %v199
    %2477 = vmatpush2.msra.mxu0 %v198
    %2478 = vmatprep.subr.mxu0 %v195
    %2479 = vmatpush2.msra.mxu0 %v194
    %2480 = vmatprep.subr.mxu0 %v191
    %2481 = vmatpush2.msra.mxu0 %v190
    %2482 = vmatprep.subr.mxu0 %v187
    %2483 = vmatpush2.msra.mxu0 %v186
    %2484 = vmatprep.subr.mxu0 %v183
    %2485 = vmatpush2.msra.mxu0 %v182
    %2486 = vmatprep.subr.mxu0 %v179
    %2487 = vmatpush2.msra.mxu0 %v178
    %2488 = vmatprep.subr.mxu0 %v175
    %2489 = vmatpush2.msra.mxu0 %v174
    %2490 = vmatprep.subr.mxu0 %v171
    %2491 = vmatpush2.msra.mxu0 %v170
    %2492 = vmatprep.subr.mxu0 %v167
    %2493 = vmatpush2.msra.mxu0 %v166
    %2494 = vmatprep.subr.mxu0 %v163
    %2495 = vmatpush2.msra.mxu0 %v162
    %2496 = vmatprep.subr.mxu0 %v159
    %2497 = vmatpush2.msra.mxu0 %v158
    %2498 = vmatprep.subr.mxu0 %v155
    %2499 = vmatpush2.msra.mxu0 %v154
    %2500 = vmatprep.subr.mxu0 %v151
    %2501 = vmatpush2.msra.mxu0 %v150
    %2502 = vmatprep.mubr.f32.mxu0 %v2255
    %2503 = vmatmul.mubr.f32.gmra.mxu0 %v2437
    %v2504 = vpop.f32.mrf.mxu0
    %v2505 = vadd.f32 %v214, %v2504
    %v2506 = vpop.f32.mrf.mxu0
    %v2507 = vadd.f32 %v215, %v2506
    %2508 = vdwg.mxu0
    %2509 = vmatprep.subr.mxu0 %v149
    %2510 = vmatpush1.msra.mxu0 %v148
    %2511 = vmatprep.subr.mxu0 %v145
    %2512 = vmatpush1.msra.mxu0 %v144
    %2513 = vmatprep.subr.mxu0 %v141
    %2514 = vmatpush1.msra.mxu0 %v140
    %2515 = vmatprep.subr.mxu0 %v137
    %2516 = vmatpush1.msra.mxu0 %v136
    %2517 = vmatprep.subr.mxu0 %v133
    %2518 = vmatpush1.msra.mxu0 %v132
    %2519 = vmatprep.subr.mxu0 %v129
    %2520 = vmatpush1.msra.mxu0 %v128
    %2521 = vmatprep.subr.mxu0 %v125
    %2522 = vmatpush1.msra.mxu0 %v124
    %2523 = vmatprep.subr.mxu0 %v121
    %2524 = vmatpush1.msra.mxu0 %v120
    %2525 = vmatprep.subr.mxu0 %v117
    %2526 = vmatpush1.msra.mxu0 %v116
    %2527 = vmatprep.subr.mxu0 %v113
    %2528 = vmatpush1.msra.mxu0 %v112
    %2529 = vmatprep.subr.mxu0 %v109
    %2530 = vmatpush1.msra.mxu0 %v108
    %2531 = vmatprep.subr.mxu0 %v105
    %2532 = vmatpush1.msra.mxu0 %v104
    %2533 = vmatprep.subr.mxu0 %v101
    %2534 = vmatpush1.msra.mxu0 %v100
    %2535 = vmatprep.subr.mxu0 %v97
    %2536 = vmatpush1.msra.mxu0 %v96
    %2537 = vmatprep.subr.mxu0 %v93
    %2538 = vmatpush1.msra.mxu0 %v92
    %2539 = vmatprep.subr.mxu0 %v89
    %2540 = vmatpush1.msra.mxu0 %v88
    %2541 = vmatprep.subr.mxu0 %v213
    %2542 = vmatpush2.msra.mxu0 %v212
    %2543 = vmatprep.subr.mxu0 %v209
    %2544 = vmatpush2.msra.mxu0 %v208
    %2545 = vmatprep.subr.mxu0 %v205
    %2546 = vmatpush2.msra.mxu0 %v204
    %2547 = vmatprep.subr.mxu0 %v201
    %2548 = vmatpush2.msra.mxu0 %v200
    %2549 = vmatprep.subr.mxu0 %v197
    %2550 = vmatpush2.msra.mxu0 %v196
    %2551 = vmatprep.subr.mxu0 %v193
    %2552 = vmatpush2.msra.mxu0 %v192
    %2553 = vmatprep.subr.mxu0 %v189
    %2554 = vmatpush2.msra.mxu0 %v188
    %2555 = vmatprep.subr.mxu0 %v185
    %2556 = vmatpush2.msra.mxu0 %v184
    %2557 = vmatprep.subr.mxu0 %v181
    %2558 = vmatpush2.msra.mxu0 %v180
    %2559 = vmatprep.subr.mxu0 %v177
    %2560 = vmatpush2.msra.mxu0 %v176
    %2561 = vmatprep.subr.mxu0 %v173
    %2562 = vmatpush2.msra.mxu0 %v172
    %2563 = vmatprep.subr.mxu0 %v169
    %2564 = vmatpush2.msra.mxu0 %v168
    %2565 = vmatprep.subr.mxu0 %v165
    %2566 = vmatpush2.msra.mxu0 %v164
    %2567 = vmatprep.subr.mxu0 %v161
    %2568 = vmatpush2.msra.mxu0 %v160
    %2569 = vmatprep.subr.mxu0 %v157
    %2570 = vmatpush2.msra.mxu0 %v156
    %2571 = vmatprep.subr.mxu0 %v153
    %2572 = vmatpush2.msra.mxu0 %v152
    %2573 = vmatprep.mubr.f32.mxu0 %v2255
    %2574 = vmatmul.mubr.f32.gmra.mxu0 %v2437
    %v2575 = vpop.f32.mrf.mxu0
    %v2576 = vadd.f32 %v216, %v2575
    %v2577 = vpop.f32.mrf.mxu0
    %v2578 = vadd.f32 %v217, %v2577
    %2579 = vdwg.mxu0
    %v2580 = vxor.u32 %v2505, 2147483648
    %v2581 = vxor.u32 %v2507, 2147483648
    %v2582 = vxor.u32 %v2576, 2147483648
    %v2583 = vmul.f32 %v2580, 1.442695
    %v2584 = vpow.pop %v2583
    %v2585 = vmul.f32 %v2581, 1.442695
    %v2586 = vpow.pop %v2585
    %v2587 = vmul.f32 %v2582, 1.442695
    %v2588 = vpow.pop %v2587
    %v2589 = vadd.f32 %v2584, 1.0
    %v2590 = vadd.f32 %v2586, 1.0
    %v2591 = vadd.f32 %v2588, 1.0
    %v2592 = vrcp.pop %v2589
    %v2593 = vmul.f32 1.0, %v2592
    %v2594 = vrcp.pop %v2590
    %v2595 = vmul.f32 1.0, %v2594
    %v2596 = vrcp.pop %v2591
    %v2597 = vmul.f32 1.0, %v2596
    %v2598 = vtanh.pop %v2578
    %v2599 = vmul.f32 %v2595, %v2253
    %v2600 = vmul.f32 %v2593, %v2598
    %v2601 = vadd.f32 %v2599, %v2600
    %v2602 = vtanh.pop %v2601
    %v2603 = vmul.f32 %v2597, %v2602
    %2604 = vmatprep.subr.mxu0 %v445
    %2605 = vmatpush1.msra.mxu0 %v444
    %2606 = vmatprep.subr.mxu0 %v441
    %2607 = vmatpush1.msra.mxu0 %v440
    %2608 = vmatprep.subr.mxu0 %v437
    %2609 = vmatpush1.msra.mxu0 %v436
    %2610 = vmatprep.subr.mxu0 %v433
    %2611 = vmatpush1.msra.mxu0 %v432
    %2612 = vmatprep.subr.mxu0 %v429
    %2613 = vmatpush1.msra.mxu0 %v428
    %2614 = vmatprep.subr.mxu0 %v425
    %2615 = vmatpush1.msra.mxu0 %v424
    %2616 = vmatprep.subr.mxu0 %v421
    %2617 = vmatpush1.msra.mxu0 %v420
    %2618 = vmatprep.subr.mxu0 %v417
    %2619 = vmatpush1.msra.mxu0 %v416
    %2620 = vmatprep.subr.mxu0 %v413
    %2621 = vmatpush1.msra.mxu0 %v412
    %2622 = vmatprep.subr.mxu0 %v409
    %2623 = vmatpush1.msra.mxu0 %v408
    %2624 = vmatprep.subr.mxu0 %v405
    %2625 = vmatpush1.msra.mxu0 %v404
    %2626 = vmatprep.subr.mxu0 %v401
    %2627 = vmatpush1.msra.mxu0 %v400
    %2628 = vmatprep.subr.mxu0 %v397
    %2629 = vmatpush1.msra.mxu0 %v396
    %2630 = vmatprep.subr.mxu0 %v393
    %2631 = vmatpush1.msra.mxu0 %v392
    %2632 = vmatprep.subr.mxu0 %v389
    %2633 = vmatpush1.msra.mxu0 %v388
    %2634 = vmatprep.subr.mxu0 %v385
    %2635 = vmatpush1.msra.mxu0 %v384
    %2636 = vmatprep.subr.mxu0 %v509
    %2637 = vmatpush2.msra.mxu0 %v508
    %2638 = vmatprep.subr.mxu0 %v505
    %2639 = vmatpush2.msra.mxu0 %v504
    %2640 = vmatprep.subr.mxu0 %v501
    %2641 = vmatpush2.msra.mxu0 %v500
    %2642 = vmatprep.subr.mxu0 %v497
    %2643 = vmatpush2.msra.mxu0 %v496
    %2644 = vmatprep.subr.mxu0 %v493
    %2645 = vmatpush2.msra.mxu0 %v492
    %2646 = vmatprep.subr.mxu0 %v489
    %2647 = vmatpush2.msra.mxu0 %v488
    %2648 = vmatprep.subr.mxu0 %v485
    %2649 = vmatpush2.msra.mxu0 %v484
    %2650 = vmatprep.subr.mxu0 %v481
    %2651 = vmatpush2.msra.mxu0 %v480
    %2652 = vmatprep.subr.mxu0 %v477
    %2653 = vmatpush2.msra.mxu0 %v476
    %2654 = vmatprep.subr.mxu0 %v473
    %2655 = vmatpush2.msra.mxu0 %v472
    %2656 = vmatprep.subr.mxu0 %v469
    %2657 = vmatpush2.msra.mxu0 %v468
    %2658 = vmatprep.subr.mxu0 %v465
    %2659 = vmatpush2.msra.mxu0 %v464
    %2660 = vmatprep.subr.mxu0 %v461
    %2661 = vmatpush2.msra.mxu0 %v460
    %2662 = vmatprep.subr.mxu0 %v457
    %2663 = vmatpush2.msra.mxu0 %v456
    %2664 = vmatprep.subr.mxu0 %v453
    %2665 = vmatpush2.msra.mxu0 %v452
    %2666 = vmatprep.subr.mxu0 %v449
    %2667 = vmatpush2.msra.mxu0 %v448
    %2668 = vmatprep.mubr.f32.mxu0 %v2421
    %2669 = vmatmul.mubr.f32.gmra.mxu0 %v2603
    %v2670 = vpop.f32.mrf.mxu0
    %v2671 = vadd.f32 %v512, %v2670
    %v2672 = vpop.f32.mrf.mxu0
    %v2673 = vadd.f32 %v513, %v2672
    %2674 = vdwg.mxu0
    %2675 = vmatprep.subr.mxu0 %v447
    %2676 = vmatpush1.msra.mxu0 %v446
    %2677 = vmatprep.subr.mxu0 %v443
    %2678 = vmatpush1.msra.mxu0 %v442
    %2679 = vmatprep.subr.mxu0 %v439
    %2680 = vmatpush1.msra.mxu0 %v438
    %2681 = vmatprep.subr.mxu0 %v435
    %2682 = vmatpush1.msra.mxu0 %v434
    %2683 = vmatprep.subr.mxu0 %v431
    %2684 = vmatpush1.msra.mxu0 %v430
    %2685 = vmatprep.subr.mxu0 %v427
    %2686 = vmatpush1.msra.mxu0 %v426
    %2687 = vmatprep.subr.mxu0 %v423
    %2688 = vmatpush1.msra.mxu0 %v422
    %2689 = vmatprep.subr.mxu0 %v419
    %2690 = vmatpush1.msra.mxu0 %v418
    %2691 = vmatprep.subr.mxu0 %v415
    %2692 = vmatpush1.msra.mxu0 %v414
    %2693 = vmatprep.subr.mxu0 %v411
    %2694 = vmatpush1.msra.mxu0 %v410
    %2695 = vmatprep.subr.mxu0 %v407
    %2696 = vmatpush1.msra.mxu0 %v406
    %2697 = vmatprep.subr.mxu0 %v403
    %2698 = vmatpush1.msra.mxu0 %v402
    %2699 = vmatprep.subr.mxu0 %v399
    %2700 = vmatpush1.msra.mxu0 %v398
    %2701 = vmatprep.subr.mxu0 %v395
    %2702 = vmatpush1.msra.mxu0 %v394
    %2703 = vmatprep.subr.mxu0 %v391
    %2704 = vmatpush1.msra.mxu0 %v390
    %2705 = vmatprep.subr.mxu0 %v387
    %2706 = vmatpush1.msra.mxu0 %v386
    %2707 = vmatprep.subr.mxu0 %v511
    %2708 = vmatpush2.msra.mxu0 %v510
    %2709 = vmatprep.subr.mxu0 %v507
    %2710 = vmatpush2.msra.mxu0 %v506
    %2711 = vmatprep.subr.mxu0 %v503
    %2712 = vmatpush2.msra.mxu0 %v502
    %2713 = vmatprep.subr.mxu0 %v499
    %2714 = vmatpush2.msra.mxu0 %v498
    %2715 = vmatprep.subr.mxu0 %v495
    %2716 = vmatpush2.msra.mxu0 %v494
    %2717 = vmatprep.subr.mxu0 %v491
    %2718 = vmatpush2.msra.mxu0 %v490
    %2719 = vmatprep.subr.mxu0 %v487
    %2720 = vmatpush2.msra.mxu0 %v486
    %2721 = vmatprep.subr.mxu0 %v483
    %2722 = vmatpush2.msra.mxu0 %v482
    %2723 = vmatprep.subr.mxu0 %v479
    %2724 = vmatpush2.msra.mxu0 %v478
    %2725 = vmatprep.subr.mxu0 %v475
    %2726 = vmatpush2.msra.mxu0 %v474
    %2727 = vmatprep.subr.mxu0 %v471
    %2728 = vmatpush2.msra.mxu0 %v470
    %2729 = vmatprep.subr.mxu0 %v467
    %2730 = vmatpush2.msra.mxu0 %v466
    %2731 = vmatprep.subr.mxu0 %v463
    %2732 = vmatpush2.msra.mxu0 %v462
    %2733 = vmatprep.subr.mxu0 %v459
    %2734 = vmatpush2.msra.mxu0 %v458
    %2735 = vmatprep.subr.mxu0 %v455
    %2736 = vmatpush2.msra.mxu0 %v454
    %2737 = vmatprep.subr.mxu0 %v451
    %2738 = vmatpush2.msra.mxu0 %v450
    %2739 = vmatprep.mubr.f32.mxu0 %v2421
    %2740 = vmatmul.mubr.f32.gmra.mxu0 %v2603
    %v2741 = vpop.f32.mrf.mxu0
    %v2742 = vadd.f32 %v514, %v2741
    %v2743 = vpop.f32.mrf.mxu0
    %v2744 = vadd.f32 %v515, %v2743
    %2745 = vdwg.mxu0
    %v2746 = vxor.u32 %v2671, 2147483648
    %v2747 = vxor.u32 %v2673, 2147483648
    %v2748 = vxor.u32 %v2742, 2147483648
    %v2749 = vmul.f32 %v2746, 1.442695
    %v2750 = vpow.pop %v2749
    %v2751 = vmul.f32 %v2747, 1.442695
    %v2752 = vpow.pop %v2751
    %v2753 = vmul.f32 %v2748, 1.442695
    %v2754 = vpow.pop %v2753
    %v2755 = vadd.f32 %v2750, 1.0
    %v2756 = vadd.f32 %v2752, 1.0
    %v2757 = vadd.f32 %v2754, 1.0
    %v2758 = vrcp.pop %v2755
    %v2759 = vmul.f32 1.0, %v2758
    %v2760 = vrcp.pop %v2756
    %v2761 = vmul.f32 1.0, %v2760
    %v2762 = vrcp.pop %v2757
    %v2763 = vmul.f32 1.0, %v2762
    %v2764 = vtanh.pop %v2744
    %v2765 = vmul.f32 %v2761, %v2419
    %v2766 = vmul.f32 %v2759, %v2764
    %v2767 = vadd.f32 %v2765, %v2766
    %v2768 = vtanh.pop %v2767
    %v2769 = vmul.f32 %v2763, %v2768
    %v2770 = vmul.f32 %v2769, %v2769
    %2771 = vadd.xlane.f32.xlu0 %v2770
    %v2772 = vpop.xlane.xlu0 %2771
    %v2773 = vrsqrt.pop %v2772
    %v2774 = vmul.f32 %v2772, %v2773
    %vm2775 = vcmp.eq.f32.partialorder %v2772, inf
    %v2776 = vsel %vm2775, %v2772, %v2774
    %vm2777 = vcmp.eq.f32.partialorder %v2772, 0.0
    %v2778 = vand.u32 %v2772, 2147483648
    %v2779 = vsel %vm2777, %v2778, %v2776
    %v2780 = vmax.f32 %v2779, 1e-12
    %v2781 = vrcp.pop %v2780
    %v2782 = vmul.f32 %v2769, %v2781
    %v2783 = vadd.f32 %v2435, %v2782
    %s2784 = scalar_lea.vmem [#allocation2], 56
    %v2785 = vld [vmem:[%s2784] sm:$0xff]
    %2786 = vmatprep.subr.mxu0 %v147
    %2787 = vmatpush1.msra.mxu0 %v146
    %2788 = vmatprep.subr.mxu0 %v143
    %2789 = vmatpush1.msra.mxu0 %v142
    %2790 = vmatprep.subr.mxu0 %v139
    %2791 = vmatpush1.msra.mxu0 %v138
    %2792 = vmatprep.subr.mxu0 %v135
    %2793 = vmatpush1.msra.mxu0 %v134
    %2794 = vmatprep.subr.mxu0 %v131
    %2795 = vmatpush1.msra.mxu0 %v130
    %2796 = vmatprep.subr.mxu0 %v127
    %2797 = vmatpush1.msra.mxu0 %v126
    %2798 = vmatprep.subr.mxu0 %v123
    %2799 = vmatpush1.msra.mxu0 %v122
    %2800 = vmatprep.subr.mxu0 %v119
    %2801 = vmatpush1.msra.mxu0 %v118
    %2802 = vmatprep.subr.mxu0 %v115
    %2803 = vmatpush1.msra.mxu0 %v114
    %2804 = vmatprep.subr.mxu0 %v111
    %2805 = vmatpush1.msra.mxu0 %v110
    %2806 = vmatprep.subr.mxu0 %v107
    %2807 = vmatpush1.msra.mxu0 %v106
    %2808 = vmatprep.subr.mxu0 %v103
    %2809 = vmatpush1.msra.mxu0 %v102
    %2810 = vmatprep.subr.mxu0 %v99
    %2811 = vmatpush1.msra.mxu0 %v98
    %2812 = vmatprep.subr.mxu0 %v95
    %2813 = vmatpush1.msra.mxu0 %v94
    %2814 = vmatprep.subr.mxu0 %v91
    %2815 = vmatpush1.msra.mxu0 %v90
    %2816 = vmatprep.subr.mxu0 %v87
    %2817 = vmatpush1.msra.mxu0 %v86
    %2818 = vmatprep.subr.mxu0 %v211
    %2819 = vmatpush2.msra.mxu0 %v210
    %2820 = vmatprep.subr.mxu0 %v207
    %2821 = vmatpush2.msra.mxu0 %v206
    %2822 = vmatprep.subr.mxu0 %v203
    %2823 = vmatpush2.msra.mxu0 %v202
    %2824 = vmatprep.subr.mxu0 %v199
    %2825 = vmatpush2.msra.mxu0 %v198
    %2826 = vmatprep.subr.mxu0 %v195
    %2827 = vmatpush2.msra.mxu0 %v194
    %2828 = vmatprep.subr.mxu0 %v191
    %2829 = vmatpush2.msra.mxu0 %v190
    %2830 = vmatprep.subr.mxu0 %v187
    %2831 = vmatpush2.msra.mxu0 %v186
    %2832 = vmatprep.subr.mxu0 %v183
    %2833 = vmatpush2.msra.mxu0 %v182
    %2834 = vmatprep.subr.mxu0 %v179
    %2835 = vmatpush2.msra.mxu0 %v178
    %2836 = vmatprep.subr.mxu0 %v175
    %2837 = vmatpush2.msra.mxu0 %v174
    %2838 = vmatprep.subr.mxu0 %v171
    %2839 = vmatpush2.msra.mxu0 %v170
    %2840 = vmatprep.subr.mxu0 %v167
    %2841 = vmatpush2.msra.mxu0 %v166
    %2842 = vmatprep.subr.mxu0 %v163
    %2843 = vmatpush2.msra.mxu0 %v162
    %2844 = vmatprep.subr.mxu0 %v159
    %2845 = vmatpush2.msra.mxu0 %v158
    %2846 = vmatprep.subr.mxu0 %v155
    %2847 = vmatpush2.msra.mxu0 %v154
    %2848 = vmatprep.subr.mxu0 %v151
    %2849 = vmatpush2.msra.mxu0 %v150
    %2850 = vmatprep.mubr.f32.mxu0 %v2603
    %2851 = vmatmul.mubr.f32.gmra.mxu0 %v2785
    %v2852 = vpop.f32.mrf.mxu0
    %v2853 = vadd.f32 %v214, %v2852
    %v2854 = vpop.f32.mrf.mxu0
    %v2855 = vadd.f32 %v215, %v2854
    %2856 = vdwg.mxu0
    %2857 = vmatprep.subr.mxu0 %v149
    %2858 = vmatpush1.msra.mxu0 %v148
    %2859 = vmatprep.subr.mxu0 %v145
    %2860 = vmatpush1.msra.mxu0 %v144
    %2861 = vmatprep.subr.mxu0 %v141
    %2862 = vmatpush1.msra.mxu0 %v140
    %2863 = vmatprep.subr.mxu0 %v137
    %2864 = vmatpush1.msra.mxu0 %v136
    %2865 = vmatprep.subr.mxu0 %v133
    %2866 = vmatpush1.msra.mxu0 %v132
    %2867 = vmatprep.subr.mxu0 %v129
    %2868 = vmatpush1.msra.mxu0 %v128
    %2869 = vmatprep.subr.mxu0 %v125
    %2870 = vmatpush1.msra.mxu0 %v124
    %2871 = vmatprep.subr.mxu0 %v121
    %2872 = vmatpush1.msra.mxu0 %v120
    %2873 = vmatprep.subr.mxu0 %v117
    %2874 = vmatpush1.msra.mxu0 %v116
    %2875 = vmatprep.subr.mxu0 %v113
    %2876 = vmatpush1.msra.mxu0 %v112
    %2877 = vmatprep.subr.mxu0 %v109
    %2878 = vmatpush1.msra.mxu0 %v108
    %2879 = vmatprep.subr.mxu0 %v105
    %2880 = vmatpush1.msra.mxu0 %v104
    %2881 = vmatprep.subr.mxu0 %v101
    %2882 = vmatpush1.msra.mxu0 %v100
    %2883 = vmatprep.subr.mxu0 %v97
    %2884 = vmatpush1.msra.mxu0 %v96
    %2885 = vmatprep.subr.mxu0 %v93
    %2886 = vmatpush1.msra.mxu0 %v92
    %2887 = vmatprep.subr.mxu0 %v89
    %2888 = vmatpush1.msra.mxu0 %v88
    %2889 = vmatprep.subr.mxu0 %v213
    %2890 = vmatpush2.msra.mxu0 %v212
    %2891 = vmatprep.subr.mxu0 %v209
    %2892 = vmatpush2.msra.mxu0 %v208
    %2893 = vmatprep.subr.mxu0 %v205
    %2894 = vmatpush2.msra.mxu0 %v204
    %2895 = vmatprep.subr.mxu0 %v201
    %2896 = vmatpush2.msra.mxu0 %v200
    %2897 = vmatprep.subr.mxu0 %v197
    %2898 = vmatpush2.msra.mxu0 %v196
    %2899 = vmatprep.subr.mxu0 %v193
    %2900 = vmatpush2.msra.mxu0 %v192
    %2901 = vmatprep.subr.mxu0 %v189
    %2902 = vmatpush2.msra.mxu0 %v188
    %2903 = vmatprep.subr.mxu0 %v185
    %2904 = vmatpush2.msra.mxu0 %v184
    %2905 = vmatprep.subr.mxu0 %v181
    %2906 = vmatpush2.msra.mxu0 %v180
    %2907 = vmatprep.subr.mxu0 %v177
    %2908 = vmatpush2.msra.mxu0 %v176
    %2909 = vmatprep.subr.mxu0 %v173
    %2910 = vmatpush2.msra.mxu0 %v172
    %2911 = vmatprep.subr.mxu0 %v169
    %2912 = vmatpush2.msra.mxu0 %v168
    %2913 = vmatprep.subr.mxu0 %v165
    %2914 = vmatpush2.msra.mxu0 %v164
    %2915 = vmatprep.subr.mxu0 %v161
    %2916 = vmatpush2.msra.mxu0 %v160
    %2917 = vmatprep.subr.mxu0 %v157
    %2918 = vmatpush2.msra.mxu0 %v156
    %2919 = vmatprep.subr.mxu0 %v153
    %2920 = vmatpush2.msra.mxu0 %v152
    %2921 = vmatprep.mubr.f32.mxu0 %v2603
    %2922 = vmatmul.mubr.f32.gmra.mxu0 %v2785
    %v2923 = vpop.f32.mrf.mxu0
    %v2924 = vadd.f32 %v216, %v2923
    %v2925 = vpop.f32.mrf.mxu0
    %v2926 = vadd.f32 %v217, %v2925
    %2927 = vdwg.mxu0
    %v2928 = vxor.u32 %v2853, 2147483648
    %v2929 = vxor.u32 %v2855, 2147483648
    %v2930 = vxor.u32 %v2924, 2147483648
    %v2931 = vmul.f32 %v2928, 1.442695
    %v2932 = vpow.pop %v2931
    %v2933 = vmul.f32 %v2929, 1.442695
    %v2934 = vpow.pop %v2933
    %v2935 = vmul.f32 %v2930, 1.442695
    %v2936 = vpow.pop %v2935
    %v2937 = vadd.f32 %v2932, 1.0
    %v2938 = vadd.f32 %v2934, 1.0
    %v2939 = vadd.f32 %v2936, 1.0
    %v2940 = vrcp.pop %v2937
    %v2941 = vmul.f32 1.0, %v2940
    %v2942 = vrcp.pop %v2938
    %v2943 = vmul.f32 1.0, %v2942
    %v2944 = vrcp.pop %v2939
    %v2945 = vmul.f32 1.0, %v2944
    %v2946 = vtanh.pop %v2926
    %v2947 = vmul.f32 %v2943, %v2601
    %v2948 = vmul.f32 %v2941, %v2946
    %v2949 = vadd.f32 %v2947, %v2948
    %v2950 = vtanh.pop %v2949
    %v2951 = vmul.f32 %v2945, %v2950
    %2952 = vmatprep.subr.mxu0 %v445
    %2953 = vmatpush1.msra.mxu0 %v444
    %2954 = vmatprep.subr.mxu0 %v441
    %2955 = vmatpush1.msra.mxu0 %v440
    %2956 = vmatprep.subr.mxu0 %v437
    %2957 = vmatpush1.msra.mxu0 %v436
    %2958 = vmatprep.subr.mxu0 %v433
    %2959 = vmatpush1.msra.mxu0 %v432
    %2960 = vmatprep.subr.mxu0 %v429
    %2961 = vmatpush1.msra.mxu0 %v428
    %2962 = vmatprep.subr.mxu0 %v425
    %2963 = vmatpush1.msra.mxu0 %v424
    %2964 = vmatprep.subr.mxu0 %v421
    %2965 = vmatpush1.msra.mxu0 %v420
    %2966 = vmatprep.subr.mxu0 %v417
    %2967 = vmatpush1.msra.mxu0 %v416
    %2968 = vmatprep.subr.mxu0 %v413
    %2969 = vmatpush1.msra.mxu0 %v412
    %2970 = vmatprep.subr.mxu0 %v409
    %2971 = vmatpush1.msra.mxu0 %v408
    %2972 = vmatprep.subr.mxu0 %v405
    %2973 = vmatpush1.msra.mxu0 %v404
    %2974 = vmatprep.subr.mxu0 %v401
    %2975 = vmatpush1.msra.mxu0 %v400
    %2976 = vmatprep.subr.mxu0 %v397
    %2977 = vmatpush1.msra.mxu0 %v396
    %2978 = vmatprep.subr.mxu0 %v393
    %2979 = vmatpush1.msra.mxu0 %v392
    %2980 = vmatprep.subr.mxu0 %v389
    %2981 = vmatpush1.msra.mxu0 %v388
    %2982 = vmatprep.subr.mxu0 %v385
    %2983 = vmatpush1.msra.mxu0 %v384
    %2984 = vmatprep.subr.mxu0 %v509
    %2985 = vmatpush2.msra.mxu0 %v508
    %2986 = vmatprep.subr.mxu0 %v505
    %2987 = vmatpush2.msra.mxu0 %v504
    %2988 = vmatprep.subr.mxu0 %v501
    %2989 = vmatpush2.msra.mxu0 %v500
    %2990 = vmatprep.subr.mxu0 %v497
    %2991 = vmatpush2.msra.mxu0 %v496
    %2992 = vmatprep.subr.mxu0 %v493
    %2993 = vmatpush2.msra.mxu0 %v492
    %2994 = vmatprep.subr.mxu0 %v489
    %2995 = vmatpush2.msra.mxu0 %v488
    %2996 = vmatprep.subr.mxu0 %v485
    %2997 = vmatpush2.msra.mxu0 %v484
    %2998 = vmatprep.subr.mxu0 %v481
    %2999 = vmatpush2.msra.mxu0 %v480
    %3000 = vmatprep.subr.mxu0 %v477
    %3001 = vmatpush2.msra.mxu0 %v476
    %3002 = vmatprep.subr.mxu0 %v473
    %3003 = vmatpush2.msra.mxu0 %v472
    %3004 = vmatprep.subr.mxu0 %v469
    %3005 = vmatpush2.msra.mxu0 %v468
    %3006 = vmatprep.subr.mxu0 %v465
    %3007 = vmatpush2.msra.mxu0 %v464
    %3008 = vmatprep.subr.mxu0 %v461
    %3009 = vmatpush2.msra.mxu0 %v460
    %3010 = vmatprep.subr.mxu0 %v457
    %3011 = vmatpush2.msra.mxu0 %v456
    %3012 = vmatprep.subr.mxu0 %v453
    %3013 = vmatpush2.msra.mxu0 %v452
    %3014 = vmatprep.subr.mxu0 %v449
    %3015 = vmatpush2.msra.mxu0 %v448
    %3016 = vmatprep.mubr.f32.mxu0 %v2769
    %3017 = vmatmul.mubr.f32.gmra.mxu0 %v2951
    %v3018 = vpop.f32.mrf.mxu0
    %v3019 = vadd.f32 %v512, %v3018
    %v3020 = vpop.f32.mrf.mxu0
    %v3021 = vadd.f32 %v513, %v3020
    %3022 = vdwg.mxu0
    %3023 = vmatprep.subr.mxu0 %v447
    %3024 = vmatpush1.msra.mxu0 %v446
    %3025 = vmatprep.subr.mxu0 %v443
    %3026 = vmatpush1.msra.mxu0 %v442
    %3027 = vmatprep.subr.mxu0 %v439
    %3028 = vmatpush1.msra.mxu0 %v438
    %3029 = vmatprep.subr.mxu0 %v435
    %3030 = vmatpush1.msra.mxu0 %v434
    %3031 = vmatprep.subr.mxu0 %v431
    %3032 = vmatpush1.msra.mxu0 %v430
    %3033 = vmatprep.subr.mxu0 %v427
    %3034 = vmatpush1.msra.mxu0 %v426
    %3035 = vmatprep.subr.mxu0 %v423
    %3036 = vmatpush1.msra.mxu0 %v422
    %3037 = vmatprep.subr.mxu0 %v419
    %3038 = vmatpush1.msra.mxu0 %v418
    %3039 = vmatprep.subr.mxu0 %v415
    %3040 = vmatpush1.msra.mxu0 %v414
    %3041 = vmatprep.subr.mxu0 %v411
    %3042 = vmatpush1.msra.mxu0 %v410
    %3043 = vmatprep.subr.mxu0 %v407
    %3044 = vmatpush1.msra.mxu0 %v406
    %3045 = vmatprep.subr.mxu0 %v403
    %3046 = vmatpush1.msra.mxu0 %v402
    %3047 = vmatprep.subr.mxu0 %v399
    %3048 = vmatpush1.msra.mxu0 %v398
    %3049 = vmatprep.subr.mxu0 %v395
    %3050 = vmatpush1.msra.mxu0 %v394
    %3051 = vmatprep.subr.mxu0 %v391
    %3052 = vmatpush1.msra.mxu0 %v390
    %3053 = vmatprep.subr.mxu0 %v387
    %3054 = vmatpush1.msra.mxu0 %v386
    %3055 = vmatprep.subr.mxu0 %v511
    %3056 = vmatpush2.msra.mxu0 %v510
    %3057 = vmatprep.subr.mxu0 %v507
    %3058 = vmatpush2.msra.mxu0 %v506
    %3059 = vmatprep.subr.mxu0 %v503
    %3060 = vmatpush2.msra.mxu0 %v502
    %3061 = vmatprep.subr.mxu0 %v499
    %3062 = vmatpush2.msra.mxu0 %v498
    %3063 = vmatprep.subr.mxu0 %v495
    %3064 = vmatpush2.msra.mxu0 %v494
    %3065 = vmatprep.subr.mxu0 %v491
    %3066 = vmatpush2.msra.mxu0 %v490
    %3067 = vmatprep.subr.mxu0 %v487
    %3068 = vmatpush2.msra.mxu0 %v486
    %3069 = vmatprep.subr.mxu0 %v483
    %3070 = vmatpush2.msra.mxu0 %v482
    %3071 = vmatprep.subr.mxu0 %v479
    %3072 = vmatpush2.msra.mxu0 %v478
    %3073 = vmatprep.subr.mxu0 %v475
    %3074 = vmatpush2.msra.mxu0 %v474
    %3075 = vmatprep.subr.mxu0 %v471
    %3076 = vmatpush2.msra.mxu0 %v470
    %3077 = vmatprep.subr.mxu0 %v467
    %3078 = vmatpush2.msra.mxu0 %v466
    %3079 = vmatprep.subr.mxu0 %v463
    %3080 = vmatpush2.msra.mxu0 %v462
    %3081 = vmatprep.subr.mxu0 %v459
    %3082 = vmatpush2.msra.mxu0 %v458
    %3083 = vmatprep.subr.mxu0 %v455
    %3084 = vmatpush2.msra.mxu0 %v454
    %3085 = vmatprep.subr.mxu0 %v451
    %3086 = vmatpush2.msra.mxu0 %v450
    %3087 = vmatprep.mubr.f32.mxu0 %v2769
    %3088 = vmatmul.mubr.f32.gmra.mxu0 %v2951
    %v3089 = vpop.f32.mrf.mxu0
    %v3090 = vadd.f32 %v514, %v3089
    %v3091 = vpop.f32.mrf.mxu0
    %v3092 = vadd.f32 %v515, %v3091
    %3093 = vdwg.mxu0
    %v3094 = vxor.u32 %v3019, 2147483648
    %v3095 = vxor.u32 %v3021, 2147483648
    %v3096 = vxor.u32 %v3090, 2147483648
    %v3097 = vmul.f32 %v3094, 1.442695
    %v3098 = vpow.pop %v3097
    %v3099 = vmul.f32 %v3095, 1.442695
    %v3100 = vpow.pop %v3099
    %v3101 = vmul.f32 %v3096, 1.442695
    %v3102 = vpow.pop %v3101
    %v3103 = vadd.f32 %v3098, 1.0
    %v3104 = vadd.f32 %v3100, 1.0
    %v3105 = vadd.f32 %v3102, 1.0
    %v3106 = vrcp.pop %v3103
    %v3107 = vmul.f32 1.0, %v3106
    %v3108 = vrcp.pop %v3104
    %v3109 = vmul.f32 1.0, %v3108
    %v3110 = vrcp.pop %v3105
    %v3111 = vmul.f32 1.0, %v3110
    %v3112 = vtanh.pop %v3092
    %v3113 = vmul.f32 %v3109, %v2767
    %v3114 = vmul.f32 %v3107, %v3112
    %v3115 = vadd.f32 %v3113, %v3114
    %v3116 = vtanh.pop %v3115
    %v3117 = vmul.f32 %v3111, %v3116
    %v3118 = vmul.f32 %v3117, %v3117
    %3119 = vadd.xlane.f32.xlu0 %v3118
    %v3120 = vpop.xlane.xlu0 %3119
    %v3121 = vrsqrt.pop %v3120
    %v3122 = vmul.f32 %v3120, %v3121
    %vm3123 = vcmp.eq.f32.partialorder %v3120, inf
    %v3124 = vsel %vm3123, %v3120, %v3122
    %vm3125 = vcmp.eq.f32.partialorder %v3120, 0.0
    %v3126 = vand.u32 %v3120, 2147483648
    %v3127 = vsel %vm3125, %v3126, %v3124
    %v3128 = vmax.f32 %v3127, 1e-12
    %v3129 = vrcp.pop %v3128
    %v3130 = vmul.f32 %v3117, %v3129
    %v3131 = vadd.f32 %v2783, %v3130
    %v3132 = vrcp.pop 8.0
    %v3133 = vmul.f32 %v3131, %v3132
    %v3134 = vmul.f32 %v3133, %v3133
    %3135 = vadd.xlane.f32.xlu0 %v3134
    %v3136 = vpop.xlane.xlu0 %3135
    %v3137 = vrsqrt.pop %v3136
    %v3138 = vmul.f32 %v3136, %v3137
    %vm3139 = vcmp.eq.f32.partialorder %v3136, inf
    %v3140 = vsel %vm3139, %v3136, %v3138
    %vm3141 = vcmp.eq.f32.partialorder %v3136, 0.0
    %v3142 = vand.u32 %v3136, 2147483648
    %v3143 = vsel %vm3141, %v3142, %v3140
    %v3144 = vmax.f32 %v3143, 1e-12
    %v3145 = vrcp.pop %v3144
    %v3146 = vmul.f32 %v3133, %v3145
    %3147 = vst [vmem:[#allocation11] sm:$0xff] %v3146
    // Predicated region
    $region42: #{tpu_custom_call.1} parent=1 // pred_check
      _
    $region43: #{tpu_custom_call.1} parent=1 // pred_check_branch
      %3149 = sbr.rel (0) target = $region45
    $region44: #{tpu_custom_call.1} parent=1 // pred_region
      %s3151 = ssub.s32 128, 128
      %3152 = vsyncadd [#allocation4], %s3151
      %s3154 = sshll.u32 [#allocation11], 4
      %s3155 = int_to_ptr.vmem [resolvable:$true] %s3154
      %3157 = dma.vmem_to_hbm [thread:$0]  %s3155, 128, %s5, [#allocation4]
    $region45: #{tpu_custom_call.1} parent=1 // pred_fallthru
      _
    // Predicated region
    $region46: #{tpu_custom_call.1} parent=1 // pred_check
      _
    $region47: #{tpu_custom_call.1} parent=1 // pred_check_branch
      %3159 = sbr.rel (0) target = $region49
    $region48: #{tpu_custom_call.1} parent=1 // pred_region
      %3160 = dma.done [#allocation4], 128
    $region49: #{tpu_custom_call.1} parent=1 // pred_fallthru
      _
    %3161 = vsyncpa [#allocation3], 1
    %3162 = vsyncpa [#allocation6], 1
    %3163 = vsyncpa [#allocation9], 1
    %3164 = vsyncpa [#allocation4], 1

</llo_original>
